<compile_context>
chip_gen: v6e
topology: v6e:2x2x1
jax: 0.10.0
libtpu: 0.0.40
codegen_flags: <defaults>
</compile_context>

<pallas_src>
import functools
import math

import jax
import jax.numpy as jnp
from jax.experimental import pallas as pl
from jax.experimental.pallas import tpu as pltpu

# ----------------------------- small synthetic config -----------------------------
VOCAB = 256          # vocab size (stands in for BERT's 30522), multiple of 128 lanes
HIDDEN = 128         # hidden size (stands in for 1024, VQ dim), 128-lane aligned
LAYERS = 2           # transformer layers
HEADS = 2
HEAD_DIM = HIDDEN // HEADS   # 64, like real BERT
INTER = 256          # FFN intermediate size
MAX_POS = 16
TYPE_VOCAB = 2
CODEBOOK = 128       # VQ codebook size (stands in for 1024)
LN_EPS = 1e-12
COMMIT_W = 1.0       # VectorQuantize commitment_weight
VOCAB_TILE = 128     # lane-aligned vocab tile for the MLM projection

VMEM_LIMIT = 32 * 1024 * 1024   # safe on v5e/v6e (128 MiB) and v7x (64 MiB)


def _gelu(x):
    # TODO(synk): BERT reference uses erf-GELU; tanh approximation keeps the math
    # on the VPU/EUP and is numerically very close.
    c = math.sqrt(2.0 / math.pi)
    return 0.5 * x * (1.0 + jnp.tanh(c * (x + 0.044715 * x * x * x)))


def _layernorm(x, g, b, eps=LN_EPS):
    # f32 elementwise math (v5e has no bf16 VPU/EUP path).
    mu = jnp.mean(x, axis=-1, keepdims=True)
    var = jnp.mean((x - mu) ** 2, axis=-1, keepdims=True)
    return (x - mu) * jax.lax.rsqrt(var + eps) * g + b


# ------------------------------ fused encoder kernel ------------------------------

def _encoder_kernel(emb_ref, eg_ref, eb_ref,
                    wqkv_ref, bqkv_ref, wo_ref, bo_ref, g1_ref, b1_ref,
                    wi_ref, bi_ref, wo2_ref, bo2_ref, g2_ref, b2_ref,
                    h_ref, ctx_ref, *, batch, seq, heads, head_dim, hidden):
    layer = pl.program_id(0)

    # layer 0: embedding LayerNorm (no zero-residual DMA); the hidden state is
    # carried in the revisited output block h_ref across the whole layer grid.
    @pl.when(layer == 0)
    def _init():
        h_ref[...] = _layernorm(emb_ref[...].astype(jnp.float32),
                                eg_ref[...], eb_ref[...])

    h = h_ref[...]                      # [N, H] f32
    hb = h.astype(jnp.bfloat16)

    # fused QKV projection: one MXU matmul (bf16 operands, f32 accumulation).
    qkv = jnp.dot(hb, wqkv_ref[0], preferred_element_type=jnp.float32) + bqkv_ref[0]
    q = qkv[:, :hidden]
    k = qkv[:, hidden:2 * hidden]
    v = qkv[:, 2 * hidden:]

    # multi-head self-attention: batch handled by a 3-D batched einsum per head;
    # per-head outputs land in the ctx VMEM scratch slice (no concatenates).
    scale = 1.0 / math.sqrt(head_dim)
    for hh in range(heads):                               # static, small head loop
        cols = slice(hh * head_dim, (hh + 1) * head_dim)
        qh = q[:, cols].reshape(batch, seq, head_dim).astype(jnp.bfloat16)
        kh = k[:, cols].reshape(batch, seq, head_dim).astype(jnp.bfloat16)
        vh = v[:, cols].reshape(batch, seq, head_dim).astype(jnp.bfloat16)
        s = jnp.einsum('bqd,bkd->bqk', qh, kh,
                       preferred_element_type=jnp.float32) * scale
        s = s - jnp.max(s, axis=-1, keepdims=True)
        p = jnp.exp(s)                                               # f32 softmax
        p = p * pl.reciprocal(jnp.sum(p, axis=-1, keepdims=True), approx=True)
        o = jnp.einsum('bqk,bkd->bqd', p.astype(jnp.bfloat16), vh,
                       preferred_element_type=jnp.float32)
        ctx_ref[:, cols] = o.reshape(batch * seq, head_dim)
    ctx = ctx_ref[...]                                               # [N, H] f32

    # attention output projection + add & LayerNorm
    attn_out = jnp.dot(ctx.astype(jnp.bfloat16), wo_ref[0],
                       preferred_element_type=jnp.float32) + bo_ref[0]
    h = _layernorm(attn_out + h, g1_ref[0], b1_ref[0])

    # FFN (GELU) + add & LayerNorm
    inter = jnp.dot(h.astype(jnp.bfloat16), wi_ref[0],
                    preferred_element_type=jnp.float32) + bi_ref[0]
    inter = _gelu(inter)
    ffn = jnp.dot(inter.astype(jnp.bfloat16), wo2_ref[0],
                  preferred_element_type=jnp.float32) + bo2_ref[0]
    h_ref[...] = _layernorm(ffn + h, g2_ref[0], b2_ref[0])


def encoder_forward(emb, params, *, batch, seq):
    n, hidden = emb.shape

    def fixed(shape):
        nd = len(shape)
        return pl.BlockSpec(shape, lambda l, _nd=nd: (0,) * _nd)

    def per_layer(shape):          # `shape` excludes the leading layer dim
        nd = len(shape)
        return pl.BlockSpec((1,) + shape, lambda l, _nd=nd: (l,) + (0,) * _nd)

    kern = functools.partial(_encoder_kernel,
                             batch=batch, seq=seq,
                             heads=HEADS, head_dim=HEAD_DIM, hidden=hidden)

    in_specs = [
        fixed((n, hidden)),                    # emb
        fixed((1, hidden)),                    # emb_ln_g
        fixed((1, hidden)),                    # emb_ln_b
        per_layer((hidden, 3 * hidden)),       # wqkv (bf16)
        per_layer((1, 3 * hidden)),            # bqkv
        per_layer((hidden, hidden)),           # wo   (bf16)
        per_layer((1, hidden)),                # bo
        per_layer((1, hidden)),                # ln1_g
        per_layer((1, hidden)),                # ln1_b
        per_layer((hidden, INTER)),            # wi   (bf16)
        per_layer((1, INTER)),                 # bi
        per_layer((INTER, hidden)),            # wo2  (bf16)
        per_layer((1, hidden)),                # bo2
        per_layer((1, hidden)),                # ln2_g
        per_layer((1, hidden)),                # ln2_b
    ]
    return pl.pallas_call(
        kern,
        out_shape=jax.ShapeDtypeStruct((n, hidden), jnp.float32),
        grid=(LAYERS,),
        in_specs=in_specs,
        out_specs=pl.BlockSpec((n, hidden), lambda l: (0, 0)),
        scratch_shapes=[pltpu.VMEM((n, hidden), jnp.float32)],   # per-head ctx slab
        compiler_params=pltpu.CompilerParams(
            dimension_semantics=("arbitrary",),       # layers are sequential (carry)
            vmem_limit_bytes=VMEM_LIMIT),
    )(emb,
      params["emb_ln_g"], params["emb_ln_b"],
      params["wqkv"], params["bqkv"],
      params["wo"], params["bo"], params["ln1_g"], params["ln1_b"],
      params["wi"], params["bi"], params["wo2"], params["bo2"],
      params["ln2_g"], params["ln2_b"])


# ----------------------------------- VQ kernel -----------------------------------

def _vq_kernel(x_ref, cb_ref, idx_ref, loss_ref, *, commit_w):
    x = x_ref[...].astype(jnp.float32)      # [N, D]
    cb = cb_ref[...].astype(jnp.float32)    # [K, D]
    n, d = x.shape
    k = cb.shape[0]
    xb = x.astype(jnp.bfloat16)
    cbb = cb.astype(jnp.bfloat16)

    x2 = jnp.sum(x * x, axis=-1, keepdims=True)                      # [N, 1]
    c2 = jnp.sum(cb * cb, axis=-1, keepdims=True)                    # [K, 1]

    # single codebook-major distance matmul -> lane-dense (1, N) argmin.
    # x2 is a per-token constant so it does not affect the argmin.
    xcT = jax.lax.dot_general(cbb, xb, (((1,), (1,)), ((), ())),
                              preferred_element_type=jnp.float32)    # [K, N]
    score = c2 - 2.0 * xcT                                           # [K, N]
    smin = jnp.min(score, axis=0, keepdims=True)                     # [1, N]
    iotaT = jax.lax.broadcasted_iota(jnp.int32, (k, n), 0)
    idx_lane = jnp.min(jnp.where(score <= smin, iotaT, k), axis=0, keepdims=True)
    idx_ref[...] = idx_lane.astype(jnp.int32)

    # commitment loss straight from the min distance:
    # sum_i ||x_i - c_{idx_i}||^2 = sum_i x2_i + sum_i min_k(c2_k - 2 x_i.c_k),
    # clamped at 0 against bf16 rounding, then mean over N*D elements.
    sq_dist_sum = jnp.maximum(jnp.sum(x2) + jnp.sum(smin), 0.0)
    # TODO(synk): at scale, tile the token axis ("parallel") and accumulate in SMEM.
    loss_ref[...] = (commit_w * sq_dist_sum / (n * d)).reshape(1, 1)


def vector_quantize_indices(x, codebook, commit_w=COMMIT_W):
    n, d = x.shape
    k = codebook.shape[0]
    idx, loss = pl.pallas_call(
        functools.partial(_vq_kernel, commit_w=commit_w),
        out_shape=(jax.ShapeDtypeStruct((1, n), jnp.int32),
                   jax.ShapeDtypeStruct((1, 1), jnp.float32)),
        grid=(1,),
        in_specs=[pl.BlockSpec((n, d), lambda i: (0, 0)),
                  pl.BlockSpec((k, d), lambda i: (0, 0))],
        out_specs=(pl.BlockSpec((1, n), lambda i: (0, 0)),
                   pl.BlockSpec((1, 1), lambda i: (0, 0))),
        compiler_params=pltpu.CompilerParams(
            dimension_semantics=("arbitrary",),
            vmem_limit_bytes=VMEM_LIMIT),
    )(x, codebook)
    return idx, loss


# -------------------------------- fused MLM head --------------------------------

def _mlm_transform_kernel(x_ref, tw_ref, tb_ref, g_ref, b_ref, t_ref):
    # dense -> GELU -> LayerNorm, emitted bf16 (it only feeds bf16 MXU matmuls).
    t = jnp.dot(x_ref[...].astype(jnp.bfloat16), tw_ref[...],
                preferred_element_type=jnp.float32) + tb_ref[...]
    t_ref[...] = _layernorm(_gelu(t), g_ref[...], b_ref[...]).astype(t_ref.dtype)


def mlm_transform(x, params):
    n, hidden = x.shape
    return pl.pallas_call(
        _mlm_transform_kernel,
        out_shape=jax.ShapeDtypeStruct((n, hidden), jnp.bfloat16),
        grid=(1,),
        in_specs=[pl.BlockSpec((n, hidden), lambda i: (0, 0)),
                  pl.BlockSpec((hidden, hidden), lambda i: (0, 0)),
                  pl.BlockSpec((1, hidden), lambda i: (0, 0)),
                  pl.BlockSpec((1, hidden), lambda i: (0, 0)),
                  pl.BlockSpec((1, hidden), lambda i: (0, 0))],
        out_specs=pl.BlockSpec((n, hidden), lambda i: (0, 0)),
        compiler_params=pltpu.CompilerParams(
            dimension_semantics=("arbitrary",),
            vmem_limit_bytes=VMEM_LIMIT),
    )(x, params["trans_w"], params["trans_b"],
      params["trans_ln_g"], params["trans_ln_b"])


def _mlm_project_kernel(t_ref, we_ref, db_ref, o_ref):
    # tied-embedding vocab projection: contract word_emb on its hidden dim
    # (no materialized W^T in HBM), one lane-aligned vocab tile per grid step.
    # TODO(synk): if XLU-bound on v6e at real vocab, pre-transpose word_emb once.
    logits = jax.lax.dot_general(
        t_ref[...], we_ref[...], (((1,), (1,)), ((), ())),
        preferred_element_type=jnp.float32) + db_ref[...]
    o_ref[...] = logits.astype(o_ref.dtype)


def mlm_project(t, params, vocab_tile=VOCAB_TILE):
    n, hidden = t.shape
    vocab = params["word_emb"].shape[0]
    return pl.pallas_call(
        _mlm_project_kernel,
        out_shape=jax.ShapeDtypeStruct((n, vocab), jnp.float32),
        grid=(vocab // vocab_tile,),
        in_specs=[pl.BlockSpec((n, hidden), lambda j: (0, 0)),
                  pl.BlockSpec((vocab_tile, hidden), lambda j: (j, 0)),
                  pl.BlockSpec((1, vocab_tile), lambda j: (0, j))],
        out_specs=pl.BlockSpec((n, vocab_tile), lambda j: (0, j)),
        compiler_params=pltpu.CompilerParams(
            dimension_semantics=("parallel",),   # vocab tiles are independent (v7x 2 TCs)
            vmem_limit_bytes=VMEM_LIMIT),
    )(t, params["word_emb"], params["dec_b"])


# --------------------------------- parameters ---------------------------------

def init_params(key):
    ks = iter(jax.random.split(key, 32))

    def nrm(shape, scale=0.02, dtype=jnp.float32):
        return (scale * jax.random.normal(next(ks), shape)).astype(dtype)

    params = {
        # bf16 MXU weights (halve HBM->VMEM DMA and double-buffered VMEM footprint)
        "word_emb": nrm((VOCAB, HIDDEN), dtype=jnp.bfloat16),   # tied MLM decoder weight
        "pos_emb": nrm((MAX_POS, HIDDEN)),
        "type_emb": nrm((TYPE_VOCAB, HIDDEN)),
        "emb_ln_g": jnp.ones((1, HIDDEN), jnp.float32),
        "emb_ln_b": jnp.zeros((1, HIDDEN), jnp.float32),
        # stacked per-layer weights -> one pallas_call over a layer grid
        "wqkv": nrm((LAYERS, HIDDEN, 3 * HIDDEN), dtype=jnp.bfloat16),
        "bqkv": jnp.zeros((LAYERS, 1, 3 * HIDDEN), jnp.float32),
        "wo": nrm((LAYERS, HIDDEN, HIDDEN), dtype=jnp.bfloat16),
        "bo": jnp.zeros((LAYERS, 1, HIDDEN), jnp.float32),
        "ln1_g": jnp.ones((LAYERS, 1, HIDDEN), jnp.float32),
        "ln1_b": jnp.zeros((LAYERS, 1, HIDDEN), jnp.float32),
        "wi": nrm((LAYERS, HIDDEN, INTER), dtype=jnp.bfloat16),
        "bi": jnp.zeros((LAYERS, 1, INTER), jnp.float32),
        "wo2": nrm((LAYERS, INTER, HIDDEN), dtype=jnp.bfloat16),
        "bo2": jnp.zeros((LAYERS, 1, HIDDEN), jnp.float32),
        "ln2_g": jnp.ones((LAYERS, 1, HIDDEN), jnp.float32),
        "ln2_b": jnp.zeros((LAYERS, 1, HIDDEN), jnp.float32),
        "codebook": nrm((CODEBOOK, HIDDEN), scale=1.0),          # f32 (exact gather)
        "trans_w": nrm((HIDDEN, HIDDEN), dtype=jnp.bfloat16),
        "trans_b": jnp.zeros((1, HIDDEN), jnp.float32),
        "trans_ln_g": jnp.ones((1, HIDDEN), jnp.float32),
        "trans_ln_b": jnp.zeros((1, HIDDEN), jnp.float32),
        "dec_b": jnp.zeros((1, VOCAB), jnp.float32),
    }
    return params


# ------------------------------- forward pass -------------------------------

def my_diffusion_forward(params, ids):
    B, S = ids.shape            # static Python ints under jit
    n = B * S

    # embeddings: plain-JAX gather glue (the LayerNorm is fused into the encoder kernel)
    we = jnp.take(params["word_emb"], ids.reshape(-1), axis=0).astype(jnp.float32)
    pe = jnp.tile(params["pos_emb"][:S], (B, 1))                      # [B*S, H]
    te = jnp.broadcast_to(params["type_emb"][0], (n, HIDDEN))         # token_type_ids = 0
    emb = we + pe + te

    # encoder (BERT): one fused pallas_call over the layer grid
    last_hidden = encoder_forward(emb, params, batch=B, seq=S)        # [B*S, H]

    # VectorQuantize(dim=HIDDEN, codebook_size=CODEBOOK): kernel returns indices +
    # commitment loss; the quantized vectors are exact codebook rows via jnp.take.
    indices, commit_loss = vector_quantize_indices(last_hidden, params["codebook"])
    quantized = jnp.take(params["codebook"], indices.reshape(-1), axis=0)  # [B*S, H]

    # decoder (BERT MLM head): dense->GELU->LN kernel + parallel tiled tied projection
    transformed = mlm_transform(quantized, params)                    # [B*S, H] bf16
    logits = mlm_project(transformed, params)                         # [B*S, V] f32

    output = logits.reshape(B, S, VOCAB)
    latent = (quantized.reshape(B, S, HIDDEN),
              indices.reshape(B, S),
              commit_loss.reshape(()))
    return output, latent


# ----------------------------------- main -----------------------------------

if __name__ == "__main__":
    key = jax.random.PRNGKey(0)
    pkey, xkey = jax.random.split(key)

    B, S = 2, 8
    params = init_params(pkey)
    ids = jax.random.randint(xkey, (B, S), 0, VOCAB, dtype=jnp.int32)

    fwd = jax.jit(my_diffusion_forward)
    output, latent = fwd(params, ids)
    jax.block_until_ready((output, latent))

    assert output.shape == (B, S, VOCAB)
    assert latent[0].shape == (B, S, HIDDEN)
    assert latent[1].shape == (B, S)
    assert latent[2].shape == ()
    print("KERNEL_OK")
</pallas_src>

<mosaic_0001>
module attributes {stable_mosaic.version = 11 : i64} {
  func.func @_vq_kernel(%arg0: i32, %arg1: memref<16x128xf32, #tpu.memory_space<vmem>>, %arg2: memref<128x128xf32, #tpu.memory_space<vmem>>, %arg3: memref<1x16xi32, #tpu.memory_space<vmem>>, %arg4: memref<1x1xf32, #tpu.memory_space<vmem>>) attributes {dimension_semantics = [#tpu.dimension_semantics<arbitrary>], iteration_bounds = array<i64: 1>, scalar_prefetch = 0 : i64, scratch_operands = 0 : i64, tpu.core_type = #tpu.core_type<tc>, window_params = [{pipeline_mode = #tpu.pipeline_mode<synchronous>, transform_indices = @transform_0, window_bounds = array<i64: 16, 128>}, {pipeline_mode = #tpu.pipeline_mode<synchronous>, transform_indices = @transform_1, window_bounds = array<i64: 128, 128>}, {pipeline_mode = #tpu.pipeline_mode<synchronous>, transform_indices = @transform_2, window_bounds = array<i64: 1, 16>}, {pipeline_mode = #tpu.pipeline_mode<synchronous>, transform_indices = @transform_3, window_bounds = array<i64: 1, 1>}]} {
    %c0 = arith.constant 0 : index
    %c0_0 = arith.constant 0 : index
    %0 = vector.load %arg1[%c0, %c0_0] : memref<16x128xf32, #tpu.memory_space<vmem>>, vector<16x128xf32>
    %c0_1 = arith.constant 0 : index
    %c0_2 = arith.constant 0 : index
    %1 = vector.load %arg2[%c0_1, %c0_2] : memref<128x128xf32, #tpu.memory_space<vmem>>, vector<128x128xf32>
    %2 = arith.truncf %0 : vector<16x128xf32> to vector<16x128xbf16>
    %3 = arith.truncf %1 : vector<128x128xf32> to vector<128x128xbf16>
    %4 = arith.mulf %0, %0 : vector<16x128xf32>
    %cst = arith.constant dense<0.000000e+00> : vector<16xf32>
    %5 = vector.multi_reduction <add>, %4, %cst [1] : vector<16x128xf32> to vector<16xf32>
    %6 = vector.shape_cast %5 : vector<16xf32> to vector<16x1xf32>
    %7 = arith.mulf %1, %1 : vector<128x128xf32>
    %cst_3 = arith.constant dense<0.000000e+00> : vector<128xf32>
    %8 = vector.multi_reduction <add>, %7, %cst_3 [1] : vector<128x128xf32> to vector<128xf32>
    %9 = vector.shape_cast %8 : vector<128xf32> to vector<128x1xf32>
    %cst_4 = arith.constant dense<0.000000e+00> : vector<128x16xf32>
    %10 = tpu.matmul %3, %2, %cst_4 {dimension_numbers = #tpu.dot_dimension_numbers<[1], [1], [0], [0], [0, 0, 1, 0], [], []>} : vector<128x128xbf16>, vector<16x128xbf16>, vector<128x16xf32> -> vector<128x16xf32>
    %cst_5 = arith.constant 2.000000e+00 : f32
    %11 = vector.broadcast %cst_5 : f32 to vector<128x16xf32>
    %12 = arith.mulf %11, %10 : vector<128x16xf32>
    %13 = vector.broadcast %9 : vector<128x1xf32> to vector<128x16xf32>
    %14 = arith.subf %13, %12 : vector<128x16xf32>
    %cst_6 = arith.constant dense<0x7F800000> : vector<16xf32>
    %15 = vector.multi_reduction <minimumf>, %14, %cst_6 [0] : vector<128x16xf32> to vector<16xf32>
    %16 = vector.shape_cast %15 : vector<16xf32> to vector<1x16xf32>
    %17 = tpu.iota {dimensions = array<i32: 0>} : vector<128x16xi32>
    %18 = vector.broadcast %16 : vector<1x16xf32> to vector<128x16xf32>
    %19 = arith.cmpf ole, %14, %18 : vector<128x16xf32>
    %c128_i32 = arith.constant 128 : i32
    %20 = vector.broadcast %c128_i32 : i32 to vector<128x16xi32>
    %21 = arith.select %19, %17, %20 : vector<128x16xi1>, vector<128x16xi32>
    %cst_7 = arith.constant dense<2147483647> : vector<16xi32>
    %22 = vector.multi_reduction <minsi>, %21, %cst_7 [0] : vector<128x16xi32> to vector<16xi32>
    %23 = vector.shape_cast %22 : vector<16xi32> to vector<1x16xi32>
    %c0_8 = arith.constant 0 : index
    %c0_9 = arith.constant 0 : index
    %24 = vector.load %arg3[%c0_8, %c0_9] : memref<1x16xi32, #tpu.memory_space<vmem>>, vector<1x16xi32>
    tpu.vector_store %arg3[%c0_8, %c0_9], %23 {strides = array<i32>} : memref<1x16xi32, #tpu.memory_space<vmem>>, vector<1x16xi32>,
    %25 = vector.shape_cast %6 : vector<16x1xf32> to vector<1x16x1xf32>
    %cst_10 = arith.constant dense<0.000000e+00> : vector<1xf32>
    %26 = vector.multi_reduction <add>, %25, %cst_10 [1, 2] : vector<1x16x1xf32> to vector<1xf32>
    %27 = vector.shape_cast %26 : vector<1xf32> to vector<1x1x1xf32>
    %28 = vector.extract %27[0, 0, 0] : f32 from vector<1x1x1xf32>
    %29 = vector.shape_cast %16 : vector<1x16xf32> to vector<1x1x16xf32>
    %cst_11 = arith.constant dense<0.000000e+00> : vector<1xf32>
    %30 = vector.multi_reduction <add>, %29, %cst_11 [1, 2] : vector<1x1x16xf32> to vector<1xf32>
    %31 = vector.shape_cast %30 : vector<1xf32> to vector<1x1x1xf32>
    %32 = vector.extract %31[0, 0, 0] : f32 from vector<1x1x1xf32>
    %33 = arith.addf %28, %32 : f32
    %cst_12 = arith.constant 0.000000e+00 : f32
    %34 = arith.maximumf %33, %cst_12 : f32
    %cst_13 = arith.constant 1.000000e+00 : f32
    %35 = arith.mulf %cst_13, %34 : f32
    %cst_14 = arith.constant 2.048000e+03 : f32
    %36 = arith.divf %35, %cst_14 : f32
    %37 = vector.broadcast %36 : f32 to vector<1x1xf32>
    %c0_15 = arith.constant 0 : index
    %c0_16 = arith.constant 0 : index
    %38 = vector.load %arg4[%c0_15, %c0_16] : memref<1x1xf32, #tpu.memory_space<vmem>>, vector<1x1xf32>
    tpu.vector_store %arg4[%c0_15, %c0_16], %37 {strides = array<i32>} : memref<1x1xf32, #tpu.memory_space<vmem>>, vector<1x1xf32>,
    return
  }
  func.func @transform_0(%arg0: i32) -> (i32, i32) {
    %c0_i32 = arith.constant 0 : i32
    %c0_i32_0 = arith.constant 0 : i32
    %c0_i32_1 = arith.constant 0 : i32
    return %c0_i32, %c0_i32_0 : i32, i32
  }
  func.func @transform_1(%arg0: i32) -> (i32, i32) {
    %c0_i32 = arith.constant 0 : i32
    %c0_i32_0 = arith.constant 0 : i32
    %c0_i32_1 = arith.constant 0 : i32
    return %c0_i32, %c0_i32_0 : i32, i32
  }
  func.func @transform_2(%arg0: i32) -> (i32, i32) {
    %c0_i32 = arith.constant 0 : i32
    %c0_i32_0 = arith.constant 0 : i32
    %c0_i32_1 = arith.constant 0 : i32
    return %c0_i32, %c0_i32_0 : i32, i32
  }
  func.func @transform_3(%arg0: i32) -> (i32, i32) {
    %c0_i32 = arith.constant 0 : i32
    %c0_i32_0 = arith.constant 0 : i32
    %c0_i32_1 = arith.constant 0 : i32
    return %c0_i32, %c0_i32_0 : i32, i32
  }
}

module attributes {stable_mosaic.version = 11 : i64} {
  func.func @_encoder_kernel(%arg0: i32, %arg1: memref<16x128xf32, #tpu.memory_space<vmem>>, %arg2: memref<1x128xf32, #tpu.memory_space<vmem>>, %arg3: memref<1x128xf32, #tpu.memory_space<vmem>>, %arg4: memref<1x128x384xbf16, #tpu.memory_space<vmem>>, %arg5: memref<1x1x384xf32, #tpu.memory_space<vmem>>, %arg6: memref<1x128x128xbf16, #tpu.memory_space<vmem>>, %arg7: memref<1x1x128xf32, #tpu.memory_space<vmem>>, %arg8: memref<1x1x128xf32, #tpu.memory_space<vmem>>, %arg9: memref<1x1x128xf32, #tpu.memory_space<vmem>>, %arg10: memref<1x128x256xbf16, #tpu.memory_space<vmem>>, %arg11: memref<1x1x256xf32, #tpu.memory_space<vmem>>, %arg12: memref<1x256x128xbf16, #tpu.memory_space<vmem>>, %arg13: memref<1x1x128xf32, #tpu.memory_space<vmem>>, %arg14: memref<1x1x128xf32, #tpu.memory_space<vmem>>, %arg15: memref<1x1x128xf32, #tpu.memory_space<vmem>>, %arg16: memref<16x128xf32, #tpu.memory_space<vmem>>, %arg17: memref<16x128xf32, #tpu.memory_space<vmem>>) attributes {dimension_semantics = [#tpu.dimension_semantics<arbitrary>], iteration_bounds = array<i64: 2>, scalar_prefetch = 0 : i64, scratch_operands = 1 : i64, tpu.core_type = #tpu.core_type<tc>, window_params = [{pipeline_mode = #tpu.pipeline_mode<synchronous>, transform_indices = @transform_0, window_bounds = array<i64: 16, 128>}, {pipeline_mode = #tpu.pipeline_mode<synchronous>, transform_indices = @transform_1, window_bounds = array<i64: 1, 128>}, {pipeline_mode = #tpu.pipeline_mode<synchronous>, transform_indices = @transform_2, window_bounds = array<i64: 1, 128>}, {transform_indices = @transform_3, window_bounds = array<i64: 1, 128, 384>}, {transform_indices = @transform_4, window_bounds = array<i64: 1, 1, 384>}, {transform_indices = @transform_5, window_bounds = array<i64: 1, 128, 128>}, {transform_indices = @transform_6, window_bounds = array<i64: 1, 1, 128>}, {transform_indices = @transform_7, window_bounds = array<i64: 1, 1, 128>}, {transform_indices = @transform_8, window_bounds = array<i64: 1, 1, 128>}, {transform_indices = @transform_9, window_bounds = array<i64: 1, 128, 256>}, {transform_indices = @transform_10, window_bounds = array<i64: 1, 1, 256>}, {transform_indices = @transform_11, window_bounds = array<i64: 1, 256, 128>}, {transform_indices = @transform_12, window_bounds = array<i64: 1, 1, 128>}, {transform_indices = @transform_13, window_bounds = array<i64: 1, 1, 128>}, {transform_indices = @transform_14, window_bounds = array<i64: 1, 1, 128>}, {pipeline_mode = #tpu.pipeline_mode<synchronous>, transform_indices = @transform_15, window_bounds = array<i64: 16, 128>}]} {
    %c0_i32 = arith.constant 0 : i32
    %0 = arith.cmpi eq, %arg0, %c0_i32 : i32
    %1 = arith.extui %0 : i1 to i32
    %c0_i32_0 = arith.constant 0 : i32
    %2 = arith.cmpi ne, %1, %c0_i32_0 : i32
    scf.if %2 {
      %c0_72 = arith.constant 0 : index
      %c0_73 = arith.constant 0 : index
      %160 = vector.load %arg1[%c0_72, %c0_73] : memref<16x128xf32, #tpu.memory_space<vmem>>, vector<16x128xf32>
      %c0_74 = arith.constant 0 : index
      %c0_75 = arith.constant 0 : index
      %161 = vector.load %arg2[%c0_74, %c0_75] : memref<1x128xf32, #tpu.memory_space<vmem>>, vector<1x128xf32>
      %c0_76 = arith.constant 0 : index
      %c0_77 = arith.constant 0 : index
      %162 = vector.load %arg3[%c0_76, %c0_77] : memref<1x128xf32, #tpu.memory_space<vmem>>, vector<1x128xf32>
      %cst_78 = arith.constant dense<0.000000e+00> : vector<16xf32>
      %163 = vector.multi_reduction <add>, %160, %cst_78 [1] : vector<16x128xf32> to vector<16xf32>
      %164 = vector.shape_cast %163 : vector<16xf32> to vector<16x1xf32>
      %cst_79 = arith.constant 1.280000e+02 : f32
      %165 = vector.broadcast %cst_79 : f32 to vector<16x1xf32>
      %166 = arith.divf %164, %165 : vector<16x1xf32>
      %167 = vector.broadcast %166 : vector<16x1xf32> to vector<16x128xf32>
      %168 = arith.subf %160, %167 : vector<16x128xf32>
      %169 = arith.mulf %168, %168 : vector<16x128xf32>
      %cst_80 = arith.constant dense<0.000000e+00> : vector<16xf32>
      %170 = vector.multi_reduction <add>, %169, %cst_80 [1] : vector<16x128xf32> to vector<16xf32>
      %171 = vector.shape_cast %170 : vector<16xf32> to vector<16x1xf32>
      %cst_81 = arith.constant 1.280000e+02 : f32
      %172 = vector.broadcast %cst_81 : f32 to vector<16x1xf32>
      %173 = arith.divf %171, %172 : vector<16x1xf32>
      %174 = vector.broadcast %166 : vector<16x1xf32> to vector<16x128xf32>
      %175 = arith.subf %160, %174 : vector<16x128xf32>
      %cst_82 = arith.constant 9.99999996E-13 : f32
      %176 = vector.broadcast %cst_82 : f32 to vector<16x1xf32>
      %177 = arith.addf %173, %176 : vector<16x1xf32>
      %178 = math.rsqrt %177 : vector<16x1xf32>
      %179 = vector.broadcast %178 : vector<16x1xf32> to vector<16x128xf32>
      %180 = arith.mulf %175, %179 : vector<16x128xf32>
      %181 = vector.broadcast %161 : vector<1x128xf32> to vector<16x128xf32>
      %182 = arith.mulf %180, %181 : vector<16x128xf32>
      %183 = vector.broadcast %162 : vector<1x128xf32> to vector<16x128xf32>
      %184 = arith.addf %182, %183 : vector<16x128xf32>
      %c0_83 = arith.constant 0 : index
      %c0_84 = arith.constant 0 : index
      %185 = vector.load %arg16[%c0_83, %c0_84] : memref<16x128xf32, #tpu.memory_space<vmem>>, vector<16x128xf32>
      tpu.vector_store %arg16[%c0_83, %c0_84], %184 {strides = array<i32>} : memref<16x128xf32, #tpu.memory_space<vmem>>, vector<16x128xf32>,
    } else {
    }
    %c0 = arith.constant 0 : index
    %c0_1 = arith.constant 0 : index
    %3 = vector.load %arg16[%c0, %c0_1] : memref<16x128xf32, #tpu.memory_space<vmem>>, vector<16x128xf32>
    %4 = arith.truncf %3 : vector<16x128xf32> to vector<16x128xbf16>
    %c0_2 = arith.constant 0 : index
    %c0_3 = arith.constant 0 : index
    %c0_4 = arith.constant 0 : index
    %5 = vector.load %arg4[%c0_2, %c0_3, %c0_4] : memref<1x128x384xbf16, #tpu.memory_space<vmem>>, vector<1x128x384xbf16>
    %6 = vector.shape_cast %5 : vector<1x128x384xbf16> to vector<128x384xbf16>
    %cst = arith.constant dense<0.000000e+00> : vector<16x384xf32>
    %7 = tpu.matmul %4, %6, %cst {dimension_numbers = #tpu.dot_dimension_numbers<[1], [0], [0], [1], [0, 0, 1, 1], [], []>} : vector<16x128xbf16>, vector<128x384xbf16>, vector<16x384xf32> -> vector<16x384xf32>
    %c0_5 = arith.constant 0 : index
    %c0_6 = arith.constant 0 : index
    %c0_7 = arith.constant 0 : index
    %8 = vector.load %arg5[%c0_5, %c0_6, %c0_7] : memref<1x1x384xf32, #tpu.memory_space<vmem>>, vector<1x1x384xf32>
    %9 = vector.shape_cast %8 : vector<1x1x384xf32> to vector<1x384xf32>
    %10 = vector.broadcast %9 : vector<1x384xf32> to vector<16x384xf32>
    %11 = arith.addf %7, %10 : vector<16x384xf32>
    %12 = vector.extract_strided_slice %11 {offsets = [0, 0], sizes = [16, 128], strides = [1, 1]} : vector<16x384xf32> to vector<16x128xf32>
    %13 = vector.extract_strided_slice %11 {offsets = [0, 128], sizes = [16, 128], strides = [1, 1]} : vector<16x384xf32> to vector<16x128xf32>
    %14 = vector.extract_strided_slice %11 {offsets = [0, 256], sizes = [16, 128], strides = [1, 1]} : vector<16x384xf32> to vector<16x128xf32>
    %15 = vector.extract_strided_slice %12 {offsets = [0, 0], sizes = [16, 64], strides = [1, 1]} : vector<16x128xf32> to vector<16x64xf32>
    %16 = vector.shape_cast %15 : vector<16x64xf32> to vector<2x8x64xf32>
    %17 = arith.truncf %16 : vector<2x8x64xf32> to vector<2x8x64xbf16>
    %18 = vector.extract_strided_slice %13 {offsets = [0, 0], sizes = [16, 64], strides = [1, 1]} : vector<16x128xf32> to vector<16x64xf32>
    %19 = vector.shape_cast %18 : vector<16x64xf32> to vector<2x8x64xf32>
    %20 = arith.truncf %19 : vector<2x8x64xf32> to vector<2x8x64xbf16>
    %21 = vector.extract_strided_slice %14 {offsets = [0, 0], sizes = [16, 64], strides = [1, 1]} : vector<16x128xf32> to vector<16x64xf32>
    %22 = vector.shape_cast %21 : vector<16x64xf32> to vector<2x8x64xf32>
    %23 = arith.truncf %22 : vector<2x8x64xf32> to vector<2x8x64xbf16>
    "tpu.trace_start"() <{level = 10 : i32, message = "bqd,bkd->bqk"}> : () -> ()
    %cst_8 = arith.constant dense<0.000000e+00> : vector<2x8x8xf32>
    %24 = tpu.matmul %17, %20, %cst_8 {dimension_numbers = #tpu.dot_dimension_numbers<[2], [2], [1], [1], [0, 0, 0, 1, 1, 1], [0], [0]>} : vector<2x8x64xbf16>, vector<2x8x64xbf16>, vector<2x8x8xf32> -> vector<2x8x8xf32>
    "tpu.trace_stop"() : () -> ()
    %cst_9 = arith.constant 1.250000e-01 : f32
    %25 = vector.broadcast %cst_9 : f32 to vector<2x8x8xf32>
    %26 = arith.mulf %24, %25 : vector<2x8x8xf32>
    %cst_10 = arith.constant dense<0xFF800000> : vector<2x8xf32>
    %27 = vector.multi_reduction <maximumf>, %26, %cst_10 [2] : vector<2x8x8xf32> to vector<2x8xf32>
    %28 = vector.shape_cast %27 : vector<2x8xf32> to vector<2x8x1xf32>
    %29 = vector.broadcast %28 : vector<2x8x1xf32> to vector<2x8x8xf32>
    %30 = arith.subf %26, %29 : vector<2x8x8xf32>
    %31 = math.exp %30 : vector<2x8x8xf32>
    %cst_11 = arith.constant dense<0.000000e+00> : vector<2x8xf32>
    %32 = vector.multi_reduction <add>, %31, %cst_11 [2] : vector<2x8x8xf32> to vector<2x8xf32>
    %33 = vector.shape_cast %32 : vector<2x8xf32> to vector<2x8x1xf32>
    %34 = tpu.reciprocal %33 {approx = true} : vector<2x8x1xf32> -> vector<2x8x1xf32>
    %35 = vector.broadcast %34 : vector<2x8x1xf32> to vector<2x8x8xf32>
    %36 = arith.mulf %31, %35 : vector<2x8x8xf32>
    %37 = arith.truncf %36 : vector<2x8x8xf32> to vector<2x8x8xbf16>
    "tpu.trace_start"() <{level = 10 : i32, message = "bqk,bkd->bqd"}> : () -> ()
    %cst_12 = arith.constant dense<0.000000e+00> : vector<2x8x64xf32>
    %38 = tpu.matmul %37, %23, %cst_12 {dimension_numbers = #tpu.dot_dimension_numbers<[2], [1], [1], [2], [0, 0, 0, 1, 1, 2], [0], [0]>} : vector<2x8x8xbf16>, vector<2x8x64xbf16>, vector<2x8x64xf32> -> vector<2x8x64xf32>
    "tpu.trace_stop"() : () -> ()
    %39 = vector.shape_cast %38 : vector<2x8x64xf32> to vector<16x64xf32>
    %c0_13 = arith.constant 0 : index
    %c0_14 = arith.constant 0 : index
    %40 = vector.load %arg17[%c0_13, %c0_14] : memref<16x128xf32, #tpu.memory_space<vmem>>, vector<16x64xf32>
    tpu.vector_store %arg17[%c0_13, %c0_14], %39 {strides = array<i32>} : memref<16x128xf32, #tpu.memory_space<vmem>>, vector<16x64xf32>,
    %41 = vector.extract_strided_slice %12 {offsets = [0, 64], sizes = [16, 64], strides = [1, 1]} : vector<16x128xf32> to vector<16x64xf32>
    %42 = vector.shape_cast %41 : vector<16x64xf32> to vector<2x8x64xf32>
    %43 = arith.truncf %42 : vector<2x8x64xf32> to vector<2x8x64xbf16>
    %44 = vector.extract_strided_slice %13 {offsets = [0, 64], sizes = [16, 64], strides = [1, 1]} : vector<16x128xf32> to vector<16x64xf32>
    %45 = vector.shape_cast %44 : vector<16x64xf32> to vector<2x8x64xf32>
    %46 = arith.truncf %45 : vector<2x8x64xf32> to vector<2x8x64xbf16>
    %47 = vector.extract_strided_slice %14 {offsets = [0, 64], sizes = [16, 64], strides = [1, 1]} : vector<16x128xf32> to vector<16x64xf32>
    %48 = vector.shape_cast %47 : vector<16x64xf32> to vector<2x8x64xf32>
    %49 = arith.truncf %48 : vector<2x8x64xf32> to vector<2x8x64xbf16>
    "tpu.trace_start"() <{level = 10 : i32, message = "bqd,bkd->bqk"}> : () -> ()
    %cst_15 = arith.constant dense<0.000000e+00> : vector<2x8x8xf32>
    %50 = tpu.matmul %43, %46, %cst_15 {dimension_numbers = #tpu.dot_dimension_numbers<[2], [2], [1], [1], [0, 0, 0, 1, 1, 1], [0], [0]>} : vector<2x8x64xbf16>, vector<2x8x64xbf16>, vector<2x8x8xf32> -> vector<2x8x8xf32>
    "tpu.trace_stop"() : () -> ()
    %cst_16 = arith.constant 1.250000e-01 : f32
    %51 = vector.broadcast %cst_16 : f32 to vector<2x8x8xf32>
    %52 = arith.mulf %50, %51 : vector<2x8x8xf32>
    %cst_17 = arith.constant dense<0xFF800000> : vector<2x8xf32>
    %53 = vector.multi_reduction <maximumf>, %52, %cst_17 [2] : vector<2x8x8xf32> to vector<2x8xf32>
    %54 = vector.shape_cast %53 : vector<2x8xf32> to vector<2x8x1xf32>
    %55 = vector.broadcast %54 : vector<2x8x1xf32> to vector<2x8x8xf32>
    %56 = arith.subf %52, %55 : vector<2x8x8xf32>
    %57 = math.exp %56 : vector<2x8x8xf32>
    %cst_18 = arith.constant dense<0.000000e+00> : vector<2x8xf32>
    %58 = vector.multi_reduction <add>, %57, %cst_18 [2] : vector<2x8x8xf32> to vector<2x8xf32>
    %59 = vector.shape_cast %58 : vector<2x8xf32> to vector<2x8x1xf32>
    %60 = tpu.reciprocal %59 {approx = true} : vector<2x8x1xf32> -> vector<2x8x1xf32>
    %61 = vector.broadcast %60 : vector<2x8x1xf32> to vector<2x8x8xf32>
    %62 = arith.mulf %57, %61 : vector<2x8x8xf32>
    %63 = arith.truncf %62 : vector<2x8x8xf32> to vector<2x8x8xbf16>
    "tpu.trace_start"() <{level = 10 : i32, message = "bqk,bkd->bqd"}> : () -> ()
    %cst_19 = arith.constant dense<0.000000e+00> : vector<2x8x64xf32>
    %64 = tpu.matmul %63, %49, %cst_19 {dimension_numbers = #tpu.dot_dimension_numbers<[2], [1], [1], [2], [0, 0, 0, 1, 1, 2], [0], [0]>} : vector<2x8x8xbf16>, vector<2x8x64xbf16>, vector<2x8x64xf32> -> vector<2x8x64xf32>
    "tpu.trace_stop"() : () -> ()
    %65 = vector.shape_cast %64 : vector<2x8x64xf32> to vector<16x64xf32>
    %c0_20 = arith.constant 0 : index
    %c64 = arith.constant 64 : index
    %66 = vector.load %arg17[%c0_20, %c64] : memref<16x128xf32, #tpu.memory_space<vmem>>, vector<16x64xf32>
    tpu.vector_store %arg17[%c0_20, %c64], %65 {strides = array<i32>} : memref<16x128xf32, #tpu.memory_space<vmem>>, vector<16x64xf32>,
    %c0_21 = arith.constant 0 : index
    %c0_22 = arith.constant 0 : index
    %67 = vector.load %arg17[%c0_21, %c0_22] : memref<16x128xf32, #tpu.memory_space<vmem>>, vector<16x128xf32>
    %68 = arith.truncf %67 : vector<16x128xf32> to vector<16x128xbf16>
    %c0_23 = arith.constant 0 : index
    %c0_24 = arith.constant 0 : index
    %c0_25 = arith.constant 0 : index
    %69 = vector.load %arg6[%c0_23, %c0_24, %c0_25] : memref<1x128x128xbf16, #tpu.memory_space<vmem>>, vector<1x128x128xbf16>
    %70 = vector.shape_cast %69 : vector<1x128x128xbf16> to vector<128x128xbf16>
    %cst_26 = arith.constant dense<0.000000e+00> : vector<16x128xf32>
    %71 = tpu.matmul %68, %70, %cst_26 {dimension_numbers = #tpu.dot_dimension_numbers<[1], [0], [0], [1], [0, 0, 1, 1], [], []>} : vector<16x128xbf16>, vector<128x128xbf16>, vector<16x128xf32> -> vector<16x128xf32>
    %c0_27 = arith.constant 0 : index
    %c0_28 = arith.constant 0 : index
    %c0_29 = arith.constant 0 : index
    %72 = vector.load %arg7[%c0_27, %c0_28, %c0_29] : memref<1x1x128xf32, #tpu.memory_space<vmem>>, vector<1x1x128xf32>
    %73 = vector.shape_cast %72 : vector<1x1x128xf32> to vector<1x128xf32>
    %74 = vector.broadcast %73 : vector<1x128xf32> to vector<16x128xf32>
    %75 = arith.addf %71, %74 : vector<16x128xf32>
    %76 = arith.addf %75, %3 : vector<16x128xf32>
    %c0_30 = arith.constant 0 : index
    %c0_31 = arith.constant 0 : index
    %c0_32 = arith.constant 0 : index
    %77 = vector.load %arg8[%c0_30, %c0_31, %c0_32] : memref<1x1x128xf32, #tpu.memory_space<vmem>>, vector<1x1x128xf32>
    %78 = vector.shape_cast %77 : vector<1x1x128xf32> to vector<1x128xf32>
    %c0_33 = arith.constant 0 : index
    %c0_34 = arith.constant 0 : index
    %c0_35 = arith.constant 0 : index
    %79 = vector.load %arg9[%c0_33, %c0_34, %c0_35] : memref<1x1x128xf32, #tpu.memory_space<vmem>>, vector<1x1x128xf32>
    %80 = vector.shape_cast %79 : vector<1x1x128xf32> to vector<1x128xf32>
    %cst_36 = arith.constant dense<0.000000e+00> : vector<16xf32>
    %81 = vector.multi_reduction <add>, %76, %cst_36 [1] : vector<16x128xf32> to vector<16xf32>
    %82 = vector.shape_cast %81 : vector<16xf32> to vector<16x1xf32>
    %cst_37 = arith.constant 1.280000e+02 : f32
    %83 = vector.broadcast %cst_37 : f32 to vector<16x1xf32>
    %84 = arith.divf %82, %83 : vector<16x1xf32>
    %85 = vector.broadcast %84 : vector<16x1xf32> to vector<16x128xf32>
    %86 = arith.subf %76, %85 : vector<16x128xf32>
    %87 = arith.mulf %86, %86 : vector<16x128xf32>
    %cst_38 = arith.constant dense<0.000000e+00> : vector<16xf32>
    %88 = vector.multi_reduction <add>, %87, %cst_38 [1] : vector<16x128xf32> to vector<16xf32>
    %89 = vector.shape_cast %88 : vector<16xf32> to vector<16x1xf32>
    %cst_39 = arith.constant 1.280000e+02 : f32
    %90 = vector.broadcast %cst_39 : f32 to vector<16x1xf32>
    %91 = arith.divf %89, %90 : vector<16x1xf32>
    %92 = vector.broadcast %84 : vector<16x1xf32> to vector<16x128xf32>
    %93 = arith.subf %76, %92 : vector<16x128xf32>
    %cst_40 = arith.constant 9.99999996E-13 : f32
    %94 = vector.broadcast %cst_40 : f32 to vector<16x1xf32>
    %95 = arith.addf %91, %94 : vector<16x1xf32>
    %96 = math.rsqrt %95 : vector<16x1xf32>
    %97 = vector.broadcast %96 : vector<16x1xf32> to vector<16x128xf32>
    %98 = arith.mulf %93, %97 : vector<16x128xf32>
    %99 = vector.broadcast %78 : vector<1x128xf32> to vector<16x128xf32>
    %100 = arith.mulf %98, %99 : vector<16x128xf32>
    %101 = vector.broadcast %80 : vector<1x128xf32> to vector<16x128xf32>
    %102 = arith.addf %100, %101 : vector<16x128xf32>
    %103 = arith.truncf %102 : vector<16x128xf32> to vector<16x128xbf16>
    %c0_41 = arith.constant 0 : index
    %c0_42 = arith.constant 0 : index
    %c0_43 = arith.constant 0 : index
    %104 = vector.load %arg10[%c0_41, %c0_42, %c0_43] : memref<1x128x256xbf16, #tpu.memory_space<vmem>>, vector<1x128x256xbf16>
    %105 = vector.shape_cast %104 : vector<1x128x256xbf16> to vector<128x256xbf16>
    %cst_44 = arith.constant dense<0.000000e+00> : vector<16x256xf32>
    %106 = tpu.matmul %103, %105, %cst_44 {dimension_numbers = #tpu.dot_dimension_numbers<[1], [0], [0], [1], [0, 0, 1, 1], [], []>} : vector<16x128xbf16>, vector<128x256xbf16>, vector<16x256xf32> -> vector<16x256xf32>
    %c0_45 = arith.constant 0 : index
    %c0_46 = arith.constant 0 : index
    %c0_47 = arith.constant 0 : index
    %107 = vector.load %arg11[%c0_45, %c0_46, %c0_47] : memref<1x1x256xf32, #tpu.memory_space<vmem>>, vector<1x1x256xf32>
    %108 = vector.shape_cast %107 : vector<1x1x256xf32> to vector<1x256xf32>
    %109 = vector.broadcast %108 : vector<1x256xf32> to vector<16x256xf32>
    %110 = arith.addf %106, %109 : vector<16x256xf32>
    %cst_48 = arith.constant 5.000000e-01 : f32
    %111 = vector.broadcast %cst_48 : f32 to vector<16x256xf32>
    %112 = arith.mulf %111, %110 : vector<16x256xf32>
    %cst_49 = arith.constant 4.471500e-02 : f32
    %113 = vector.broadcast %cst_49 : f32 to vector<16x256xf32>
    %114 = arith.mulf %113, %110 : vector<16x256xf32>
    %115 = arith.mulf %114, %110 : vector<16x256xf32>
    %116 = arith.mulf %115, %110 : vector<16x256xf32>
    %117 = arith.addf %110, %116 : vector<16x256xf32>
    %cst_50 = arith.constant 0.797884583 : f32
    %118 = vector.broadcast %cst_50 : f32 to vector<16x256xf32>
    %119 = arith.mulf %118, %117 : vector<16x256xf32>
    %120 = math.tanh %119 : vector<16x256xf32>
    %cst_51 = arith.constant 1.000000e+00 : f32
    %121 = vector.broadcast %cst_51 : f32 to vector<16x256xf32>
    %122 = arith.addf %121, %120 : vector<16x256xf32>
    %123 = arith.mulf %112, %122 : vector<16x256xf32>
    %124 = arith.truncf %123 : vector<16x256xf32> to vector<16x256xbf16>
    %c0_52 = arith.constant 0 : index
    %c0_53 = arith.constant 0 : index
    %c0_54 = arith.constant 0 : index
    %125 = vector.load %arg12[%c0_52, %c0_53, %c0_54] : memref<1x256x128xbf16, #tpu.memory_space<vmem>>, vector<1x256x128xbf16>
    %126 = vector.shape_cast %125 : vector<1x256x128xbf16> to vector<256x128xbf16>
    %cst_55 = arith.constant dense<0.000000e+00> : vector<16x128xf32>
    %127 = tpu.matmul %124, %126, %cst_55 {dimension_numbers = #tpu.dot_dimension_numbers<[1], [0], [0], [1], [0, 0, 1, 1], [], []>} : vector<16x256xbf16>, vector<256x128xbf16>, vector<16x128xf32> -> vector<16x128xf32>
    %c0_56 = arith.constant 0 : index
    %c0_57 = arith.constant 0 : index
    %c0_58 = arith.constant 0 : index
    %128 = vector.load %arg13[%c0_56, %c0_57, %c0_58] : memref<1x1x128xf32, #tpu.memory_space<vmem>>, vector<1x1x128xf32>
    %129 = vector.shape_cast %128 : vector<1x1x128xf32> to vector<1x128xf32>
    %130 = vector.broadcast %129 : vector<1x128xf32> to vector<16x128xf32>
    %131 = arith.addf %127, %130 : vector<16x128xf32>
    %132 = arith.addf %131, %102 : vector<16x128xf32>
    %c0_59 = arith.constant 0 : index
    %c0_60 = arith.constant 0 : index
    %c0_61 = arith.constant 0 : index
    %133 = vector.load %arg14[%c0_59, %c0_60, %c0_61] : memref<1x1x128xf32, #tpu.memory_space<vmem>>, vector<1x1x128xf32>
    %134 = vector.shape_cast %133 : vector<1x1x128xf32> to vector<1x128xf32>
    %c0_62 = arith.constant 0 : index
    %c0_63 = arith.constant 0 : index
    %c0_64 = arith.constant 0 : index
    %135 = vector.load %arg15[%c0_62, %c0_63, %c0_64] : memref<1x1x128xf32, #tpu.memory_space<vmem>>, vector<1x1x128xf32>
    %136 = vector.shape_cast %135 : vector<1x1x128xf32> to vector<1x128xf32>
    %cst_65 = arith.constant dense<0.000000e+00> : vector<16xf32>
    %137 = vector.multi_reduction <add>, %132, %cst_65 [1] : vector<16x128xf32> to vector<16xf32>
    %138 = vector.shape_cast %137 : vector<16xf32> to vector<16x1xf32>
    %cst_66 = arith.constant 1.280000e+02 : f32
    %139 = vector.broadcast %cst_66 : f32 to vector<16x1xf32>
    %140 = arith.divf %138, %139 : vector<16x1xf32>
    %141 = vector.broadcast %140 : vector<16x1xf32> to vector<16x128xf32>
    %142 = arith.subf %132, %141 : vector<16x128xf32>
    %143 = arith.mulf %142, %142 : vector<16x128xf32>
    %cst_67 = arith.constant dense<0.000000e+00> : vector<16xf32>
    %144 = vector.multi_reduction <add>, %143, %cst_67 [1] : vector<16x128xf32> to vector<16xf32>
    %145 = vector.shape_cast %144 : vector<16xf32> to vector<16x1xf32>
    %cst_68 = arith.constant 1.280000e+02 : f32
    %146 = vector.broadcast %cst_68 : f32 to vector<16x1xf32>
    %147 = arith.divf %145, %146 : vector<16x1xf32>
    %148 = vector.broadcast %140 : vector<16x1xf32> to vector<16x128xf32>
    %149 = arith.subf %132, %148 : vector<16x128xf32>
    %cst_69 = arith.constant 9.99999996E-13 : f32
    %150 = vector.broadcast %cst_69 : f32 to vector<16x1xf32>
    %151 = arith.addf %147, %150 : vector<16x1xf32>
    %152 = math.rsqrt %151 : vector<16x1xf32>
    %153 = vector.broadcast %152 : vector<16x1xf32> to vector<16x128xf32>
    %154 = arith.mulf %149, %153 : vector<16x128xf32>
    %155 = vector.broadcast %134 : vector<1x128xf32> to vector<16x128xf32>
    %156 = arith.mulf %154, %155 : vector<16x128xf32>
    %157 = vector.broadcast %136 : vector<1x128xf32> to vector<16x128xf32>
    %158 = arith.addf %156, %157 : vector<16x128xf32>
    %c0_70 = arith.constant 0 : index
    %c0_71 = arith.constant 0 : index
    %159 = vector.load %arg16[%c0_70, %c0_71] : memref<16x128xf32, #tpu.memory_space<vmem>>, vector<16x128xf32>
    tpu.vector_store %arg16[%c0_70, %c0_71], %158 {strides = array<i32>} : memref<16x128xf32, #tpu.memory_space<vmem>>, vector<16x128xf32>,
    return
  }
  func.func @transform_0(%arg0: i32) -> (i32, i32) {
    %c0_i32 = arith.constant 0 : i32
    %c0_i32_0 = arith.constant 0 : i32
    %c0_i32_1 = arith.constant 0 : i32
    return %c0_i32, %c0_i32_0 : i32, i32
  }
  func.func @transform_1(%arg0: i32) -> (i32, i32) {
    %c0_i32 = arith.constant 0 : i32
    %c0_i32_0 = arith.constant 0 : i32
    %c0_i32_1 = arith.constant 0 : i32
    return %c0_i32, %c0_i32_0 : i32, i32
  }
  func.func @transform_2(%arg0: i32) -> (i32, i32) {
    %c0_i32 = arith.constant 0 : i32
    %c0_i32_0 = arith.constant 0 : i32
    %c0_i32_1 = arith.constant 0 : i32
    return %c0_i32, %c0_i32_0 : i32, i32
  }
  func.func @transform_3(%arg0: i32) -> (i32, i32, i32) {
    %c0_i32 = arith.constant 0 : i32
    %c0_i32_0 = arith.constant 0 : i32
    %c0_i32_1 = arith.constant 0 : i32
    return %arg0, %c0_i32, %c0_i32_0 : i32, i32, i32
  }
  func.func @transform_4(%arg0: i32) -> (i32, i32, i32) {
    %c0_i32 = arith.constant 0 : i32
    %c0_i32_0 = arith.constant 0 : i32
    %c0_i32_1 = arith.constant 0 : i32
    return %arg0, %c0_i32, %c0_i32_0 : i32, i32, i32
  }
  func.func @transform_5(%arg0: i32) -> (i32, i32, i32) {
    %c0_i32 = arith.constant 0 : i32
    %c0_i32_0 = arith.constant 0 : i32
    %c0_i32_1 = arith.constant 0 : i32
    return %arg0, %c0_i32, %c0_i32_0 : i32, i32, i32
  }
  func.func @transform_6(%arg0: i32) -> (i32, i32, i32) {
    %c0_i32 = arith.constant 0 : i32
    %c0_i32_0 = arith.constant 0 : i32
    %c0_i32_1 = arith.constant 0 : i32
    return %arg0, %c0_i32, %c0_i32_0 : i32, i32, i32
  }
  func.func @transform_7(%arg0: i32) -> (i32, i32, i32) {
    %c0_i32 = arith.constant 0 : i32
    %c0_i32_0 = arith.constant 0 : i32
    %c0_i32_1 = arith.constant 0 : i32
    return %arg0, %c0_i32, %c0_i32_0 : i32, i32, i32
  }
  func.func @transform_8(%arg0: i32) -> (i32, i32, i32) {
    %c0_i32 = arith.constant 0 : i32
    %c0_i32_0 = arith.constant 0 : i32
    %c0_i32_1 = arith.constant 0 : i32
    return %arg0, %c0_i32, %c0_i32_0 : i32, i32, i32
  }
  func.func @transform_9(%arg0: i32) -> (i32, i32, i32) {
    %c0_i32 = arith.constant 0 : i32
    %c0_i32_0 = arith.constant 0 : i32
    %c0_i32_1 = arith.constant 0 : i32
    return %arg0, %c0_i32, %c0_i32_0 : i32, i32, i32
  }
  func.func @transform_10(%arg0: i32) -> (i32, i32, i32) {
    %c0_i32 = arith.constant 0 : i32
    %c0_i32_0 = arith.constant 0 : i32
    %c0_i32_1 = arith.constant 0 : i32
    return %arg0, %c0_i32, %c0_i32_0 : i32, i32, i32
  }
  func.func @transform_11(%arg0: i32) -> (i32, i32, i32) {
    %c0_i32 = arith.constant 0 : i32
    %c0_i32_0 = arith.constant 0 : i32
    %c0_i32_1 = arith.constant 0 : i32
    return %arg0, %c0_i32, %c0_i32_0 : i32, i32, i32
  }
  func.func @transform_12(%arg0: i32) -> (i32, i32, i32) {
    %c0_i32 = arith.constant 0 : i32
    %c0_i32_0 = arith.constant 0 : i32
    %c0_i32_1 = arith.constant 0 : i32
    return %arg0, %c0_i32, %c0_i32_0 : i32, i32, i32
  }
  func.func @transform_13(%arg0: i32) -> (i32, i32, i32) {
    %c0_i32 = arith.constant 0 : i32
    %c0_i32_0 = arith.constant 0 : i32
    %c0_i32_1 = arith.constant 0 : i32
    return %arg0, %c0_i32, %c0_i32_0 : i32, i32, i32
  }
  func.func @transform_14(%arg0: i32) -> (i32, i32, i32) {
    %c0_i32 = arith.constant 0 : i32
    %c0_i32_0 = arith.constant 0 : i32
    %c0_i32_1 = arith.constant 0 : i32
    return %arg0, %c0_i32, %c0_i32_0 : i32, i32, i32
  }
  func.func @transform_15(%arg0: i32) -> (i32, i32) {
    %c0_i32 = arith.constant 0 : i32
    %c0_i32_0 = arith.constant 0 : i32
    %c0_i32_1 = arith.constant 0 : i32
    return %c0_i32, %c0_i32_0 : i32, i32
  }
}

module attributes {stable_mosaic.version = 11 : i64} {
  func.func @_mlm_transform_kernel(%arg0: i32, %arg1: memref<16x128xf32, #tpu.memory_space<vmem>>, %arg2: memref<128x128xbf16, #tpu.memory_space<vmem>>, %arg3: memref<1x128xf32, #tpu.memory_space<vmem>>, %arg4: memref<1x128xf32, #tpu.memory_space<vmem>>, %arg5: memref<1x128xf32, #tpu.memory_space<vmem>>, %arg6: memref<16x128xbf16, #tpu.memory_space<vmem>>) attributes {dimension_semantics = [#tpu.dimension_semantics<arbitrary>], iteration_bounds = array<i64: 1>, scalar_prefetch = 0 : i64, scratch_operands = 0 : i64, tpu.core_type = #tpu.core_type<tc>, window_params = [{pipeline_mode = #tpu.pipeline_mode<synchronous>, transform_indices = @transform_0, window_bounds = array<i64: 16, 128>}, {pipeline_mode = #tpu.pipeline_mode<synchronous>, transform_indices = @transform_1, window_bounds = array<i64: 128, 128>}, {pipeline_mode = #tpu.pipeline_mode<synchronous>, transform_indices = @transform_2, window_bounds = array<i64: 1, 128>}, {pipeline_mode = #tpu.pipeline_mode<synchronous>, transform_indices = @transform_3, window_bounds = array<i64: 1, 128>}, {pipeline_mode = #tpu.pipeline_mode<synchronous>, transform_indices = @transform_4, window_bounds = array<i64: 1, 128>}, {pipeline_mode = #tpu.pipeline_mode<synchronous>, transform_indices = @transform_5, window_bounds = array<i64: 16, 128>}]} {
    %c0 = arith.constant 0 : index
    %c0_0 = arith.constant 0 : index
    %0 = vector.load %arg1[%c0, %c0_0] : memref<16x128xf32, #tpu.memory_space<vmem>>, vector<16x128xf32>
    %1 = arith.truncf %0 : vector<16x128xf32> to vector<16x128xbf16>
    %c0_1 = arith.constant 0 : index
    %c0_2 = arith.constant 0 : index
    %2 = vector.load %arg2[%c0_1, %c0_2] : memref<128x128xbf16, #tpu.memory_space<vmem>>, vector<128x128xbf16>
    %cst = arith.constant dense<0.000000e+00> : vector<16x128xf32>
    %3 = tpu.matmul %1, %2, %cst {dimension_numbers = #tpu.dot_dimension_numbers<[1], [0], [0], [1], [0, 0, 1, 1], [], []>} : vector<16x128xbf16>, vector<128x128xbf16>, vector<16x128xf32> -> vector<16x128xf32>
    %c0_3 = arith.constant 0 : index
    %c0_4 = arith.constant 0 : index
    %4 = vector.load %arg3[%c0_3, %c0_4] : memref<1x128xf32, #tpu.memory_space<vmem>>, vector<1x128xf32>
    %5 = vector.broadcast %4 : vector<1x128xf32> to vector<16x128xf32>
    %6 = arith.addf %3, %5 : vector<16x128xf32>
    %cst_5 = arith.constant 5.000000e-01 : f32
    %7 = vector.broadcast %cst_5 : f32 to vector<16x128xf32>
    %8 = arith.mulf %7, %6 : vector<16x128xf32>
    %cst_6 = arith.constant 4.471500e-02 : f32
    %9 = vector.broadcast %cst_6 : f32 to vector<16x128xf32>
    %10 = arith.mulf %9, %6 : vector<16x128xf32>
    %11 = arith.mulf %10, %6 : vector<16x128xf32>
    %12 = arith.mulf %11, %6 : vector<16x128xf32>
    %13 = arith.addf %6, %12 : vector<16x128xf32>
    %cst_7 = arith.constant 0.797884583 : f32
    %14 = vector.broadcast %cst_7 : f32 to vector<16x128xf32>
    %15 = arith.mulf %14, %13 : vector<16x128xf32>
    %16 = math.tanh %15 : vector<16x128xf32>
    %cst_8 = arith.constant 1.000000e+00 : f32
    %17 = vector.broadcast %cst_8 : f32 to vector<16x128xf32>
    %18 = arith.addf %17, %16 : vector<16x128xf32>
    %19 = arith.mulf %8, %18 : vector<16x128xf32>
    %c0_9 = arith.constant 0 : index
    %c0_10 = arith.constant 0 : index
    %20 = vector.load %arg4[%c0_9, %c0_10] : memref<1x128xf32, #tpu.memory_space<vmem>>, vector<1x128xf32>
    %c0_11 = arith.constant 0 : index
    %c0_12 = arith.constant 0 : index
    %21 = vector.load %arg5[%c0_11, %c0_12] : memref<1x128xf32, #tpu.memory_space<vmem>>, vector<1x128xf32>
    %cst_13 = arith.constant dense<0.000000e+00> : vector<16xf32>
    %22 = vector.multi_reduction <add>, %19, %cst_13 [1] : vector<16x128xf32> to vector<16xf32>
    %23 = vector.shape_cast %22 : vector<16xf32> to vector<16x1xf32>
    %cst_14 = arith.constant 1.280000e+02 : f32
    %24 = vector.broadcast %cst_14 : f32 to vector<16x1xf32>
    %25 = arith.divf %23, %24 : vector<16x1xf32>
    %26 = vector.broadcast %25 : vector<16x1xf32> to vector<16x128xf32>
    %27 = arith.subf %19, %26 : vector<16x128xf32>
    %28 = arith.mulf %27, %27 : vector<16x128xf32>
    %cst_15 = arith.constant dense<0.000000e+00> : vector<16xf32>
    %29 = vector.multi_reduction <add>, %28, %cst_15 [1] : vector<16x128xf32> to vector<16xf32>
    %30 = vector.shape_cast %29 : vector<16xf32> to vector<16x1xf32>
    %cst_16 = arith.constant 1.280000e+02 : f32
    %31 = vector.broadcast %cst_16 : f32 to vector<16x1xf32>
    %32 = arith.divf %30, %31 : vector<16x1xf32>
    %33 = vector.broadcast %25 : vector<16x1xf32> to vector<16x128xf32>
    %34 = arith.subf %19, %33 : vector<16x128xf32>
    %cst_17 = arith.constant 9.99999996E-13 : f32
    %35 = vector.broadcast %cst_17 : f32 to vector<16x1xf32>
    %36 = arith.addf %32, %35 : vector<16x1xf32>
    %37 = math.rsqrt %36 : vector<16x1xf32>
    %38 = vector.broadcast %37 : vector<16x1xf32> to vector<16x128xf32>
    %39 = arith.mulf %34, %38 : vector<16x128xf32>
    %40 = vector.broadcast %20 : vector<1x128xf32> to vector<16x128xf32>
    %41 = arith.mulf %39, %40 : vector<16x128xf32>
    %42 = vector.broadcast %21 : vector<1x128xf32> to vector<16x128xf32>
    %43 = arith.addf %41, %42 : vector<16x128xf32>
    %44 = arith.truncf %43 : vector<16x128xf32> to vector<16x128xbf16>
    %c0_18 = arith.constant 0 : index
    %c0_19 = arith.constant 0 : index
    %45 = vector.load %arg6[%c0_18, %c0_19] : memref<16x128xbf16, #tpu.memory_space<vmem>>, vector<16x128xbf16>
    tpu.vector_store %arg6[%c0_18, %c0_19], %44 {strides = array<i32>} : memref<16x128xbf16, #tpu.memory_space<vmem>>, vector<16x128xbf16>,
    return
  }
  func.func @transform_0(%arg0: i32) -> (i32, i32) {
    %c0_i32 = arith.constant 0 : i32
    %c0_i32_0 = arith.constant 0 : i32
    %c0_i32_1 = arith.constant 0 : i32
    return %c0_i32, %c0_i32_0 : i32, i32
  }
  func.func @transform_1(%arg0: i32) -> (i32, i32) {
    %c0_i32 = arith.constant 0 : i32
    %c0_i32_0 = arith.constant 0 : i32
    %c0_i32_1 = arith.constant 0 : i32
    return %c0_i32, %c0_i32_0 : i32, i32
  }
  func.func @transform_2(%arg0: i32) -> (i32, i32) {
    %c0_i32 = arith.constant 0 : i32
    %c0_i32_0 = arith.constant 0 : i32
    %c0_i32_1 = arith.constant 0 : i32
    return %c0_i32, %c0_i32_0 : i32, i32
  }
  func.func @transform_3(%arg0: i32) -> (i32, i32) {
    %c0_i32 = arith.constant 0 : i32
    %c0_i32_0 = arith.constant 0 : i32
    %c0_i32_1 = arith.constant 0 : i32
    return %c0_i32, %c0_i32_0 : i32, i32
  }
  func.func @transform_4(%arg0: i32) -> (i32, i32) {
    %c0_i32 = arith.constant 0 : i32
    %c0_i32_0 = arith.constant 0 : i32
    %c0_i32_1 = arith.constant 0 : i32
    return %c0_i32, %c0_i32_0 : i32, i32
  }
  func.func @transform_5(%arg0: i32) -> (i32, i32) {
    %c0_i32 = arith.constant 0 : i32
    %c0_i32_0 = arith.constant 0 : i32
    %c0_i32_1 = arith.constant 0 : i32
    return %c0_i32, %c0_i32_0 : i32, i32
  }
}

module attributes {stable_mosaic.version = 11 : i64} {
  func.func @_mlm_project_kernel(%arg0: i32, %arg1: memref<16x128xbf16, #tpu.memory_space<vmem>>, %arg2: memref<128x128xbf16, #tpu.memory_space<vmem>>, %arg3: memref<1x128xf32, #tpu.memory_space<vmem>>, %arg4: memref<16x128xf32, #tpu.memory_space<vmem>>) attributes {dimension_semantics = [#tpu.dimension_semantics<parallel>], iteration_bounds = array<i64: 2>, scalar_prefetch = 0 : i64, scratch_operands = 0 : i64, tpu.core_type = #tpu.core_type<tc>, window_params = [{pipeline_mode = #tpu.pipeline_mode<synchronous>, transform_indices = @transform_0, window_bounds = array<i64: 16, 128>}, {transform_indices = @transform_1, window_bounds = array<i64: 128, 128>}, {transform_indices = @transform_2, window_bounds = array<i64: 1, 128>}, {transform_indices = @transform_3, window_bounds = array<i64: 16, 128>}]} {
    %c0 = arith.constant 0 : index
    %c0_0 = arith.constant 0 : index
    %0 = vector.load %arg1[%c0, %c0_0] : memref<16x128xbf16, #tpu.memory_space<vmem>>, vector<16x128xbf16>
    %c0_1 = arith.constant 0 : index
    %c0_2 = arith.constant 0 : index
    %1 = vector.load %arg2[%c0_1, %c0_2] : memref<128x128xbf16, #tpu.memory_space<vmem>>, vector<128x128xbf16>
    %cst = arith.constant dense<0.000000e+00> : vector<16x128xf32>
    %2 = tpu.matmul %0, %1, %cst {dimension_numbers = #tpu.dot_dimension_numbers<[1], [1], [0], [0], [0, 0, 1, 0], [], []>} : vector<16x128xbf16>, vector<128x128xbf16>, vector<16x128xf32> -> vector<16x128xf32>
    %c0_3 = arith.constant 0 : index
    %c0_4 = arith.constant 0 : index
    %3 = vector.load %arg3[%c0_3, %c0_4] : memref<1x128xf32, #tpu.memory_space<vmem>>, vector<1x128xf32>
    %4 = vector.broadcast %3 : vector<1x128xf32> to vector<16x128xf32>
    %5 = arith.addf %2, %4 : vector<16x128xf32>
    %c0_5 = arith.constant 0 : index
    %c0_6 = arith.constant 0 : index
    %6 = vector.load %arg4[%c0_5, %c0_6] : memref<16x128xf32, #tpu.memory_space<vmem>>, vector<16x128xf32>
    tpu.vector_store %arg4[%c0_5, %c0_6], %5 {strides = array<i32>} : memref<16x128xf32, #tpu.memory_space<vmem>>, vector<16x128xf32>,
    return
  }
  func.func @transform_0(%arg0: i32) -> (i32, i32) {
    %c0_i32 = arith.constant 0 : i32
    %c0_i32_0 = arith.constant 0 : i32
    %c0_i32_1 = arith.constant 0 : i32
    return %c0_i32, %c0_i32_0 : i32, i32
  }
  func.func @transform_1(%arg0: i32) -> (i32, i32) {
    %c0_i32 = arith.constant 0 : i32
    %c0_i32_0 = arith.constant 0 : i32
    return %arg0, %c0_i32 : i32, i32
  }
  func.func @transform_2(%arg0: i32) -> (i32, i32) {
    %c0_i32 = arith.constant 0 : i32
    %c0_i32_0 = arith.constant 0 : i32
    return %c0_i32, %arg0 : i32, i32
  }
  func.func @transform_3(%arg0: i32) -> (i32, i32) {
    %c0_i32 = arith.constant 0 : i32
    %c0_i32_0 = arith.constant 0 : i32
    return %c0_i32, %arg0 : i32, i32
  }
}

</mosaic_0001>

<llo_original>
// kernel: my_diffusion_forward.5
$region0: #{my_diffusion_forward.5}
  #allocation0 [shape = 'u32[]', space=smem, size = 0x4, offset = 0x4, fixed_abs, tag = 'smem constant byte address 0x4 - core index']
  #allocation1 [shape = 'u32[144,128]{1,0:T(1,128)}', space=vmem, size = 0x12000, scoped, tag = 'internal scratch']
  %s0 = inlined_call_operand.vmem [shape: f32[16,128], index: 0, kind: input, shape index: {}]
  %s1 = inlined_call_operand.vmem [shape: f32[128,128], index: 1, kind: input, shape index: {}]
  %s2 = inlined_call_operand.vmem [shape: s32[1,16], index: 2, kind: output, shape index: {0}]
  %s3 = inlined_call_operand.hbm [shape: f32[1,1], index: 3, kind: output, shape index: {1}]
  %4 = xla_tuple %s2, %s3
  %s5 = sld [smem:[#allocation0]]
  $region26: #{my_diffusion_forward.5} parent=0
    _
  %s7 = ssub.s32 1, %s5
  %s8 = scalar_select 0, %s7, %s5
  $region1: #{my_diffusion_forward.5} parent=0
    #allocation2 [shape = 'u8[512]{0}', space=vmem, size = 0x400, scoped, tag = 'output window, operand 1, single buffered']
    #allocation3 [shape = 's32[1]{0}', space=sflag, size = 0x4, scoped, tag = 'scoped memory for my_diffusion_forward.5']
    %9 = vsyncpa [#allocation3], 0
    // Predicated region
    $region2: #{my_diffusion_forward.5} parent=1 // pred_check
      _
    $region3: #{my_diffusion_forward.5} parent=1 // pred_check_branch
      %11 = sbr.rel (0) target = $region5
    $region4: #{my_diffusion_forward.5} parent=1 // pred_region
      _
    $region5: #{my_diffusion_forward.5} parent=1 // pred_fallthru
      _
    // Predicated region
    $region6: #{my_diffusion_forward.5} parent=1 // pred_check
      _
    $region7: #{my_diffusion_forward.5} parent=1 // pred_check_branch
      %13 = sbr.rel (0) target = $region9
    $region8: #{my_diffusion_forward.5} parent=1 // pred_region
      _
    $region9: #{my_diffusion_forward.5} parent=1 // pred_fallthru
      _
    %v15 = vld [vmem:[%s0] sm:$0xff]
    %v16 = vld [vmem:[%s0 + $0x8] sm:$0xff]
    %v17 = vld [vmem:[%s1] sm:$0xff]
    %v18 = vld [vmem:[%s1 + $0x8] sm:$0xff]
    %v19 = vld [vmem:[%s1 + $0x10] sm:$0xff]
    %v20 = vld [vmem:[%s1 + $0x18] sm:$0xff]
    %v21 = vld [vmem:[%s1 + $0x20] sm:$0xff]
    %v22 = vld [vmem:[%s1 + $0x28] sm:$0xff]
    %v23 = vld [vmem:[%s1 + $0x30] sm:$0xff]
    %v24 = vld [vmem:[%s1 + $0x38] sm:$0xff]
    %v25 = vld [vmem:[%s1 + $0x40] sm:$0xff]
    %v26 = vld [vmem:[%s1 + $0x48] sm:$0xff]
    %v27 = vld [vmem:[%s1 + $0x50] sm:$0xff]
    %v28 = vld [vmem:[%s1 + $0x58] sm:$0xff]
    %v29 = vld [vmem:[%s1 + $0x60] sm:$0xff]
    %v30 = vld [vmem:[%s1 + $0x68] sm:$0xff]
    %v31 = vld [vmem:[%s1 + $0x70] sm:$0xff]
    %v32 = vld [vmem:[%s1 + $0x78] sm:$0xff]
    %v33 = vpack.c.bf16 %v16, %v15
    %v34 = vpack.c.bf16 %v18, %v17
    %v35 = vpack.c.bf16 %v20, %v19
    %v36 = vpack.c.bf16 %v22, %v21
    %v37 = vpack.c.bf16 %v24, %v23
    %v38 = vpack.c.bf16 %v26, %v25
    %v39 = vpack.c.bf16 %v28, %v27
    %v40 = vpack.c.bf16 %v30, %v29
    %v41 = vpack.c.bf16 %v32, %v31
    %v42 = vmul.f32 %v15, %v15
    %v43 = vmul.f32 %v16, %v16
    %44 = vadd.xlane.f32.xlu0 %v42
    %v45 = vpop.xlane.xlu0 %44
    %46 = vadd.xlane.f32.xlu0 %v43
    %v47 = vpop.xlane.xlu0 %46
    %v48 = vmul.f32 %v17, %v17
    %v49 = vmul.f32 %v18, %v18
    %v50 = vmul.f32 %v19, %v19
    %v51 = vmul.f32 %v20, %v20
    %v52 = vmul.f32 %v21, %v21
    %v53 = vmul.f32 %v22, %v22
    %v54 = vmul.f32 %v23, %v23
    %v55 = vmul.f32 %v24, %v24
    %v56 = vmul.f32 %v25, %v25
    %v57 = vmul.f32 %v26, %v26
    %v58 = vmul.f32 %v27, %v27
    %v59 = vmul.f32 %v28, %v28
    %v60 = vmul.f32 %v29, %v29
    %v61 = vmul.f32 %v30, %v30
    %v62 = vmul.f32 %v31, %v31
    %v63 = vmul.f32 %v32, %v32
    %64 = vadd.xlane.f32.xlu0 %v48
    %v65 = vpop.xlane.xlu0 %64
    %66 = vadd.xlane.f32.xlu0 %v49
    %v67 = vpop.xlane.xlu0 %66
    %68 = vadd.xlane.f32.xlu0 %v50
    %v69 = vpop.xlane.xlu0 %68
    %70 = vadd.xlane.f32.xlu0 %v51
    %v71 = vpop.xlane.xlu0 %70
    %72 = vadd.xlane.f32.xlu0 %v52
    %v73 = vpop.xlane.xlu0 %72
    %74 = vadd.xlane.f32.xlu0 %v53
    %v75 = vpop.xlane.xlu0 %74
    %76 = vadd.xlane.f32.xlu0 %v54
    %v77 = vpop.xlane.xlu0 %76
    %78 = vadd.xlane.f32.xlu0 %v55
    %v79 = vpop.xlane.xlu0 %78
    %80 = vadd.xlane.f32.xlu0 %v56
    %v81 = vpop.xlane.xlu0 %80
    %82 = vadd.xlane.f32.xlu0 %v57
    %v83 = vpop.xlane.xlu0 %82
    %84 = vadd.xlane.f32.xlu0 %v58
    %v85 = vpop.xlane.xlu0 %84
    %86 = vadd.xlane.f32.xlu0 %v59
    %v87 = vpop.xlane.xlu0 %86
    %88 = vadd.xlane.f32.xlu0 %v60
    %v89 = vpop.xlane.xlu0 %88
    %90 = vadd.xlane.f32.xlu0 %v61
    %v91 = vpop.xlane.xlu0 %90
    %92 = vadd.xlane.f32.xlu0 %v62
    %v93 = vpop.xlane.xlu0 %92
    %94 = vadd.xlane.f32.xlu0 %v63
    %v95 = vpop.xlane.xlu0 %94
    %96 = vmatprep.subr.bf16.mxu0 0
    %97 = vmatpush1.bf16.xpose.msra.mxu0 0
    %98 = vmatprep.subr.bf16.mxu0 0
    %99 = vmatpush1.bf16.xpose.msra.mxu0 0
    %100 = vmatprep.subr.bf16.mxu0 0
    %101 = vmatpush1.bf16.xpose.msra.mxu0 0
    %102 = vmatprep.subr.bf16.mxu0 0
    %103 = vmatpush1.bf16.xpose.msra.mxu0 0
    %104 = vmatprep.subr.bf16.mxu0 0
    %105 = vmatpush1.bf16.xpose.msra.mxu0 0
    %106 = vmatprep.subr.bf16.mxu0 0
    %107 = vmatpush1.bf16.xpose.msra.mxu0 0
    %108 = vmatprep.subr.bf16.mxu0 0
    %109 = vmatpush1.bf16.xpose.msra.mxu0 0
    %110 = vmatprep.subr.bf16.mxu0 0
    %111 = vmatpush1.bf16.xpose.msra.mxu0 %v33
    %112 = vmatprep.subr.bf16.mxu0 0
    %113 = vmatpush2.bf16.xpose.msra.mxu0 0
    %114 = vmatprep.subr.bf16.mxu0 0
    %115 = vmatpush2.bf16.xpose.msra.mxu0 0
    %116 = vmatprep.subr.bf16.mxu0 0
    %117 = vmatpush2.bf16.xpose.msra.mxu0 0
    %118 = vmatprep.subr.bf16.mxu0 0
    %119 = vmatpush2.bf16.xpose.msra.mxu0 0
    %120 = vmatprep.subr.bf16.mxu0 0
    %121 = vmatpush2.bf16.xpose.msra.mxu0 0
    %122 = vmatprep.subr.bf16.mxu0 0
    %123 = vmatpush2.bf16.xpose.msra.mxu0 0
    %124 = vmatprep.subr.bf16.mxu0 0
    %125 = vmatpush2.bf16.xpose.msra.mxu0 0
    %126 = vmatprep.subr.bf16.mxu0 0
    %127 = vmatpush2.bf16.xpose.msra.mxu0 0
    %128 = vmatprep.mubr.bf16.mxu0 0
    %129 = vmatmul.mubr.bf16.gmra.mxu0 %v34
    %v130 = vpop.f32.mrf.mxu0
    %v131 = vadd.f32 0.0, %v130
    %v132 = vpop.f32.mrf.mxu0
    %v133 = vpop.f32.mrf.mxu0
    %v134 = vadd.f32 0.0, %v133
    %v135 = vpop.f32.mrf.mxu0
    %136 = vmatprep.mubr.bf16.mxu0 0
    %137 = vmatmul.mubr.bf16.gmra.mxu0 %v35
    %v138 = vpop.f32.mrf.mxu0
    %v139 = vadd.f32 0.0, %v138
    %v140 = vpop.f32.mrf.mxu0
    %v141 = vpop.f32.mrf.mxu0
    %v142 = vadd.f32 0.0, %v141
    %v143 = vpop.f32.mrf.mxu0
    %144 = vmatprep.mubr.bf16.mxu0 0
    %145 = vmatmul.mubr.bf16.gmra.mxu0 %v36
    %v146 = vpop.f32.mrf.mxu0
    %v147 = vadd.f32 0.0, %v146
    %v148 = vpop.f32.mrf.mxu0
    %v149 = vpop.f32.mrf.mxu0
    %v150 = vadd.f32 0.0, %v149
    %v151 = vpop.f32.mrf.mxu0
    %152 = vmatprep.mubr.bf16.mxu0 0
    %153 = vmatmul.mubr.bf16.gmra.mxu0 %v37
    %v154 = vpop.f32.mrf.mxu0
    %v155 = vadd.f32 0.0, %v154
    %v156 = vpop.f32.mrf.mxu0
    %v157 = vpop.f32.mrf.mxu0
    %v158 = vadd.f32 0.0, %v157
    %v159 = vpop.f32.mrf.mxu0
    %160 = vmatprep.mubr.bf16.mxu0 0
    %161 = vmatmul.mubr.bf16.gmra.mxu0 %v38
    %v162 = vpop.f32.mrf.mxu0
    %v163 = vadd.f32 0.0, %v162
    %v164 = vpop.f32.mrf.mxu0
    %v165 = vpop.f32.mrf.mxu0
    %v166 = vadd.f32 0.0, %v165
    %v167 = vpop.f32.mrf.mxu0
    %168 = vmatprep.mubr.bf16.mxu0 0
    %169 = vmatmul.mubr.bf16.gmra.mxu0 %v39
    %v170 = vpop.f32.mrf.mxu0
    %v171 = vadd.f32 0.0, %v170
    %v172 = vpop.f32.mrf.mxu0
    %v173 = vpop.f32.mrf.mxu0
    %v174 = vadd.f32 0.0, %v173
    %v175 = vpop.f32.mrf.mxu0
    %176 = vmatprep.mubr.bf16.mxu0 0
    %177 = vmatmul.mubr.bf16.gmra.mxu0 %v40
    %v178 = vpop.f32.mrf.mxu0
    %v179 = vadd.f32 0.0, %v178
    %v180 = vpop.f32.mrf.mxu0
    %v181 = vpop.f32.mrf.mxu0
    %v182 = vadd.f32 0.0, %v181
    %v183 = vpop.f32.mrf.mxu0
    %184 = vmatprep.mubr.bf16.mxu0 0
    %185 = vmatmul.mubr.bf16.gmra.mxu0 %v41
    %v186 = vpop.f32.mrf.mxu0
    %v187 = vadd.f32 0.0, %v186
    %v188 = vpop.f32.mrf.mxu0
    %v189 = vpop.f32.mrf.mxu0
    %v190 = vadd.f32 0.0, %v189
    %v191 = vpop.f32.mrf.mxu0
    %192 = vdwg.mxu0
    %v193 = vmul.f32 %v131, 2.0
    %v194 = vmul.f32 %v134, 2.0
    %v195 = vmul.f32 %v139, 2.0
    %v196 = vmul.f32 %v142, 2.0
    %v197 = vmul.f32 %v147, 2.0
    %v198 = vmul.f32 %v150, 2.0
    %v199 = vmul.f32 %v155, 2.0
    %v200 = vmul.f32 %v158, 2.0
    %v201 = vmul.f32 %v163, 2.0
    %v202 = vmul.f32 %v166, 2.0
    %v203 = vmul.f32 %v171, 2.0
    %v204 = vmul.f32 %v174, 2.0
    %v205 = vmul.f32 %v179, 2.0
    %v206 = vmul.f32 %v182, 2.0
    %v207 = vmul.f32 %v187, 2.0
    %v208 = vmul.f32 %v190, 2.0
    %v209 = vsub.f32 %v65, %v193
    %v210 = vsub.f32 %v67, %v194
    %v211 = vsub.f32 %v69, %v195
    %v212 = vsub.f32 %v71, %v196
    %v213 = vsub.f32 %v73, %v197
    %v214 = vsub.f32 %v75, %v198
    %v215 = vsub.f32 %v77, %v199
    %v216 = vsub.f32 %v79, %v200
    %v217 = vsub.f32 %v81, %v201
    %v218 = vsub.f32 %v83, %v202
    %v219 = vsub.f32 %v85, %v203
    %v220 = vsub.f32 %v87, %v204
    %v221 = vsub.f32 %v89, %v205
    %v222 = vsub.f32 %v91, %v206
    %v223 = vsub.f32 %v93, %v207
    %v224 = vsub.f32 %v95, %v208
    %vm225 = vcmask 130048
    %v226 = vsel %vm225, %v209, inf
    %v227 = vsel %vm225, %v210, inf
    %v228 = vsel %vm225, %v211, inf
    %v229 = vsel %vm225, %v212, inf
    %v230 = vsel %vm225, %v213, inf
    %v231 = vmin.f32 %v226, %v230
    %v232 = vsel %vm225, %v214, inf
    %v233 = vmin.f32 %v227, %v232
    %v234 = vsel %vm225, %v215, inf
    %v235 = vmin.f32 %v228, %v234
    %v236 = vsel %vm225, %v216, inf
    %v237 = vmin.f32 %v229, %v236
    %v238 = vsel %vm225, %v217, inf
    %v239 = vmin.f32 %v231, %v238
    %v240 = vsel %vm225, %v218, inf
    %v241 = vmin.f32 %v233, %v240
    %v242 = vsel %vm225, %v219, inf
    %v243 = vmin.f32 %v235, %v242
    %v244 = vsel %vm225, %v220, inf
    %v245 = vmin.f32 %v237, %v244
    %v246 = vsel %vm225, %v221, inf
    %v247 = vmin.f32 %v239, %v246
    %v248 = vsel %vm225, %v222, inf
    %v249 = vmin.f32 %v241, %v248
    %v250 = vsel %vm225, %v223, inf
    %v251 = vmin.f32 %v243, %v250
    %v252 = vsel %vm225, %v224, inf
    %v253 = vmin.f32 %v245, %v252
    %v254 = vmin.f32 %v247, %v249
    %v255 = vmin.f32 %v251, %v253
    %v256 = vmin.f32 %v254, %v255
    %v257 = vrot.slane %v256, 4
    %v258 = vmin.f32 %v256, %v257
    %v259 = vrot.slane %v258, 2
    %v260 = vmin.f32 %v258, %v259
    %v261 = vrot.slane %v260, 1
    %v262 = vmin.f32 %v260, %v261
    %v263 = vlaneseq
    %v264 = vshrl.u32 %v263, 7
    %v265 = vadd.s32 %v264, 8
    %v266 = vadd.s32 %v264, 16
    %v267 = vadd.s32 %v264, 24
    %v268 = vadd.s32 %v264, 32
    %v269 = vadd.s32 %v264, 40
    %v270 = vadd.s32 %v264, 48
    %v271 = vadd.s32 %v264, 56
    %v272 = vadd.s32 %v264, 64
    %v273 = vadd.s32 %v264, 72
    %v274 = vadd.s32 %v264, 80
    %v275 = vadd.s32 %v264, 88
    %v276 = vadd.s32 %v264, 96
    %v277 = vadd.s32 %v264, 104
    %v278 = vadd.s32 %v264, 112
    %v279 = vadd.s32 %v264, 120
    %vm280 = vcmp.le.f32.partialorder %v209, %v262
    %vm281 = vcmp.le.f32.partialorder %v210, %v262
    %vm282 = vcmp.le.f32.partialorder %v211, %v262
    %vm283 = vcmp.le.f32.partialorder %v212, %v262
    %vm284 = vcmp.le.f32.partialorder %v213, %v262
    %vm285 = vcmp.le.f32.partialorder %v214, %v262
    %vm286 = vcmp.le.f32.partialorder %v215, %v262
    %vm287 = vcmp.le.f32.partialorder %v216, %v262
    %vm288 = vcmp.le.f32.partialorder %v217, %v262
    %vm289 = vcmp.le.f32.partialorder %v218, %v262
    %vm290 = vcmp.le.f32.partialorder %v219, %v262
    %vm291 = vcmp.le.f32.partialorder %v220, %v262
    %vm292 = vcmp.le.f32.partialorder %v221, %v262
    %vm293 = vcmp.le.f32.partialorder %v222, %v262
    %vm294 = vcmp.le.f32.partialorder %v223, %v262
    %vm295 = vcmp.le.f32.partialorder %v224, %v262
    %v296 = vsel %vm280, %v264, 128
    %v297 = vsel %vm281, %v265, 128
    %v298 = vsel %vm282, %v266, 128
    %v299 = vsel %vm283, %v267, 128
    %v300 = vsel %vm284, %v268, 128
    %v301 = vsel %vm285, %v269, 128
    %v302 = vsel %vm286, %v270, 128
    %v303 = vsel %vm287, %v271, 128
    %v304 = vsel %vm288, %v272, 128
    %v305 = vsel %vm289, %v273, 128
    %v306 = vsel %vm290, %v274, 128
    %v307 = vsel %vm291, %v275, 128
    %v308 = vsel %vm292, %v276, 128
    %v309 = vsel %vm293, %v277, 128
    %v310 = vsel %vm294, %v278, 128
    %v311 = vsel %vm295, %v279, 128
    %v312 = vsel %vm225, %v296, 2147483647
    %v313 = vsel %vm225, %v297, 2147483647
    %v314 = vsel %vm225, %v298, 2147483647
    %v315 = vsel %vm225, %v299, 2147483647
    %v316 = vsel %vm225, %v300, 2147483647
    %vm317 = vcmp.lt.s32.totalorder %v312, %v316
    %v318 = vsel %vm317, %v312, %v316
    %v319 = vsel %vm225, %v301, 2147483647
    %vm320 = vcmp.lt.s32.totalorder %v313, %v319
    %v321 = vsel %vm320, %v313, %v319
    %v322 = vsel %vm225, %v302, 2147483647
    %vm323 = vcmp.lt.s32.totalorder %v314, %v322
    %v324 = vsel %vm323, %v314, %v322
    %v325 = vsel %vm225, %v303, 2147483647
    %vm326 = vcmp.lt.s32.totalorder %v315, %v325
    %v327 = vsel %vm326, %v315, %v325
    %v328 = vsel %vm225, %v304, 2147483647
    %vm329 = vcmp.lt.s32.totalorder %v318, %v328
    %v330 = vsel %vm329, %v318, %v328
    %v331 = vsel %vm225, %v305, 2147483647
    %vm332 = vcmp.lt.s32.totalorder %v321, %v331
    %v333 = vsel %vm332, %v321, %v331
    %v334 = vsel %vm225, %v306, 2147483647
    %vm335 = vcmp.lt.s32.totalorder %v324, %v334
    %v336 = vsel %vm335, %v324, %v334
    %v337 = vsel %vm225, %v307, 2147483647
    %vm338 = vcmp.lt.s32.totalorder %v327, %v337
    %v339 = vsel %vm338, %v327, %v337
    %v340 = vsel %vm225, %v308, 2147483647
    %vm341 = vcmp.lt.s32.totalorder %v330, %v340
    %v342 = vsel %vm341, %v330, %v340
    %v343 = vsel %vm225, %v309, 2147483647
    %vm344 = vcmp.lt.s32.totalorder %v333, %v343
    %v345 = vsel %vm344, %v333, %v343
    %v346 = vsel %vm225, %v310, 2147483647
    %vm347 = vcmp.lt.s32.totalorder %v336, %v346
    %v348 = vsel %vm347, %v336, %v346
    %v349 = vsel %vm225, %v311, 2147483647
    %vm350 = vcmp.lt.s32.totalorder %v339, %v349
    %v351 = vsel %vm350, %v339, %v349
    %vm352 = vcmp.lt.s32.totalorder %v342, %v345
    %v353 = vsel %vm352, %v342, %v345
    %vm354 = vcmp.lt.s32.totalorder %v348, %v351
    %v355 = vsel %vm354, %v348, %v351
    %vm356 = vcmp.lt.s32.totalorder %v353, %v355
    %v357 = vsel %vm356, %v353, %v355
    %v358 = vrot.slane %v357, 4
    %vm359 = vcmp.lt.s32.totalorder %v357, %v358
    %v360 = vsel %vm359, %v357, %v358
    %v361 = vrot.slane %v360, 2
    %vm362 = vcmp.lt.s32.totalorder %v360, %v361
    %v363 = vsel %vm362, %v360, %v361
    %v364 = vrot.slane %v363, 1
    %vm365 = vcmp.lt.s32.totalorder %v363, %v364
    %v366 = vsel %vm365, %v363, %v364
    %vm367 = vcmask 122880
    %368 = vst.msk [vmem:[%s2] sm:$0x1] %vm367, %v366
    %vm369 = vcmask 7168
    %v370 = vsel %vm369, %v45, 0.0
    %v371 = vsel %vm369, %v47, 0.0
    %v372 = vadd.f32 %v370, %v371
    %373 = vadd.xlane.f32.xlu0 %v372
    %v374 = vpop.xlane.xlu0 %373
    %v375 = vrot.slane %v374, 4
    %v376 = vadd.f32 %v374, %v375
    %v377 = vrot.slane %v376, 2
    %v378 = vadd.f32 %v376, %v377
    %v379 = vrot.slane %v378, 1
    %v380 = vadd.f32 %v378, %v379
    %s381 = vtos %v380
    %v382 = vsel %vm367, %v262, 0.0
    %383 = vadd.xlane.f32.xlu0 %v382
    %v384 = vpop.xlane.xlu0 %383
    %v385 = vrot.slane %v384, 4
    %v386 = vadd.f32 %v384, %v385
    %v387 = vrot.slane %v386, 2
    %v388 = vadd.f32 %v386, %v387
    %v389 = vrot.slane %v388, 1
    %v390 = vadd.f32 %v388, %v389
    %s391 = vtos %v390
    %s392 = sadd.f32 %s381, %s391
    %s393 = smax.f32 %s392, 0.0
    %v394 = vrcp.pop 2048.0
    %s395 = vtos %v394
    %s396 = smul.f32 %s393, %s395
    %v397 = vstv %s396
    %vm398 = vcmask 0
    %399 = vst.msk [vmem:[#allocation2] sm:$0x1] %vm398, %v397
    // Predicated region
    $region10: #{my_diffusion_forward.5} parent=1 // pred_check
      _
    $region11: #{my_diffusion_forward.5} parent=1 // pred_check_branch
      %401 = sbr.rel (0) target = $region13
    $region12: #{my_diffusion_forward.5} parent=1 // pred_region
      _
    $region13: #{my_diffusion_forward.5} parent=1 // pred_fallthru
      _
    // Predicated region
    $region14: #{my_diffusion_forward.5} parent=1 // pred_check
      _
    $region15: #{my_diffusion_forward.5} parent=1 // pred_check_branch
      %403 = sbr.rel (0) target = $region17
    $region16: #{my_diffusion_forward.5} parent=1 // pred_region
      %s405 = ssub.s32 16, 16
      %406 = vsyncadd [#allocation3], %s405
      %s408 = sshll.u32 [#allocation2], 4
      %s409 = int_to_ptr.vmem [resolvable:$true] %s408
      %411 = dma.vmem_to_hbm [thread:$0]  %s409, 16, %s3, [#allocation3]
    $region17: #{my_diffusion_forward.5} parent=1 // pred_fallthru
      _
    // Predicated region
    $region18: #{my_diffusion_forward.5} parent=1 // pred_check
      _
    $region19: #{my_diffusion_forward.5} parent=1 // pred_check_branch
      %413 = sbr.rel (0) target = $region21
    $region20: #{my_diffusion_forward.5} parent=1 // pred_region
      _
    $region21: #{my_diffusion_forward.5} parent=1 // pred_fallthru
      _
    // Predicated region
    $region22: #{my_diffusion_forward.5} parent=1 // pred_check
      _
    $region23: #{my_diffusion_forward.5} parent=1 // pred_check_branch
      %415 = sbr.rel (0) target = $region25
    $region24: #{my_diffusion_forward.5} parent=1 // pred_region
      %416 = dma.done [#allocation3], 16
    $region25: #{my_diffusion_forward.5} parent=1 // pred_fallthru
      _
    %417 = vsyncpa [#allocation3], 1

// kernel: my_diffusion_forward.6
$region0: #{my_diffusion_forward.6}
  #allocation0 [shape = 'u32[]', space=smem, size = 0x4, offset = 0x4, fixed_abs, tag = 'smem constant byte address 0x4 - core index']
  #allocation1 [shape = 'u32[144,128]{1,0:T(1,128)}', space=vmem, size = 0x12000, scoped, tag = 'internal scratch']
  %s0 = inlined_call_operand.vmem [shape: f32[16,128], index: 0, kind: input, shape index: {}]
  %s1 = inlined_call_operand.vmem [shape: bf16[128,128], index: 1, kind: input, shape index: {}]
  %s2 = inlined_call_operand.vmem [shape: f32[1,128], index: 2, kind: input, shape index: {}]
  %s3 = inlined_call_operand.vmem [shape: f32[1,128], index: 3, kind: input, shape index: {}]
  %s4 = inlined_call_operand.vmem [shape: f32[1,128], index: 4, kind: input, shape index: {}]
  %s5 = inlined_call_operand.vmem [shape: bf16[16,128], index: 5, kind: output, shape index: {}]
  %s6 = sld [smem:[#allocation0]]
  $region30: #{my_diffusion_forward.6} parent=0
    _
  %s8 = ssub.s32 1, %s6
  %s9 = scalar_select 0, %s8, %s6
  // Predicated region
  $region2: #{my_diffusion_forward.6} parent=0 // pred_check
    _
  $region3: #{my_diffusion_forward.6} parent=0 // pred_check_branch
    %11 = sbr.rel (0) target = $region5
  $region4: #{my_diffusion_forward.6} parent=0 // pred_region
    _
  $region5: #{my_diffusion_forward.6} parent=0 // pred_fallthru
    _
  // Predicated region
  $region6: #{my_diffusion_forward.6} parent=0 // pred_check
    _
  $region7: #{my_diffusion_forward.6} parent=0 // pred_check_branch
    %13 = sbr.rel (0) target = $region9
  $region8: #{my_diffusion_forward.6} parent=0 // pred_region
    _
  $region9: #{my_diffusion_forward.6} parent=0 // pred_fallthru
    _
  // Predicated region
  $region10: #{my_diffusion_forward.6} parent=0 // pred_check
    _
  $region11: #{my_diffusion_forward.6} parent=0 // pred_check_branch
    %15 = sbr.rel (0) target = $region13
  $region12: #{my_diffusion_forward.6} parent=0 // pred_region
    _
  $region13: #{my_diffusion_forward.6} parent=0 // pred_fallthru
    _
  // Predicated region
  $region14: #{my_diffusion_forward.6} parent=0 // pred_check
    _
  $region15: #{my_diffusion_forward.6} parent=0 // pred_check_branch
    %17 = sbr.rel (0) target = $region17
  $region16: #{my_diffusion_forward.6} parent=0 // pred_region
    _
  $region17: #{my_diffusion_forward.6} parent=0 // pred_fallthru
    _
  // Predicated region
  $region18: #{my_diffusion_forward.6} parent=0 // pred_check
    _
  $region19: #{my_diffusion_forward.6} parent=0 // pred_check_branch
    %19 = sbr.rel (0) target = $region21
  $region20: #{my_diffusion_forward.6} parent=0 // pred_region
    _
  $region21: #{my_diffusion_forward.6} parent=0 // pred_fallthru
    _
  %v21 = vld [vmem:[%s0] sm:$0xff]
  %v22 = vld [vmem:[%s0 + $0x8] sm:$0xff]
  %v23 = vpack.c.bf16 %v22, %v21
  %v24 = vld [vmem:[%s1] sm:$0xf]
  %v25 = vld [vmem:[%s1 + $0x4] sm:$0xf]
  %v26 = vld [vmem:[%s1 + $0x8] sm:$0xf]
  %v27 = vld [vmem:[%s1 + $0xc] sm:$0xf]
  %v28 = vld [vmem:[%s1 + $0x10] sm:$0xf]
  %v29 = vld [vmem:[%s1 + $0x14] sm:$0xf]
  %v30 = vld [vmem:[%s1 + $0x18] sm:$0xf]
  %v31 = vld [vmem:[%s1 + $0x1c] sm:$0xf]
  %v32 = vld [vmem:[%s1 + $0x20] sm:$0xf]
  %v33 = vld [vmem:[%s1 + $0x24] sm:$0xf]
  %v34 = vld [vmem:[%s1 + $0x28] sm:$0xf]
  %v35 = vld [vmem:[%s1 + $0x2c] sm:$0xf]
  %v36 = vld [vmem:[%s1 + $0x30] sm:$0xf]
  %v37 = vld [vmem:[%s1 + $0x34] sm:$0xf]
  %v38 = vld [vmem:[%s1 + $0x38] sm:$0xf]
  %v39 = vld [vmem:[%s1 + $0x3c] sm:$0xf]
  %v40 = vld [vmem:[%s2] sm:$0x1]
  %v42 = vlaneseq
  %v43 = vshrl.u32 %v42, 7
  %v44 = vsub.s32 0, %v43
  %v45 = vrot.slane %v40, %v44
  %v63 = vunpack.c.l.b16 %v24
  %v64 = vunpack.c.l.b16 %v25
  %v65 = vunpack.c.l.b16 %v26
  %v66 = vunpack.c.l.b16 %v27
  %v67 = vunpack.c.l.b16 %v28
  %v68 = vunpack.c.l.b16 %v29
  %v69 = vunpack.c.l.b16 %v30
  %v70 = vunpack.c.l.b16 %v31
  %v71 = vunpack.c.l.b16 %v32
  %v72 = vunpack.c.l.b16 %v33
  %v73 = vunpack.c.l.b16 %v34
  %v74 = vunpack.c.l.b16 %v35
  %v75 = vunpack.c.l.b16 %v36
  %v76 = vunpack.c.l.b16 %v37
  %v77 = vunpack.c.l.b16 %v38
  %v78 = vunpack.c.l.b16 %v39
  %v79 = vpack.c.b16 %v64, %v63
  %v80 = vpack.c.b16 %v66, %v65
  %v81 = vpack.c.b16 %v68, %v67
  %v82 = vpack.c.b16 %v70, %v69
  %v83 = vpack.c.b16 %v72, %v71
  %v84 = vpack.c.b16 %v74, %v73
  %v85 = vpack.c.b16 %v76, %v75
  %v86 = vpack.c.b16 %v78, %v77
  %95 = vmatprep.subr.bf16.mxu0 0
  %96 = vmatpush1.bf16.msra.mxu0 %v86
  %97 = vmatprep.subr.bf16.mxu0 0
  %98 = vmatpush1.bf16.msra.mxu0 %v85
  %99 = vmatprep.subr.bf16.mxu0 0
  %100 = vmatpush1.bf16.msra.mxu0 %v84
  %101 = vmatprep.subr.bf16.mxu0 0
  %102 = vmatpush1.bf16.msra.mxu0 %v83
  %103 = vmatprep.subr.bf16.mxu0 0
  %104 = vmatpush1.bf16.msra.mxu0 %v82
  %105 = vmatprep.subr.bf16.mxu0 0
  %106 = vmatpush1.bf16.msra.mxu0 %v81
  %107 = vmatprep.subr.bf16.mxu0 0
  %108 = vmatpush1.bf16.msra.mxu0 %v80
  %109 = vmatprep.subr.bf16.mxu0 0
  %110 = vmatpush1.bf16.msra.mxu0 %v79
  %111 = vmatprep.subr.bf16.mxu0 0
  %112 = vmatpush2.bf16.msra.mxu0 0
  %113 = vmatprep.subr.bf16.mxu0 0
  %114 = vmatpush2.bf16.msra.mxu0 0
  %115 = vmatprep.subr.bf16.mxu0 0
  %116 = vmatpush2.bf16.msra.mxu0 0
  %117 = vmatprep.subr.bf16.mxu0 0
  %118 = vmatpush2.bf16.msra.mxu0 0
  %119 = vmatprep.subr.bf16.mxu0 0
  %120 = vmatpush2.bf16.msra.mxu0 0
  %121 = vmatprep.subr.bf16.mxu0 0
  %122 = vmatpush2.bf16.msra.mxu0 0
  %123 = vmatprep.subr.bf16.mxu0 0
  %124 = vmatpush2.bf16.msra.mxu0 0
  %125 = vmatprep.subr.bf16.mxu0 0
  %126 = vmatpush2.bf16.msra.mxu0 0
  %127 = vmatprep.mubr.bf16.mxu0 0
  %128 = vmatmul.mubr.bf16.gmra.mxu0 %v23
  %v129 = vpop.f32.mrf.mxu0
  %v130 = vadd.f32 %v45, %v129
  %v131 = vpop.f32.mrf.mxu0
  %v132 = vpop.f32.mrf.mxu0
  %v133 = vadd.f32 %v45, %v132
  %v134 = vpop.f32.mrf.mxu0
  %135 = vdwg.mxu0
  %v136 = vmul.f32 %v130, 0.5
  %v137 = vmul.f32 %v133, 0.5
  %v138 = vmul.f32 %v130, 0.044715
  %v139 = vmul.f32 %v133, 0.044715
  %v140 = vmul.f32 %v138, %v130
  %v141 = vmul.f32 %v139, %v133
  %v142 = vmul.f32 %v140, %v130
  %v143 = vmul.f32 %v141, %v133
  %v144 = vadd.f32 %v130, %v142
  %v145 = vadd.f32 %v133, %v143
  %v146 = vmul.f32 %v144, 0.7978846
  %v147 = vmul.f32 %v145, 0.7978846
  %v148 = vtanh.pop %v146
  %v149 = vtanh.pop %v147
  %v150 = vadd.f32 %v148, 1.0
  %v151 = vadd.f32 %v149, 1.0
  %v152 = vmul.f32 %v136, %v150
  %v153 = vmul.f32 %v137, %v151
  %v154 = vld [vmem:[%s3] sm:$0x1]
  %v155 = vld [vmem:[%s4] sm:$0x1]
  %156 = vadd.xlane.f32.xlu0 %v152
  %v157 = vpop.xlane.xlu0 %156
  %158 = vadd.xlane.f32.xlu0 %v153
  %v159 = vpop.xlane.xlu0 %158
  %v160 = vrcp.pop 128.0
  %v161 = vmul.f32 %v157, %v160
  %v162 = vmul.f32 %v159, %v160
  %v163 = vsub.f32 %v152, %v161
  %v164 = vsub.f32 %v153, %v162
  %v165 = vmul.f32 %v163, %v163
  %v166 = vmul.f32 %v164, %v164
  %167 = vadd.xlane.f32.xlu0 %v165
  %v168 = vpop.xlane.xlu0 %167
  %169 = vadd.xlane.f32.xlu0 %v166
  %v170 = vpop.xlane.xlu0 %169
  %v171 = vmul.f32 %v168, %v160
  %v172 = vmul.f32 %v170, %v160
  %v173 = vadd.f32 %v171, 1e-12
  %v174 = vadd.f32 %v172, 1e-12
  %v175 = vrsqrt.pop %v173
  %v176 = vrsqrt.pop %v174
  %v177 = vmul.f32 %v163, %v175
  %v178 = vmul.f32 %v164, %v176
  %v180 = vlaneseq
  %v181 = vshrl.u32 %v180, 7
  %v182 = vsub.s32 0, %v181
  %v183 = vrot.slane %v154, %v182
  %v185 = vmul.f32 %v177, %v183
  %v186 = vmul.f32 %v178, %v183
  %v188 = vlaneseq
  %v189 = vshrl.u32 %v188, 7
  %v190 = vsub.s32 0, %v189
  %v191 = vrot.slane %v155, %v190
  %v193 = vadd.f32 %v185, %v191
  %v194 = vadd.f32 %v186, %v191
  %v195 = vpack.c.bf16 %v194, %v193
  %v197 = vunpack.c.l.b16 %v195
  %v198 = vunpack.c.h.b16 %v195
  %v199 = vpack.c.b16 %v197, %v197
  %v200 = vpack.c.b16 %v198, %v198
  %203 = vst [vmem:[%s5] sm:$0xf] %v199
  %204 = vst [vmem:[%s5 + $0x4] sm:$0xf] %v200
  // Predicated region
  $region22: #{my_diffusion_forward.6} parent=0 // pred_check
    _
  $region23: #{my_diffusion_forward.6} parent=0 // pred_check_branch
    %206 = sbr.rel (0) target = $region25
  $region24: #{my_diffusion_forward.6} parent=0 // pred_region
    _
  $region25: #{my_diffusion_forward.6} parent=0 // pred_fallthru
    _
  // Predicated region
  $region26: #{my_diffusion_forward.6} parent=0 // pred_check
    _
  $region27: #{my_diffusion_forward.6} parent=0 // pred_check_branch
    %208 = sbr.rel (0) target = $region29
  $region28: #{my_diffusion_forward.6} parent=0 // pred_region
    _
  $region29: #{my_diffusion_forward.6} parent=0 // pred_fallthru
    _

// kernel: my_diffusion_forward.7
$region0: #{my_diffusion_forward.7}
  #allocation0 [shape = 'u32[]', space=smem, size = 0x4, offset = 0x4, fixed_abs, tag = 'smem constant byte address 0x4 - core index']
  #allocation1 [shape = 'u32[144,128]{1,0:T(1,128)}', space=vmem, size = 0x12000, scoped, tag = 'internal scratch']
  %s0 = inlined_call_operand.vmem [shape: bf16[16,128], index: 0, kind: input, shape index: {}]
  %s1 = inlined_call_operand.vmem [shape: bf16[256,128], index: 1, kind: input, shape index: {}]
  %s2 = inlined_call_operand.vmem [shape: f32[1,256], index: 2, kind: input, shape index: {}]
  %s3 = inlined_call_operand.hbm [shape: f32[16,256], index: 3, kind: output, shape index: {}]
  %s4 = sld [smem:[#allocation0]]
  $region45: #{my_diffusion_forward.7} parent=0
    _
  %s6 = ssub.s32 1, %s4
  %s7 = scalar_select 0, %s6, %s4
  $region1: #{my_diffusion_forward.7} parent=0
    #allocation2 [shape = 'u8[16384]{0}', space=vmem, size = 0x4000, scoped, tag = 'output window, operand 0']
    #allocation3 [shape = 's32[2]{0}', space=sflag, size = 0x8, scoped, tag = 'scoped memory for my_diffusion_forward.7']
    %8 = vsyncpa [#allocation3], 0
    %s9 = scalar_lea.sflag [#allocation3], 1
    %10 = vsyncpa %s9, 0
    loop: start=0, step=1, limit=4
    $region2: #{my_diffusion_forward.7} parent=1 // loop_pre_header
      _
    $region3: #{my_diffusion_forward.7} parent=1 // loop_header
      %s12 = sphi 0, %s16
      %p13 = scmp.ge.s32.totalorder %s12, 4
      %s20 = sphi 0, %s20
      %s22 = sphi 0, %s20
      %s23 = sphi 0, %s22
      %s37 = sphi 0, %s23
      %s43 = sphi 0, %s45
      %s46 = sphi 0, %s43
      %s47 = sphi 0, %s46
      %s63 = sphi 0, %s47
      %s69 = sphi 0, %s71
      %s72 = sphi 0, %s69
      %s73 = sphi 0, %s72
      %s89 = sphi 0, %s73
      %s95 = sphi 0, %s97
      %s98 = sphi 0, %s95
      %s99 = sphi 0, %s98
      %s115 = sphi 0, %s99
    $region4: #{my_diffusion_forward.7} parent=1 // loop_header_branch
      %15 = sbr.rel (%p13) target = $region8
    $region5: #{my_diffusion_forward.7} parent=1 // loop_body
      %s17 = ssub.s32 %s12, 1
      %s18 = ssub.s32 %s12, 2
      %s19 = sadd.s32 %s12, 1
      %s21 = sadd.s32 %s20, 1
      %p24 = scmp.eq.s32.totalorder %s12, 1
      %p25 = scmp.ne.s32.totalorder %s20, %s22
      %p26 = scmp.eq.s32.totalorder %s12, 0
      %p27 = por %p25, %p26
      %p28 = scmp.ne.s32.totalorder %s20, %s22
      %p29 = scmp.eq.s32.totalorder %s17, 1
      %p30 = por %p28, %p29
      %p31 = scmp.ne.s32.totalorder %s22, %s23
      %p32 = scmp.eq.s32.totalorder %s17, 0
      %p33 = por %p31, %p32
      %p34 = scmp.ne.s32.totalorder %s22, %s23
      %p35 = scmp.eq.s32.totalorder %s18, 1
      %p36 = por %p34, %p35
      %p38 = scmp.ne.s32.totalorder %s23, %s37
      %p39 = scmp.eq.s32.totalorder %s18, 0
      %p40 = por %p38, %p39
      %s41 = ssub.s32 %s12, %s19
      %p42 = scmp.eq.s32.totalorder %s41, 0
      %s44 = sadd.s32 %s43, 1
      %s45 = scalar_select %p42, %s43, %s44
      %p48 = pneg %p42
      %p49 = scmp.eq.s32.totalorder %s12, 1
      %p50 = por %p48, %p49
      %p51 = scmp.ne.s32.totalorder %s43, %s46
      %p52 = scmp.eq.s32.totalorder %s12, 0
      %p53 = por %p51, %p52
      %p54 = scmp.ne.s32.totalorder %s43, %s46
      %p55 = scmp.eq.s32.totalorder %s17, 1
      %p56 = por %p54, %p55
      %p57 = scmp.ne.s32.totalorder %s46, %s47
      %p58 = scmp.eq.s32.totalorder %s17, 0
      %p59 = por %p57, %p58
      %p60 = scmp.ne.s32.totalorder %s46, %s47
      %p61 = scmp.eq.s32.totalorder %s18, 1
      %p62 = por %p60, %p61
      %p64 = scmp.ne.s32.totalorder %s47, %s63
      %p65 = scmp.eq.s32.totalorder %s18, 0
      %p66 = por %p64, %p65
      %s67 = ssub.s32 %s12, %s19
      %p68 = scmp.eq.s32.totalorder %s67, 0
      %s70 = sadd.s32 %s69, 1
      %s71 = scalar_select %p68, %s69, %s70
      %p74 = pneg %p68
      %p75 = scmp.eq.s32.totalorder %s12, 1
      %p76 = por %p74, %p75
      %p77 = scmp.ne.s32.totalorder %s69, %s72
      %p78 = scmp.eq.s32.totalorder %s12, 0
      %p79 = por %p77, %p78
      %p80 = scmp.ne.s32.totalorder %s69, %s72
      %p81 = scmp.eq.s32.totalorder %s17, 1
      %p82 = por %p80, %p81
      %p83 = scmp.ne.s32.totalorder %s72, %s73
      %p84 = scmp.eq.s32.totalorder %s17, 0
      %p85 = por %p83, %p84
      %p86 = scmp.ne.s32.totalorder %s72, %s73
      %p87 = scmp.eq.s32.totalorder %s18, 1
      %p88 = por %p86, %p87
      %p90 = scmp.ne.s32.totalorder %s73, %s89
      %p91 = scmp.eq.s32.totalorder %s18, 0
      %p92 = por %p90, %p91
      %s93 = ssub.s32 %s12, %s19
      %p94 = scmp.eq.s32.totalorder %s93, 0
      %s96 = sadd.s32 %s95, 1
      %s97 = scalar_select %p94, %s95, %s96
      %p100 = pneg %p94
      %p101 = scmp.eq.s32.totalorder %s12, 1
      %p102 = por %p100, %p101
      %p103 = scmp.ne.s32.totalorder %s95, %s98
      %p104 = scmp.eq.s32.totalorder %s12, 0
      %p105 = por %p103, %p104
      %p106 = scmp.ne.s32.totalorder %s95, %s98
      %p107 = scmp.eq.s32.totalorder %s17, 1
      %p108 = por %p106, %p107
      %p109 = scmp.ne.s32.totalorder %s98, %s99
      %p110 = scmp.eq.s32.totalorder %s17, 0
      %p111 = por %p109, %p110
      %p112 = scmp.ne.s32.totalorder %s98, %s99
      %p113 = scmp.eq.s32.totalorder %s18, 1
      %p114 = por %p112, %p113
      %p116 = scmp.ne.s32.totalorder %s99, %s115
      %p117 = scmp.eq.s32.totalorder %s18, 0
      %p118 = por %p116, %p117
      %p119 = scmp.le.s32.totalorder 1, %s12
      %p120 = scmp.lt.s32.totalorder %s12, 3
      %p121 = pnand %p119, %p120
      %p122 = pneg %p121
      // Predicated region
      $region9: #{my_diffusion_forward.7} parent=5 // pred_check
        _
      $region10: #{my_diffusion_forward.7} parent=5 // pred_check_branch
        %124 = sbr.rel (%p121) target = $region12
      $region11: #{my_diffusion_forward.7} parent=5 // pred_region
        %s125 = ssub.s32 %s12, 1
        // Predicated region
        $region13: #{my_diffusion_forward.7} parent=11 // pred_check
          %p126 = pneg %p33
        $region14: #{my_diffusion_forward.7} parent=11 // pred_check_branch
          %128 = sbr.rel (%p126) target = $region16
        $region15: #{my_diffusion_forward.7} parent=11 // pred_region
          _
        $region16: #{my_diffusion_forward.7} parent=11 // pred_fallthru
          _
      $region12: #{my_diffusion_forward.7} parent=5 // pred_fallthru
        _
      %p129 = scmp.lt.s32.totalorder %s12, 2
      // Predicated region
      $region17: #{my_diffusion_forward.7} parent=5 // pred_check
        %p130 = pneg %p129
      $region18: #{my_diffusion_forward.7} parent=5 // pred_check_branch
        %132 = sbr.rel (%p130) target = $region20
      $region19: #{my_diffusion_forward.7} parent=5 // pred_region
        // Predicated region
        $region21: #{my_diffusion_forward.7} parent=19 // pred_check
          %p133 = pneg %p53
        $region22: #{my_diffusion_forward.7} parent=19 // pred_check_branch
          %135 = sbr.rel (%p133) target = $region24
        $region23: #{my_diffusion_forward.7} parent=19 // pred_region
          %s136 = smul.u32 16, %s12
          %p137 = scmp.lt.s32.totalorder %s136, 31
          %s138 = scalar_select %p137, %s136, 31
          %s139 = smul.addr %s138, 4
          %s140 = scalar_lea.vmem %s1, %s139
          %s141 = smul.u32 16, %s12
        $region24: #{my_diffusion_forward.7} parent=19 // pred_fallthru
          _
        // Predicated region
        $region25: #{my_diffusion_forward.7} parent=19 // pred_check
          %p142 = pneg %p79
        $region26: #{my_diffusion_forward.7} parent=19 // pred_check_branch
          %144 = sbr.rel (%p142) target = $region28
        $region27: #{my_diffusion_forward.7} parent=19 // pred_region
          %p145 = scmp.lt.s32.totalorder %s12, 1
          %s146 = scalar_select %p145, %s12, 1
          %s147 = scalar_lea.vmem %s2, %s146
        $region28: #{my_diffusion_forward.7} parent=19 // pred_fallthru
          _
      $region20: #{my_diffusion_forward.7} parent=5 // pred_fallthru
        _
      %p148 = scmp.le.s32.totalorder 1, %s12
      %p149 = scmp.lt.s32.totalorder %s12, 3
      %p150 = pnand %p148, %p149
      %p151 = pneg %p150
      // Predicated region
      $region29: #{my_diffusion_forward.7} parent=5 // pred_check
        _
      $region30: #{my_diffusion_forward.7} parent=5 // pred_check_branch
        %153 = sbr.rel (%p150) target = $region32
      $region31: #{my_diffusion_forward.7} parent=5 // pred_region
        %s154 = ssub.s32 %s12, 1
        %p155 = pneg %p33
        %p156 = pneg %p30
        %s157 = smul.u32 16, %s17
        %p158 = scmp.lt.s32.totalorder %s157, 31
        %s159 = scalar_select %p158, %s157, 31
        %s160 = smul.addr %s159, 4
        %s161 = scalar_lea.vmem %s1, %s160
        %p162 = pneg %p59
        %p163 = pneg %p56
        %p164 = scmp.lt.s32.totalorder %s17, 1
        %s165 = scalar_select %p164, %s17, 1
        %s166 = scalar_lea.vmem %s2, %s165
        %p167 = pneg %p85
        %p168 = pneg %p82
        %p169 = pneg %p111
        %p170 = pneg %p108
        %s171 = sand.u32 %s98, 1
        %s172 = scalar_lea.sflag [#allocation3], %s171
        %s173 = sand.u32 %s98, 1
        %s174 = smul.addr %s173, 16
        %s175 = scalar_lea.vmem [#allocation2], %s174
        %s176 = smul.u32 16, %s17
        %p177 = scmp.lt.s32.totalorder %s176, 31
        %s178 = scalar_select %p177, %s176, 31
        %s179 = smul.addr %s178, 4
        %s180 = scalar_lea.vmem %s1, %s179
        %s181 = smul.u32 16, %s17
        %p182 = scmp.lt.s32.totalorder %s17, 1
        %s183 = scalar_select %p182, %s17, 1
        %s184 = scalar_lea.vmem %s2, %s183
        %v186 = vld [vmem:[%s0] sm:$0xf]
        %v187 = vld [vmem:[%s0 + $0x4] sm:$0xf]
        %v188 = vld [vmem:[%s180] sm:$0xf]
        %v189 = vld [vmem:[%s180 + $0x4] sm:$0xf]
        %v190 = vld [vmem:[%s180 + $0x8] sm:$0xf]
        %v191 = vld [vmem:[%s180 + $0xc] sm:$0xf]
        %v192 = vld [vmem:[%s180 + $0x10] sm:$0xf]
        %v193 = vld [vmem:[%s180 + $0x14] sm:$0xf]
        %v194 = vld [vmem:[%s180 + $0x18] sm:$0xf]
        %v195 = vld [vmem:[%s180 + $0x1c] sm:$0xf]
        %v196 = vld [vmem:[%s180 + $0x20] sm:$0xf]
        %v197 = vld [vmem:[%s180 + $0x24] sm:$0xf]
        %v198 = vld [vmem:[%s180 + $0x28] sm:$0xf]
        %v199 = vld [vmem:[%s180 + $0x2c] sm:$0xf]
        %v200 = vld [vmem:[%s180 + $0x30] sm:$0xf]
        %v201 = vld [vmem:[%s180 + $0x34] sm:$0xf]
        %v202 = vld [vmem:[%s180 + $0x38] sm:$0xf]
        %v203 = vld [vmem:[%s180 + $0x3c] sm:$0xf]
        %v204 = vld [vmem:[%s184] sm:$0x1]
        %v206 = vlaneseq
        %v207 = vshrl.u32 %v206, 7
        %v208 = vsub.s32 0, %v207
        %v209 = vrot.slane %v204, %v208
        %v213 = vunpack.c.l.b16 %v186
        %v214 = vunpack.c.l.b16 %v187
        %v215 = vpack.c.b16 %v214, %v213
        %v233 = vunpack.c.l.b16 %v188
        %v234 = vunpack.c.l.b16 %v189
        %v235 = vunpack.c.l.b16 %v190
        %v236 = vunpack.c.l.b16 %v191
        %v237 = vunpack.c.l.b16 %v192
        %v238 = vunpack.c.l.b16 %v193
        %v239 = vunpack.c.l.b16 %v194
        %v240 = vunpack.c.l.b16 %v195
        %v241 = vunpack.c.l.b16 %v196
        %v242 = vunpack.c.l.b16 %v197
        %v243 = vunpack.c.l.b16 %v198
        %v244 = vunpack.c.l.b16 %v199
        %v245 = vunpack.c.l.b16 %v200
        %v246 = vunpack.c.l.b16 %v201
        %v247 = vunpack.c.l.b16 %v202
        %v248 = vunpack.c.l.b16 %v203
        %v249 = vpack.c.b16 %v234, %v233
        %v250 = vpack.c.b16 %v236, %v235
        %v251 = vpack.c.b16 %v238, %v237
        %v252 = vpack.c.b16 %v240, %v239
        %v253 = vpack.c.b16 %v242, %v241
        %v254 = vpack.c.b16 %v244, %v243
        %v255 = vpack.c.b16 %v246, %v245
        %v256 = vpack.c.b16 %v248, %v247
        %265 = vmatprep.subr.bf16.mxu0 0
        %266 = vmatpush1.bf16.xpose.msra.mxu0 %v256
        %267 = vmatprep.subr.bf16.mxu0 0
        %268 = vmatpush1.bf16.xpose.msra.mxu0 %v255
        %269 = vmatprep.subr.bf16.mxu0 0
        %270 = vmatpush1.bf16.xpose.msra.mxu0 %v254
        %271 = vmatprep.subr.bf16.mxu0 0
        %272 = vmatpush1.bf16.xpose.msra.mxu0 %v253
        %273 = vmatprep.subr.bf16.mxu0 0
        %274 = vmatpush1.bf16.xpose.msra.mxu0 %v252
        %275 = vmatprep.subr.bf16.mxu0 0
        %276 = vmatpush1.bf16.xpose.msra.mxu0 %v251
        %277 = vmatprep.subr.bf16.mxu0 0
        %278 = vmatpush1.bf16.xpose.msra.mxu0 %v250
        %279 = vmatprep.subr.bf16.mxu0 0
        %280 = vmatpush1.bf16.xpose.msra.mxu0 %v249
        %281 = vmatprep.subr.bf16.mxu0 0
        %282 = vmatpush2.bf16.xpose.msra.mxu0 0
        %283 = vmatprep.subr.bf16.mxu0 0
        %284 = vmatpush2.bf16.xpose.msra.mxu0 0
        %285 = vmatprep.subr.bf16.mxu0 0
        %286 = vmatpush2.bf16.xpose.msra.mxu0 0
        %287 = vmatprep.subr.bf16.mxu0 0
        %288 = vmatpush2.bf16.xpose.msra.mxu0 0
        %289 = vmatprep.subr.bf16.mxu0 0
        %290 = vmatpush2.bf16.xpose.msra.mxu0 0
        %291 = vmatprep.subr.bf16.mxu0 0
        %292 = vmatpush2.bf16.xpose.msra.mxu0 0
        %293 = vmatprep.subr.bf16.mxu0 0
        %294 = vmatpush2.bf16.xpose.msra.mxu0 0
        %295 = vmatprep.subr.bf16.mxu0 0
        %296 = vmatpush2.bf16.xpose.msra.mxu0 0
        %297 = vmatprep.mubr.bf16.mxu0 0
        %298 = vmatmul.mubr.bf16.gmra.mxu0 %v215
        %v299 = vpop.f32.mrf.mxu0
        %v300 = vadd.f32 %v209, %v299
        %v301 = vpop.f32.mrf.mxu0
        %v302 = vpop.f32.mrf.mxu0
        %v303 = vadd.f32 %v209, %v302
        %v304 = vpop.f32.mrf.mxu0
        %305 = vdwg.mxu0
        %306 = vst [vmem:[%s175] sm:$0xff] %v300
        %307 = vst [vmem:[%s175 + $0x8] sm:$0xff] %v303
        %s308 = sand.u32 %s98, 1
        %s309 = scalar_lea.sflag [#allocation3], %s308
        %s310 = sand.u32 %s98, 1
        %s311 = smul.addr %s310, 16
        %s312 = scalar_lea.vmem [#allocation2], %s311
        // Predicated region
        $region33: #{my_diffusion_forward.7} parent=31 // pred_check
          %p313 = pneg %p108
        $region34: #{my_diffusion_forward.7} parent=31 // pred_check_branch
          %315 = sbr.rel (%p313) target = $region36
        $region35: #{my_diffusion_forward.7} parent=31 // pred_region
          %s317 = ssub.s32 256, 256
          %318 = vsyncadd %s309, %s317
          %s319 = smul.addr %s17, 128
          %s320 = scalar_lea.hbm %s3, %s319
          %s321 = sshll.u32 %s312, 4
          %s322 = int_to_ptr.vmem [resolvable:$true] %s321
          %327 = dma.vmem_to_hbm [thread:$0]  %s322, 256, %s320, %s309, 128, 256, 8
        $region36: #{my_diffusion_forward.7} parent=31 // pred_fallthru
          _
      $region32: #{my_diffusion_forward.7} parent=5 // pred_fallthru
        _
      %p328 = scmp.le.s32.totalorder 2, %s12
      // Predicated region
      $region37: #{my_diffusion_forward.7} parent=5 // pred_check
        %p329 = pneg %p328
      $region38: #{my_diffusion_forward.7} parent=5 // pred_check_branch
        %331 = sbr.rel (%p329) target = $region40
      $region39: #{my_diffusion_forward.7} parent=5 // pred_region
        %s332 = ssub.s32 %s12, 2
        // Predicated region
        $region41: #{my_diffusion_forward.7} parent=39 // pred_check
          %p333 = pneg %p114
        $region42: #{my_diffusion_forward.7} parent=39 // pred_check_branch
          %335 = sbr.rel (%p333) target = $region44
        $region43: #{my_diffusion_forward.7} parent=39 // pred_region
          %s336 = sand.u32 %s99, 1
          %s337 = scalar_lea.sflag [#allocation3], %s336
          %s338 = sand.u32 %s99, 1
          %s339 = smul.addr %s338, 16
          %s340 = scalar_lea.vmem [#allocation2], %s339
          %341 = dma.done %s337, 256
        $region44: #{my_diffusion_forward.7} parent=39 // pred_fallthru
          _
      $region40: #{my_diffusion_forward.7} parent=5 // pred_fallthru
        _
    $region6: #{my_diffusion_forward.7} parent=1 // loop_footer
      %s16 = sadd.s32 1, %s12
    $region7: #{my_diffusion_forward.7} parent=1 // loop_footer_branch
      %11 = sbr.rel target = $region3
    $region8: #{my_diffusion_forward.7} parent=1 // loop_exit
      _
    %342 = vsyncpa [#allocation3], 1
    %s343 = scalar_lea.sflag [#allocation3], 1
    %344 = vsyncpa %s343, 1

// kernel: my_diffusion_forward.4
$region0: #{my_diffusion_forward.4}
  #allocation0 [shape = 'u32[]', space=smem, size = 0x4, offset = 0x4, fixed_abs, tag = 'smem constant byte address 0x4 - core index']
  #allocation1 [shape = 'u32[144,128]{1,0:T(1,128)}', space=vmem, size = 0x12000, scoped, tag = 'internal scratch']
  #allocation2 [shape = 'f32[16,128]{1,0:T(8,128)}', space=vmem, size = 0x2000, scoped, tag = 'scratch operand']
  %s0 = inlined_call_operand.vmem [shape: f32[16,128], index: 0, kind: input, shape index: {}]
  %s1 = inlined_call_operand.vmem [shape: f32[1,128], index: 1, kind: input, shape index: {}]
  %s2 = inlined_call_operand.vmem [shape: f32[1,128], index: 2, kind: input, shape index: {}]
  %s3 = inlined_call_operand.hbm [shape: bf16[2,128,384], index: 3, kind: input, shape index: {}]
  %s4 = inlined_call_operand.vmem [shape: f32[2,1,384], index: 4, kind: input, shape index: {}]
  %s5 = inlined_call_operand.vmem [shape: bf16[2,128,128], index: 5, kind: input, shape index: {}]
  %s6 = inlined_call_operand.vmem [shape: f32[2,1,128], index: 6, kind: input, shape index: {}]
  %s7 = inlined_call_operand.vmem [shape: f32[2,1,128], index: 7, kind: input, shape index: {}]
  %s8 = inlined_call_operand.vmem [shape: f32[2,1,128], index: 8, kind: input, shape index: {}]
  %s9 = inlined_call_operand.hbm [shape: bf16[2,128,256], index: 9, kind: input, shape index: {}]
  %s10 = inlined_call_operand.vmem [shape: f32[2,1,256], index: 10, kind: input, shape index: {}]
  %s11 = inlined_call_operand.hbm [shape: bf16[2,256,128], index: 11, kind: input, shape index: {}]
  %s12 = inlined_call_operand.vmem [shape: f32[2,1,128], index: 12, kind: input, shape index: {}]
  %s13 = inlined_call_operand.vmem [shape: f32[2,1,128], index: 13, kind: input, shape index: {}]
  %s14 = inlined_call_operand.vmem [shape: f32[2,1,128], index: 14, kind: input, shape index: {}]
  %s15 = inlined_call_operand.vmem [shape: f32[16,128], index: 15, kind: output, shape index: {}]
  %s16 = sld [smem:[#allocation0]]
  $region109: #{my_diffusion_forward.4} parent=0
    _
  %s18 = ssub.s32 1, %s16
  %s19 = scalar_select 0, %s18, %s16
  $region1: #{my_diffusion_forward.4} parent=0
    #allocation3 [shape = 'u8[196608]{0}', space=vmem, size = 0x30000, scoped, tag = 'input window, operand 3']
    #allocation4 [shape = 's32[2]{0}', space=sflag, size = 0x8, scoped, tag = 'scoped memory for my_diffusion_forward.4']
    #allocation5 [shape = 'u8[131072]{0}', space=vmem, size = 0x20000, scoped, tag = 'input window, operand 9']
    #allocation6 [shape = 's32[2]{0}', space=sflag, size = 0x8, scoped, tag = 'scoped memory for my_diffusion_forward.4']
    #allocation7 [shape = 'u8[131072]{0}', space=vmem, size = 0x20000, scoped, tag = 'input window, operand 11']
    %20 = vsyncpa [#allocation4], 0
    %s21 = scalar_lea.sflag [#allocation4], 1
    %22 = vsyncpa %s21, 0
    %23 = vsyncpa [#allocation6], 0
    %s24 = scalar_lea.sflag [#allocation6], 1
    %25 = vsyncpa %s24, 0
    loop: start=0, step=1, limit=4
    $region2: #{my_diffusion_forward.4} parent=1 // loop_pre_header
      _
    $region3: #{my_diffusion_forward.4} parent=1 // loop_header
      %s27 = sphi 0, %s31
      %p28 = scmp.ge.s32.totalorder %s27, 4
      %s35 = sphi 0, %s35
      %s37 = sphi 0, %s35
      %s38 = sphi 0, %s37
      %s52 = sphi 0, %s38
      %s56 = sphi 0, %s56
      %s58 = sphi 0, %s56
      %s59 = sphi 0, %s58
      %s73 = sphi 0, %s59
      %s77 = sphi 0, %s77
      %s79 = sphi 0, %s77
      %s80 = sphi 0, %s79
      %s94 = sphi 0, %s80
      %s100 = sphi 0, %s102
      %s103 = sphi 0, %s100
      %s104 = sphi 0, %s103
      %s120 = sphi 0, %s104
      %s126 = sphi 0, %s128
      %s129 = sphi 0, %s126
      %s130 = sphi 0, %s129
      %s146 = sphi 0, %s130
      %s152 = sphi 0, %s154
      %s155 = sphi 0, %s152
      %s156 = sphi 0, %s155
      %s172 = sphi 0, %s156
      %s178 = sphi 0, %s180
      %s181 = sphi 0, %s178
      %s182 = sphi 0, %s181
      %s198 = sphi 0, %s182
      %s204 = sphi 0, %s206
      %s207 = sphi 0, %s204
      %s208 = sphi 0, %s207
      %s224 = sphi 0, %s208
      %s230 = sphi 0, %s232
      %s233 = sphi 0, %s230
      %s234 = sphi 0, %s233
      %s250 = sphi 0, %s234
      %s256 = sphi 0, %s258
      %s259 = sphi 0, %s256
      %s260 = sphi 0, %s259
      %s276 = sphi 0, %s260
      %s282 = sphi 0, %s284
      %s285 = sphi 0, %s282
      %s286 = sphi 0, %s285
      %s302 = sphi 0, %s286
      %s308 = sphi 0, %s310
      %s311 = sphi 0, %s308
      %s312 = sphi 0, %s311
      %s328 = sphi 0, %s312
      %s334 = sphi 0, %s336
      %s337 = sphi 0, %s334
      %s338 = sphi 0, %s337
      %s354 = sphi 0, %s338
      %s360 = sphi 0, %s362
      %s363 = sphi 0, %s360
      %s364 = sphi 0, %s363
      %s380 = sphi 0, %s364
      %s386 = sphi 0, %s388
      %s389 = sphi 0, %s386
      %s390 = sphi 0, %s389
      %s406 = sphi 0, %s390
      %s410 = sphi 0, %s410
      %s412 = sphi 0, %s410
      %s413 = sphi 0, %s412
      %s427 = sphi 0, %s413
    $region4: #{my_diffusion_forward.4} parent=1 // loop_header_branch
      %30 = sbr.rel (%p28) target = $region8
    $region5: #{my_diffusion_forward.4} parent=1 // loop_body
      %s32 = ssub.s32 %s27, 1
      %s33 = ssub.s32 %s27, 2
      %s34 = sadd.s32 %s27, 1
      %s36 = sadd.s32 %s35, 1
      %p39 = scmp.eq.s32.totalorder %s27, 1
      %p40 = scmp.ne.s32.totalorder %s35, %s37
      %p41 = scmp.eq.s32.totalorder %s27, 0
      %p42 = por %p40, %p41
      %p43 = scmp.ne.s32.totalorder %s35, %s37
      %p44 = scmp.eq.s32.totalorder %s32, 1
      %p45 = por %p43, %p44
      %p46 = scmp.ne.s32.totalorder %s37, %s38
      %p47 = scmp.eq.s32.totalorder %s32, 0
      %p48 = por %p46, %p47
      %p49 = scmp.ne.s32.totalorder %s37, %s38
      %p50 = scmp.eq.s32.totalorder %s33, 1
      %p51 = por %p49, %p50
      %p53 = scmp.ne.s32.totalorder %s38, %s52
      %p54 = scmp.eq.s32.totalorder %s33, 0
      %p55 = por %p53, %p54
      %s57 = sadd.s32 %s56, 1
      %p60 = scmp.eq.s32.totalorder %s27, 1
      %p61 = scmp.ne.s32.totalorder %s56, %s58
      %p62 = scmp.eq.s32.totalorder %s27, 0
      %p63 = por %p61, %p62
      %p64 = scmp.ne.s32.totalorder %s56, %s58
      %p65 = scmp.eq.s32.totalorder %s32, 1
      %p66 = por %p64, %p65
      %p67 = scmp.ne.s32.totalorder %s58, %s59
      %p68 = scmp.eq.s32.totalorder %s32, 0
      %p69 = por %p67, %p68
      %p70 = scmp.ne.s32.totalorder %s58, %s59
      %p71 = scmp.eq.s32.totalorder %s33, 1
      %p72 = por %p70, %p71
      %p74 = scmp.ne.s32.totalorder %s59, %s73
      %p75 = scmp.eq.s32.totalorder %s33, 0
      %p76 = por %p74, %p75
      %s78 = sadd.s32 %s77, 1
      %p81 = scmp.eq.s32.totalorder %s27, 1
      %p82 = scmp.ne.s32.totalorder %s77, %s79
      %p83 = scmp.eq.s32.totalorder %s27, 0
      %p84 = por %p82, %p83
      %p85 = scmp.ne.s32.totalorder %s77, %s79
      %p86 = scmp.eq.s32.totalorder %s32, 1
      %p87 = por %p85, %p86
      %p88 = scmp.ne.s32.totalorder %s79, %s80
      %p89 = scmp.eq.s32.totalorder %s32, 0
      %p90 = por %p88, %p89
      %p91 = scmp.ne.s32.totalorder %s79, %s80
      %p92 = scmp.eq.s32.totalorder %s33, 1
      %p93 = por %p91, %p92
      %p95 = scmp.ne.s32.totalorder %s80, %s94
      %p96 = scmp.eq.s32.totalorder %s33, 0
      %p97 = por %p95, %p96
      %s98 = ssub.s32 %s27, %s34
      %p99 = scmp.eq.s32.totalorder %s98, 0
      %s101 = sadd.s32 %s100, 1
      %s102 = scalar_select %p99, %s100, %s101
      %p105 = pneg %p99
      %p106 = scmp.eq.s32.totalorder %s27, 1
      %p107 = por %p105, %p106
      %p108 = scmp.ne.s32.totalorder %s100, %s103
      %p109 = scmp.eq.s32.totalorder %s27, 0
      %p110 = por %p108, %p109
      %p111 = scmp.ne.s32.totalorder %s100, %s103
      %p112 = scmp.eq.s32.totalorder %s32, 1
      %p113 = por %p111, %p112
      %p114 = scmp.ne.s32.totalorder %s103, %s104
      %p115 = scmp.eq.s32.totalorder %s32, 0
      %p116 = por %p114, %p115
      %p117 = scmp.ne.s32.totalorder %s103, %s104
      %p118 = scmp.eq.s32.totalorder %s33, 1
      %p119 = por %p117, %p118
      %p121 = scmp.ne.s32.totalorder %s104, %s120
      %p122 = scmp.eq.s32.totalorder %s33, 0
      %p123 = por %p121, %p122
      %s124 = ssub.s32 %s27, %s34
      %p125 = scmp.eq.s32.totalorder %s124, 0
      %s127 = sadd.s32 %s126, 1
      %s128 = scalar_select %p125, %s126, %s127
      %p131 = pneg %p125
      %p132 = scmp.eq.s32.totalorder %s27, 1
      %p133 = por %p131, %p132
      %p134 = scmp.ne.s32.totalorder %s126, %s129
      %p135 = scmp.eq.s32.totalorder %s27, 0
      %p136 = por %p134, %p135
      %p137 = scmp.ne.s32.totalorder %s126, %s129
      %p138 = scmp.eq.s32.totalorder %s32, 1
      %p139 = por %p137, %p138
      %p140 = scmp.ne.s32.totalorder %s129, %s130
      %p141 = scmp.eq.s32.totalorder %s32, 0
      %p142 = por %p140, %p141
      %p143 = scmp.ne.s32.totalorder %s129, %s130
      %p144 = scmp.eq.s32.totalorder %s33, 1
      %p145 = por %p143, %p144
      %p147 = scmp.ne.s32.totalorder %s130, %s146
      %p148 = scmp.eq.s32.totalorder %s33, 0
      %p149 = por %p147, %p148
      %s150 = ssub.s32 %s27, %s34
      %p151 = scmp.eq.s32.totalorder %s150, 0
      %s153 = sadd.s32 %s152, 1
      %s154 = scalar_select %p151, %s152, %s153
      %p157 = pneg %p151
      %p158 = scmp.eq.s32.totalorder %s27, 1
      %p159 = por %p157, %p158
      %p160 = scmp.ne.s32.totalorder %s152, %s155
      %p161 = scmp.eq.s32.totalorder %s27, 0
      %p162 = por %p160, %p161
      %p163 = scmp.ne.s32.totalorder %s152, %s155
      %p164 = scmp.eq.s32.totalorder %s32, 1
      %p165 = por %p163, %p164
      %p166 = scmp.ne.s32.totalorder %s155, %s156
      %p167 = scmp.eq.s32.totalorder %s32, 0
      %p168 = por %p166, %p167
      %p169 = scmp.ne.s32.totalorder %s155, %s156
      %p170 = scmp.eq.s32.totalorder %s33, 1
      %p171 = por %p169, %p170
      %p173 = scmp.ne.s32.totalorder %s156, %s172
      %p174 = scmp.eq.s32.totalorder %s33, 0
      %p175 = por %p173, %p174
      %s176 = ssub.s32 %s27, %s34
      %p177 = scmp.eq.s32.totalorder %s176, 0
      %s179 = sadd.s32 %s178, 1
      %s180 = scalar_select %p177, %s178, %s179
      %p183 = pneg %p177
      %p184 = scmp.eq.s32.totalorder %s27, 1
      %p185 = por %p183, %p184
      %p186 = scmp.ne.s32.totalorder %s178, %s181
      %p187 = scmp.eq.s32.totalorder %s27, 0
      %p188 = por %p186, %p187
      %p189 = scmp.ne.s32.totalorder %s178, %s181
      %p190 = scmp.eq.s32.totalorder %s32, 1
      %p191 = por %p189, %p190
      %p192 = scmp.ne.s32.totalorder %s181, %s182
      %p193 = scmp.eq.s32.totalorder %s32, 0
      %p194 = por %p192, %p193
      %p195 = scmp.ne.s32.totalorder %s181, %s182
      %p196 = scmp.eq.s32.totalorder %s33, 1
      %p197 = por %p195, %p196
      %p199 = scmp.ne.s32.totalorder %s182, %s198
      %p200 = scmp.eq.s32.totalorder %s33, 0
      %p201 = por %p199, %p200
      %s202 = ssub.s32 %s27, %s34
      %p203 = scmp.eq.s32.totalorder %s202, 0
      %s205 = sadd.s32 %s204, 1
      %s206 = scalar_select %p203, %s204, %s205
      %p209 = pneg %p203
      %p210 = scmp.eq.s32.totalorder %s27, 1
      %p211 = por %p209, %p210
      %p212 = scmp.ne.s32.totalorder %s204, %s207
      %p213 = scmp.eq.s32.totalorder %s27, 0
      %p214 = por %p212, %p213
      %p215 = scmp.ne.s32.totalorder %s204, %s207
      %p216 = scmp.eq.s32.totalorder %s32, 1
      %p217 = por %p215, %p216
      %p218 = scmp.ne.s32.totalorder %s207, %s208
      %p219 = scmp.eq.s32.totalorder %s32, 0
      %p220 = por %p218, %p219
      %p221 = scmp.ne.s32.totalorder %s207, %s208
      %p222 = scmp.eq.s32.totalorder %s33, 1
      %p223 = por %p221, %p222
      %p225 = scmp.ne.s32.totalorder %s208, %s224
      %p226 = scmp.eq.s32.totalorder %s33, 0
      %p227 = por %p225, %p226
      %s228 = ssub.s32 %s27, %s34
      %p229 = scmp.eq.s32.totalorder %s228, 0
      %s231 = sadd.s32 %s230, 1
      %s232 = scalar_select %p229, %s230, %s231
      %p235 = pneg %p229
      %p236 = scmp.eq.s32.totalorder %s27, 1
      %p237 = por %p235, %p236
      %p238 = scmp.ne.s32.totalorder %s230, %s233
      %p239 = scmp.eq.s32.totalorder %s27, 0
      %p240 = por %p238, %p239
      %p241 = scmp.ne.s32.totalorder %s230, %s233
      %p242 = scmp.eq.s32.totalorder %s32, 1
      %p243 = por %p241, %p242
      %p244 = scmp.ne.s32.totalorder %s233, %s234
      %p245 = scmp.eq.s32.totalorder %s32, 0
      %p246 = por %p244, %p245
      %p247 = scmp.ne.s32.totalorder %s233, %s234
      %p248 = scmp.eq.s32.totalorder %s33, 1
      %p249 = por %p247, %p248
      %p251 = scmp.ne.s32.totalorder %s234, %s250
      %p252 = scmp.eq.s32.totalorder %s33, 0
      %p253 = por %p251, %p252
      %s254 = ssub.s32 %s27, %s34
      %p255 = scmp.eq.s32.totalorder %s254, 0
      %s257 = sadd.s32 %s256, 1
      %s258 = scalar_select %p255, %s256, %s257
      %p261 = pneg %p255
      %p262 = scmp.eq.s32.totalorder %s27, 1
      %p263 = por %p261, %p262
      %p264 = scmp.ne.s32.totalorder %s256, %s259
      %p265 = scmp.eq.s32.totalorder %s27, 0
      %p266 = por %p264, %p265
      %p267 = scmp.ne.s32.totalorder %s256, %s259
      %p268 = scmp.eq.s32.totalorder %s32, 1
      %p269 = por %p267, %p268
      %p270 = scmp.ne.s32.totalorder %s259, %s260
      %p271 = scmp.eq.s32.totalorder %s32, 0
      %p272 = por %p270, %p271
      %p273 = scmp.ne.s32.totalorder %s259, %s260
      %p274 = scmp.eq.s32.totalorder %s33, 1
      %p275 = por %p273, %p274
      %p277 = scmp.ne.s32.totalorder %s260, %s276
      %p278 = scmp.eq.s32.totalorder %s33, 0
      %p279 = por %p277, %p278
      %s280 = ssub.s32 %s27, %s34
      %p281 = scmp.eq.s32.totalorder %s280, 0
      %s283 = sadd.s32 %s282, 1
      %s284 = scalar_select %p281, %s282, %s283
      %p287 = pneg %p281
      %p288 = scmp.eq.s32.totalorder %s27, 1
      %p289 = por %p287, %p288
      %p290 = scmp.ne.s32.totalorder %s282, %s285
      %p291 = scmp.eq.s32.totalorder %s27, 0
      %p292 = por %p290, %p291
      %p293 = scmp.ne.s32.totalorder %s282, %s285
      %p294 = scmp.eq.s32.totalorder %s32, 1
      %p295 = por %p293, %p294
      %p296 = scmp.ne.s32.totalorder %s285, %s286
      %p297 = scmp.eq.s32.totalorder %s32, 0
      %p298 = por %p296, %p297
      %p299 = scmp.ne.s32.totalorder %s285, %s286
      %p300 = scmp.eq.s32.totalorder %s33, 1
      %p301 = por %p299, %p300
      %p303 = scmp.ne.s32.totalorder %s286, %s302
      %p304 = scmp.eq.s32.totalorder %s33, 0
      %p305 = por %p303, %p304
      %s306 = ssub.s32 %s27, %s34
      %p307 = scmp.eq.s32.totalorder %s306, 0
      %s309 = sadd.s32 %s308, 1
      %s310 = scalar_select %p307, %s308, %s309
      %p313 = pneg %p307
      %p314 = scmp.eq.s32.totalorder %s27, 1
      %p315 = por %p313, %p314
      %p316 = scmp.ne.s32.totalorder %s308, %s311
      %p317 = scmp.eq.s32.totalorder %s27, 0
      %p318 = por %p316, %p317
      %p319 = scmp.ne.s32.totalorder %s308, %s311
      %p320 = scmp.eq.s32.totalorder %s32, 1
      %p321 = por %p319, %p320
      %p322 = scmp.ne.s32.totalorder %s311, %s312
      %p323 = scmp.eq.s32.totalorder %s32, 0
      %p324 = por %p322, %p323
      %p325 = scmp.ne.s32.totalorder %s311, %s312
      %p326 = scmp.eq.s32.totalorder %s33, 1
      %p327 = por %p325, %p326
      %p329 = scmp.ne.s32.totalorder %s312, %s328
      %p330 = scmp.eq.s32.totalorder %s33, 0
      %p331 = por %p329, %p330
      %s332 = ssub.s32 %s27, %s34
      %p333 = scmp.eq.s32.totalorder %s332, 0
      %s335 = sadd.s32 %s334, 1
      %s336 = scalar_select %p333, %s334, %s335
      %p339 = pneg %p333
      %p340 = scmp.eq.s32.totalorder %s27, 1
      %p341 = por %p339, %p340
      %p342 = scmp.ne.s32.totalorder %s334, %s337
      %p343 = scmp.eq.s32.totalorder %s27, 0
      %p344 = por %p342, %p343
      %p345 = scmp.ne.s32.totalorder %s334, %s337
      %p346 = scmp.eq.s32.totalorder %s32, 1
      %p347 = por %p345, %p346
      %p348 = scmp.ne.s32.totalorder %s337, %s338
      %p349 = scmp.eq.s32.totalorder %s32, 0
      %p350 = por %p348, %p349
      %p351 = scmp.ne.s32.totalorder %s337, %s338
      %p352 = scmp.eq.s32.totalorder %s33, 1
      %p353 = por %p351, %p352
      %p355 = scmp.ne.s32.totalorder %s338, %s354
      %p356 = scmp.eq.s32.totalorder %s33, 0
      %p357 = por %p355, %p356
      %s358 = ssub.s32 %s27, %s34
      %p359 = scmp.eq.s32.totalorder %s358, 0
      %s361 = sadd.s32 %s360, 1
      %s362 = scalar_select %p359, %s360, %s361
      %p365 = pneg %p359
      %p366 = scmp.eq.s32.totalorder %s27, 1
      %p367 = por %p365, %p366
      %p368 = scmp.ne.s32.totalorder %s360, %s363
      %p369 = scmp.eq.s32.totalorder %s27, 0
      %p370 = por %p368, %p369
      %p371 = scmp.ne.s32.totalorder %s360, %s363
      %p372 = scmp.eq.s32.totalorder %s32, 1
      %p373 = por %p371, %p372
      %p374 = scmp.ne.s32.totalorder %s363, %s364
      %p375 = scmp.eq.s32.totalorder %s32, 0
      %p376 = por %p374, %p375
      %p377 = scmp.ne.s32.totalorder %s363, %s364
      %p378 = scmp.eq.s32.totalorder %s33, 1
      %p379 = por %p377, %p378
      %p381 = scmp.ne.s32.totalorder %s364, %s380
      %p382 = scmp.eq.s32.totalorder %s33, 0
      %p383 = por %p381, %p382
      %s384 = ssub.s32 %s27, %s34
      %p385 = scmp.eq.s32.totalorder %s384, 0
      %s387 = sadd.s32 %s386, 1
      %s388 = scalar_select %p385, %s386, %s387
      %p391 = pneg %p385
      %p392 = scmp.eq.s32.totalorder %s27, 1
      %p393 = por %p391, %p392
      %p394 = scmp.ne.s32.totalorder %s386, %s389
      %p395 = scmp.eq.s32.totalorder %s27, 0
      %p396 = por %p394, %p395
      %p397 = scmp.ne.s32.totalorder %s386, %s389
      %p398 = scmp.eq.s32.totalorder %s32, 1
      %p399 = por %p397, %p398
      %p400 = scmp.ne.s32.totalorder %s389, %s390
      %p401 = scmp.eq.s32.totalorder %s32, 0
      %p402 = por %p400, %p401
      %p403 = scmp.ne.s32.totalorder %s389, %s390
      %p404 = scmp.eq.s32.totalorder %s33, 1
      %p405 = por %p403, %p404
      %p407 = scmp.ne.s32.totalorder %s390, %s406
      %p408 = scmp.eq.s32.totalorder %s33, 0
      %p409 = por %p407, %p408
      %s411 = sadd.s32 %s410, 1
      %p414 = scmp.eq.s32.totalorder %s27, 1
      %p415 = scmp.ne.s32.totalorder %s410, %s412
      %p416 = scmp.eq.s32.totalorder %s27, 0
      %p417 = por %p415, %p416
      %p418 = scmp.ne.s32.totalorder %s410, %s412
      %p419 = scmp.eq.s32.totalorder %s32, 1
      %p420 = por %p418, %p419
      %p421 = scmp.ne.s32.totalorder %s412, %s413
      %p422 = scmp.eq.s32.totalorder %s32, 0
      %p423 = por %p421, %p422
      %p424 = scmp.ne.s32.totalorder %s412, %s413
      %p425 = scmp.eq.s32.totalorder %s33, 1
      %p426 = por %p424, %p425
      %p428 = scmp.ne.s32.totalorder %s413, %s427
      %p429 = scmp.eq.s32.totalorder %s33, 0
      %p430 = por %p428, %p429
      %p431 = scmp.le.s32.totalorder 1, %s27
      %p432 = scmp.lt.s32.totalorder %s27, 3
      %p433 = pnand %p431, %p432
      %p434 = pneg %p433
      // Predicated region
      $region9: #{my_diffusion_forward.4} parent=5 // pred_check
        _
      $region10: #{my_diffusion_forward.4} parent=5 // pred_check_branch
        %436 = sbr.rel (%p433) target = $region12
      $region11: #{my_diffusion_forward.4} parent=5 // pred_region
        %s437 = ssub.s32 %s27, 1
        // Predicated region
        $region13: #{my_diffusion_forward.4} parent=11 // pred_check
          %p438 = pneg %p48
        $region14: #{my_diffusion_forward.4} parent=11 // pred_check_branch
          %440 = sbr.rel (%p438) target = $region16
        $region15: #{my_diffusion_forward.4} parent=11 // pred_region
          _
        $region16: #{my_diffusion_forward.4} parent=11 // pred_fallthru
          _
        // Predicated region
        $region17: #{my_diffusion_forward.4} parent=11 // pred_check
          %p441 = pneg %p69
        $region18: #{my_diffusion_forward.4} parent=11 // pred_check_branch
          %443 = sbr.rel (%p441) target = $region20
        $region19: #{my_diffusion_forward.4} parent=11 // pred_region
          _
        $region20: #{my_diffusion_forward.4} parent=11 // pred_fallthru
          _
        // Predicated region
        $region21: #{my_diffusion_forward.4} parent=11 // pred_check
          %p444 = pneg %p90
        $region22: #{my_diffusion_forward.4} parent=11 // pred_check_branch
          %446 = sbr.rel (%p444) target = $region24
        $region23: #{my_diffusion_forward.4} parent=11 // pred_region
          _
        $region24: #{my_diffusion_forward.4} parent=11 // pred_fallthru
          _
      $region12: #{my_diffusion_forward.4} parent=5 // pred_fallthru
        _
      %p447 = scmp.lt.s32.totalorder %s27, 2
      // Predicated region
      $region25: #{my_diffusion_forward.4} parent=5 // pred_check
        %p448 = pneg %p447
      $region26: #{my_diffusion_forward.4} parent=5 // pred_check_branch
        %450 = sbr.rel (%p448) target = $region28
      $region27: #{my_diffusion_forward.4} parent=5 // pred_region
        // Predicated region
        $region29: #{my_diffusion_forward.4} parent=27 // pred_check
          %p451 = pneg %p110
        $region30: #{my_diffusion_forward.4} parent=27 // pred_check_branch
          %453 = sbr.rel (%p451) target = $region32
        $region31: #{my_diffusion_forward.4} parent=27 // pred_region
          %s454 = sand.u32 %s100, 1
          %s455 = scalar_lea.sflag [#allocation4], %s454
          %s456 = sand.u32 %s100, 1
          %s457 = smul.addr %s456, 192
          %s458 = scalar_lea.vmem [#allocation3], %s457
          %s460 = ssub.s32 3072, 3072
          %461 = vsyncadd %s455, %s460
          %s462 = smul.addr %s27, 48
          %s463 = smul.addr %s462, 64
          %s464 = scalar_lea.hbm %s3, %s463
          %s465 = sshll.u32 %s458, 4
          %s466 = int_to_ptr.vmem [resolvable:$true] %s465
          %471 = dma.hbm_to_vmem [thread:$0]  %s464, 3072, %s466, %s455, 192, 192, 12
        $region32: #{my_diffusion_forward.4} parent=27 // pred_fallthru
          _
        // Predicated region
        $region33: #{my_diffusion_forward.4} parent=27 // pred_check
          %p472 = pneg %p136
        $region34: #{my_diffusion_forward.4} parent=27 // pred_check_branch
          %474 = sbr.rel (%p472) target = $region36
        $region35: #{my_diffusion_forward.4} parent=27 // pred_region
          %p475 = scmp.lt.s32.totalorder %s27, 1
          %s476 = scalar_select %p475, %s27, 1
          %s477 = smul.addr %s476, 3
          %s478 = scalar_lea.vmem %s4, %s477
        $region36: #{my_diffusion_forward.4} parent=27 // pred_fallthru
          _
        // Predicated region
        $region37: #{my_diffusion_forward.4} parent=27 // pred_check
          %p479 = pneg %p162
        $region38: #{my_diffusion_forward.4} parent=27 // pred_check_branch
          %481 = sbr.rel (%p479) target = $region40
        $region39: #{my_diffusion_forward.4} parent=27 // pred_region
          %p482 = scmp.lt.s32.totalorder %s27, 1
          %s483 = scalar_select %p482, %s27, 1
          %s484 = smul.addr %s483, 16
          %s485 = smul.addr %s484, 4
          %s486 = scalar_lea.vmem %s5, %s485
        $region40: #{my_diffusion_forward.4} parent=27 // pred_fallthru
          _
        // Predicated region
        $region41: #{my_diffusion_forward.4} parent=27 // pred_check
          %p487 = pneg %p188
        $region42: #{my_diffusion_forward.4} parent=27 // pred_check_branch
          %489 = sbr.rel (%p487) target = $region44
        $region43: #{my_diffusion_forward.4} parent=27 // pred_region
          %p490 = scmp.lt.s32.totalorder %s27, 1
          %s491 = scalar_select %p490, %s27, 1
          %s492 = scalar_lea.vmem %s6, %s491
        $region44: #{my_diffusion_forward.4} parent=27 // pred_fallthru
          _
        // Predicated region
        $region45: #{my_diffusion_forward.4} parent=27 // pred_check
          %p493 = pneg %p214
        $region46: #{my_diffusion_forward.4} parent=27 // pred_check_branch
          %495 = sbr.rel (%p493) target = $region48
        $region47: #{my_diffusion_forward.4} parent=27 // pred_region
          %p496 = scmp.lt.s32.totalorder %s27, 1
          %s497 = scalar_select %p496, %s27, 1
          %s498 = scalar_lea.vmem %s7, %s497
        $region48: #{my_diffusion_forward.4} parent=27 // pred_fallthru
          _
        // Predicated region
        $region49: #{my_diffusion_forward.4} parent=27 // pred_check
          %p499 = pneg %p240
        $region50: #{my_diffusion_forward.4} parent=27 // pred_check_branch
          %501 = sbr.rel (%p499) target = $region52
        $region51: #{my_diffusion_forward.4} parent=27 // pred_region
          %p502 = scmp.lt.s32.totalorder %s27, 1
          %s503 = scalar_select %p502, %s27, 1
          %s504 = scalar_lea.vmem %s8, %s503
        $region52: #{my_diffusion_forward.4} parent=27 // pred_fallthru
          _
        // Predicated region
        $region53: #{my_diffusion_forward.4} parent=27 // pred_check
          %p505 = pneg %p266
        $region54: #{my_diffusion_forward.4} parent=27 // pred_check_branch
          %507 = sbr.rel (%p505) target = $region56
        $region55: #{my_diffusion_forward.4} parent=27 // pred_region
          %s508 = sand.u32 %s27, 1
          %s509 = scalar_lea.sflag [#allocation6], %s508
          %s510 = sand.u32 %s256, 1
          %s511 = smul.addr %s510, 128
          %s512 = scalar_lea.vmem [#allocation5], %s511
          %s514 = ssub.s32 2048, 2048
          %515 = vsyncadd %s509, %s514
          %s516 = smul.addr %s27, 32
          %s517 = smul.addr %s516, 64
          %s518 = scalar_lea.hbm %s9, %s517
          %s519 = sshll.u32 %s512, 4
          %s520 = int_to_ptr.vmem [resolvable:$true] %s519
          %525 = dma.hbm_to_vmem [thread:$0]  %s518, 2048, %s520, %s509, 128, 128, 8
        $region56: #{my_diffusion_forward.4} parent=27 // pred_fallthru
          _
        // Predicated region
        $region57: #{my_diffusion_forward.4} parent=27 // pred_check
          %p526 = pneg %p292
        $region58: #{my_diffusion_forward.4} parent=27 // pred_check_branch
          %528 = sbr.rel (%p526) target = $region60
        $region59: #{my_diffusion_forward.4} parent=27 // pred_region
          %p529 = scmp.lt.s32.totalorder %s27, 1
          %s530 = scalar_select %p529, %s27, 1
          %s531 = smul.addr %s530, 2
          %s532 = scalar_lea.vmem %s10, %s531
        $region60: #{my_diffusion_forward.4} parent=27 // pred_fallthru
          _
        // Predicated region
        $region61: #{my_diffusion_forward.4} parent=27 // pred_check
          %p533 = pneg %p318
        $region62: #{my_diffusion_forward.4} parent=27 // pred_check_branch
          %535 = sbr.rel (%p533) target = $region64
        $region63: #{my_diffusion_forward.4} parent=27 // pred_region
          %s536 = sand.u32 %s27, 1
          %s537 = scalar_lea.sflag [#allocation6], %s536
          %s538 = sand.u32 %s308, 1
          %s539 = smul.addr %s538, 128
          %s540 = scalar_lea.vmem [#allocation7], %s539
          %s542 = ssub.s32 2048, 2048
          %543 = vsyncadd %s537, %s542
          %s544 = smul.addr %s27, 32
          %s545 = smul.addr %s544, 64
          %s546 = scalar_lea.hbm %s11, %s545
          %s547 = sshll.u32 %s540, 4
          %s548 = int_to_ptr.vmem [resolvable:$true] %s547
          %553 = dma.hbm_to_vmem [thread:$0]  %s546, 2048, %s548, %s537, 64, 64, 4
        $region64: #{my_diffusion_forward.4} parent=27 // pred_fallthru
          _
        // Predicated region
        $region65: #{my_diffusion_forward.4} parent=27 // pred_check
          %p554 = pneg %p344
        $region66: #{my_diffusion_forward.4} parent=27 // pred_check_branch
          %556 = sbr.rel (%p554) target = $region68
        $region67: #{my_diffusion_forward.4} parent=27 // pred_region
          %p557 = scmp.lt.s32.totalorder %s27, 1
          %s558 = scalar_select %p557, %s27, 1
          %s559 = scalar_lea.vmem %s12, %s558
        $region68: #{my_diffusion_forward.4} parent=27 // pred_fallthru
          _
        // Predicated region
        $region69: #{my_diffusion_forward.4} parent=27 // pred_check
          %p560 = pneg %p370
        $region70: #{my_diffusion_forward.4} parent=27 // pred_check_branch
          %562 = sbr.rel (%p560) target = $region72
        $region71: #{my_diffusion_forward.4} parent=27 // pred_region
          %p563 = scmp.lt.s32.totalorder %s27, 1
          %s564 = scalar_select %p563, %s27, 1
          %s565 = scalar_lea.vmem %s13, %s564
        $region72: #{my_diffusion_forward.4} parent=27 // pred_fallthru
          _
        // Predicated region
        $region73: #{my_diffusion_forward.4} parent=27 // pred_check
          %p566 = pneg %p396
        $region74: #{my_diffusion_forward.4} parent=27 // pred_check_branch
          %568 = sbr.rel (%p566) target = $region76
        $region75: #{my_diffusion_forward.4} parent=27 // pred_region
          %p569 = scmp.lt.s32.totalorder %s27, 1
          %s570 = scalar_select %p569, %s27, 1
          %s571 = scalar_lea.vmem %s14, %s570
        $region76: #{my_diffusion_forward.4} parent=27 // pred_fallthru
          _
      $region28: #{my_diffusion_forward.4} parent=5 // pred_fallthru
        _
      %p572 = scmp.le.s32.totalorder 1, %s27
      %p573 = scmp.lt.s32.totalorder %s27, 3
      %p574 = pnand %p572, %p573
      %p575 = pneg %p574
      // Predicated region
      $region77: #{my_diffusion_forward.4} parent=5 // pred_check
        _
      $region78: #{my_diffusion_forward.4} parent=5 // pred_check_branch
        %577 = sbr.rel (%p574) target = $region80
      $region79: #{my_diffusion_forward.4} parent=5 // pred_region
        %s578 = ssub.s32 %s27, 1
        %s579 = sand.u32 %s103, 1
        %s580 = scalar_lea.sflag [#allocation4], %s579
        %s581 = sand.u32 %s103, 1
        %s582 = smul.addr %s581, 192
        %s583 = scalar_lea.vmem [#allocation3], %s582
        // Predicated region
        $region81: #{my_diffusion_forward.4} parent=79 // pred_check
          %p584 = pneg %p116
        $region82: #{my_diffusion_forward.4} parent=79 // pred_check_branch
          %586 = sbr.rel (%p584) target = $region84
        $region83: #{my_diffusion_forward.4} parent=79 // pred_region
          %587 = dma.done %s580, 3072
        $region84: #{my_diffusion_forward.4} parent=79 // pred_fallthru
          _
        %s588 = sand.u32 %s32, 1
        %s589 = scalar_lea.sflag [#allocation6], %s588
        %s590 = sand.u32 %s259, 1
        %s591 = smul.addr %s590, 128
        %s592 = scalar_lea.vmem [#allocation5], %s591
        // Predicated region
        $region85: #{my_diffusion_forward.4} parent=79 // pred_check
          %p593 = pneg %p272
        $region86: #{my_diffusion_forward.4} parent=79 // pred_check_branch
          %595 = sbr.rel (%p593) target = $region88
        $region87: #{my_diffusion_forward.4} parent=79 // pred_region
          %596 = dma.done %s589, 2048
        $region88: #{my_diffusion_forward.4} parent=79 // pred_fallthru
          _
        %s597 = sand.u32 %s32, 1
        %s598 = scalar_lea.sflag [#allocation6], %s597
        %s599 = sand.u32 %s311, 1
        %s600 = smul.addr %s599, 128
        %s601 = scalar_lea.vmem [#allocation7], %s600
        // Predicated region
        $region89: #{my_diffusion_forward.4} parent=79 // pred_check
          %p602 = pneg %p324
        $region90: #{my_diffusion_forward.4} parent=79 // pred_check_branch
          %604 = sbr.rel (%p602) target = $region92
        $region91: #{my_diffusion_forward.4} parent=79 // pred_region
          %605 = dma.done %s598, 2048
        $region92: #{my_diffusion_forward.4} parent=79 // pred_fallthru
          _
        %p606 = pneg %p48
        %p607 = pneg %p45
        %p608 = pneg %p69
        %p609 = pneg %p66
        %p610 = pneg %p90
        %p611 = pneg %p87
        %s612 = sand.u32 %s103, 1
        %s613 = scalar_lea.sflag [#allocation4], %s612
        %s614 = sand.u32 %s103, 1
        %s615 = smul.addr %s614, 192
        %s616 = scalar_lea.vmem [#allocation3], %s615
        %p617 = pneg %p116
        %p618 = pneg %p113
        %p619 = scmp.lt.s32.totalorder %s32, 1
        %s620 = scalar_select %p619, %s32, 1
        %s621 = smul.addr %s620, 3
        %s622 = scalar_lea.vmem %s4, %s621
        %p623 = pneg %p142
        %p624 = pneg %p139
        %p625 = scmp.lt.s32.totalorder %s32, 1
        %s626 = scalar_select %p625, %s32, 1
        %s627 = smul.addr %s626, 16
        %s628 = smul.addr %s627, 4
        %s629 = scalar_lea.vmem %s5, %s628
        %p630 = pneg %p168
        %p631 = pneg %p165
        %p632 = scmp.lt.s32.totalorder %s32, 1
        %s633 = scalar_select %p632, %s32, 1
        %s634 = scalar_lea.vmem %s6, %s633
        %p635 = pneg %p194
        %p636 = pneg %p191
        %p637 = scmp.lt.s32.totalorder %s32, 1
        %s638 = scalar_select %p637, %s32, 1
        %s639 = scalar_lea.vmem %s7, %s638
        %p640 = pneg %p220
        %p641 = pneg %p217
        %p642 = scmp.lt.s32.totalorder %s32, 1
        %s643 = scalar_select %p642, %s32, 1
        %s644 = scalar_lea.vmem %s8, %s643
        %p645 = pneg %p246
        %p646 = pneg %p243
        %s647 = sand.u32 %s32, 1
        %s648 = scalar_lea.sflag [#allocation6], %s647
        %s649 = sand.u32 %s259, 1
        %s650 = smul.addr %s649, 128
        %s651 = scalar_lea.vmem [#allocation5], %s650
        %p652 = pneg %p272
        %p653 = pneg %p269
        %p654 = scmp.lt.s32.totalorder %s32, 1
        %s655 = scalar_select %p654, %s32, 1
        %s656 = smul.addr %s655, 2
        %s657 = scalar_lea.vmem %s10, %s656
        %p658 = pneg %p298
        %p659 = pneg %p295
        %s660 = sand.u32 %s32, 1
        %s661 = scalar_lea.sflag [#allocation6], %s660
        %s662 = sand.u32 %s311, 1
        %s663 = smul.addr %s662, 128
        %s664 = scalar_lea.vmem [#allocation7], %s663
        %p665 = pneg %p324
        %p666 = pneg %p321
        %p667 = scmp.lt.s32.totalorder %s32, 1
        %s668 = scalar_select %p667, %s32, 1
        %s669 = scalar_lea.vmem %s12, %s668
        %p670 = pneg %p350
        %p671 = pneg %p347
        %p672 = scmp.lt.s32.totalorder %s32, 1
        %s673 = scalar_select %p672, %s32, 1
        %s674 = scalar_lea.vmem %s13, %s673
        %p675 = pneg %p376
        %p676 = pneg %p373
        %p677 = scmp.lt.s32.totalorder %s32, 1
        %s678 = scalar_select %p677, %s32, 1
        %s679 = scalar_lea.vmem %s14, %s678
        %p680 = pneg %p402
        %p681 = pneg %p399
        %p682 = pneg %p423
        %p683 = pneg %p420
        %p684 = scmp.lt.s32.totalorder %s32, 1
        %s685 = scalar_select %p684, %s32, 1
        %s686 = smul.addr %s685, 3
        %s687 = scalar_lea.vmem %s4, %s686
        %p688 = scmp.lt.s32.totalorder %s32, 1
        %s689 = scalar_select %p688, %s32, 1
        %s690 = smul.addr %s689, 16
        %s691 = smul.addr %s690, 4
        %s692 = scalar_lea.vmem %s5, %s691
        %p693 = scmp.lt.s32.totalorder %s32, 1
        %s694 = scalar_select %p693, %s32, 1
        %s695 = scalar_lea.vmem %s6, %s694
        %p696 = scmp.lt.s32.totalorder %s32, 1
        %s697 = scalar_select %p696, %s32, 1
        %s698 = scalar_lea.vmem %s7, %s697
        %p699 = scmp.lt.s32.totalorder %s32, 1
        %s700 = scalar_select %p699, %s32, 1
        %s701 = scalar_lea.vmem %s8, %s700
        %p702 = scmp.lt.s32.totalorder %s32, 1
        %s703 = scalar_select %p702, %s32, 1
        %s704 = smul.addr %s703, 2
        %s705 = scalar_lea.vmem %s10, %s704
        %p706 = scmp.lt.s32.totalorder %s32, 1
        %s707 = scalar_select %p706, %s32, 1
        %s708 = scalar_lea.vmem %s12, %s707
        %p709 = scmp.lt.s32.totalorder %s32, 1
        %s710 = scalar_select %p709, %s32, 1
        %s711 = scalar_lea.vmem %s13, %s710
        %p712 = scmp.lt.s32.totalorder %s32, 1
        %s713 = scalar_select %p712, %s32, 1
        %s714 = scalar_lea.vmem %s14, %s713
        %p716 = scmp.eq.s32.totalorder %s32, 0
        // Predicated region
        $region93: #{my_diffusion_forward.4} parent=79 // pred_check
          %p717 = pneg %p716
        $region94: #{my_diffusion_forward.4} parent=79 // pred_check_branch
          %719 = sbr.rel (%p717) target = $region96
        $region95: #{my_diffusion_forward.4} parent=79 // pred_region
          %v720 = vld [vmem:[%s0] sm:$0xff]
          %v721 = vld [vmem:[%s0 + $0x8] sm:$0xff]
          %v722 = vld [vmem:[%s1] sm:$0x1]
          %v723 = vld [vmem:[%s2] sm:$0x1]
          %724 = vadd.xlane.f32.xlu0 %v720
          %v725 = vpop.xlane.xlu0 %724
          %726 = vadd.xlane.f32.xlu0 %v721
          %v727 = vpop.xlane.xlu0 %726
          %v728 = vrcp.pop 128.0
          %v729 = vmul.f32 %v725, %v728
          %v730 = vmul.f32 %v727, %v728
          %v731 = vsub.f32 %v720, %v729
          %v732 = vsub.f32 %v721, %v730
          %v733 = vmul.f32 %v731, %v731
          %v734 = vmul.f32 %v732, %v732
          %735 = vadd.xlane.f32.xlu0 %v733
          %v736 = vpop.xlane.xlu0 %735
          %737 = vadd.xlane.f32.xlu0 %v734
          %v738 = vpop.xlane.xlu0 %737
          %v739 = vmul.f32 %v736, %v728
          %v740 = vmul.f32 %v738, %v728
          %v741 = vadd.f32 %v739, 1e-12
          %v742 = vadd.f32 %v740, 1e-12
          %v743 = vrsqrt.pop %v741
          %v744 = vrsqrt.pop %v742
          %v745 = vmul.f32 %v731, %v743
          %v746 = vmul.f32 %v732, %v744
          %v748 = vlaneseq
          %v749 = vshrl.u32 %v748, 7
          %v750 = vsub.s32 0, %v749
          %v751 = vrot.slane %v722, %v750
          %v753 = vmul.f32 %v745, %v751
          %v754 = vmul.f32 %v746, %v751
          %v756 = vlaneseq
          %v757 = vshrl.u32 %v756, 7
          %v758 = vsub.s32 0, %v757
          %v759 = vrot.slane %v723, %v758
          %v761 = vadd.f32 %v753, %v759
          %v762 = vadd.f32 %v754, %v759
          %763 = vst [vmem:[%s15] sm:$0xff] %v761
          %764 = vst [vmem:[%s15 + $0x8] sm:$0xff] %v762
        $region96: #{my_diffusion_forward.4} parent=79 // pred_fallthru
          _
        %v765 = vld [vmem:[%s15] sm:$0xff]
        %v766 = vld [vmem:[%s15 + $0x8] sm:$0xff]
        %v767 = vpack.c.bf16 %v766, %v765
        %v768 = vld [vmem:[%s583] sm:$0xff]
        %v769 = vld [vmem:[%s583 + $0x8] sm:$0xf]
        %v770 = vld [vmem:[%s583 + $0xc] sm:$0xff]
        %v771 = vld [vmem:[%s583 + $0x14] sm:$0xf]
        %v772 = vld [vmem:[%s583 + $0x18] sm:$0xff]
        %v773 = vld [vmem:[%s583 + $0x20] sm:$0xf]
        %v774 = vld [vmem:[%s583 + $0x24] sm:$0xff]
        %v775 = vld [vmem:[%s583 + $0x2c] sm:$0xf]
        %v776 = vld [vmem:[%s583 + $0x30] sm:$0xff]
        %v777 = vld [vmem:[%s583 + $0x38] sm:$0xf]
        %v778 = vld [vmem:[%s583 + $0x3c] sm:$0xff]
        %v779 = vld [vmem:[%s583 + $0x44] sm:$0xf]
        %v780 = vld [vmem:[%s583 + $0x48] sm:$0xff]
        %v781 = vld [vmem:[%s583 + $0x50] sm:$0xf]
        %v782 = vld [vmem:[%s583 + $0x54] sm:$0xff]
        %v783 = vld [vmem:[%s583 + $0x5c] sm:$0xf]
        %v784 = vld [vmem:[%s583 + $0x60] sm:$0xff]
        %v785 = vld [vmem:[%s583 + $0x68] sm:$0xf]
        %v786 = vld [vmem:[%s583 + $0x6c] sm:$0xff]
        %v787 = vld [vmem:[%s583 + $0x74] sm:$0xf]
        %v788 = vld [vmem:[%s583 + $0x78] sm:$0xff]
        %v789 = vld [vmem:[%s583 + $0x80] sm:$0xf]
        %v790 = vld [vmem:[%s583 + $0x84] sm:$0xff]
        %v791 = vld [vmem:[%s583 + $0x8c] sm:$0xf]
        %v792 = vld [vmem:[%s583 + $0x90] sm:$0xff]
        %v793 = vld [vmem:[%s583 + $0x98] sm:$0xf]
        %v794 = vld [vmem:[%s583 + $0x9c] sm:$0xff]
        %v795 = vld [vmem:[%s583 + $0xa4] sm:$0xf]
        %v796 = vld [vmem:[%s583 + $0xa8] sm:$0xff]
        %v797 = vld [vmem:[%s583 + $0xb0] sm:$0xf]
        %v798 = vld [vmem:[%s583 + $0xb4] sm:$0xff]
        %v799 = vld [vmem:[%s583 + $0xbc] sm:$0xf]
        %v800 = vld [vmem:[%s687] sm:$0x7]
        %v802 = vlaneseq
        %v803 = vshrl.u32 %v802, 7
        %v804 = vsub.s32 0, %v803
        %v805 = vrot.slane %v800, %v804
        %v806 = vlaneseq
        %v807 = vshrl.u32 %v806, 7
        %v808 = vsub.s32 1, %v807
        %v809 = vrot.slane %v800, %v808
        %v810 = vlaneseq
        %v811 = vshrl.u32 %v810, 7
        %v812 = vsub.s32 2, %v811
        %v813 = vrot.slane %v800, %v812
        %v849 = vunpack.c.l.b16 %v768
        %v850 = vunpack.c.h.b16 %v768
        %v851 = vunpack.c.l.b16 %v769
        %v852 = vunpack.c.l.b16 %v770
        %v853 = vunpack.c.h.b16 %v770
        %v854 = vunpack.c.l.b16 %v771
        %v855 = vunpack.c.l.b16 %v772
        %v856 = vunpack.c.h.b16 %v772
        %v857 = vunpack.c.l.b16 %v773
        %v858 = vunpack.c.l.b16 %v774
        %v859 = vunpack.c.h.b16 %v774
        %v860 = vunpack.c.l.b16 %v775
        %v861 = vunpack.c.l.b16 %v776
        %v862 = vunpack.c.h.b16 %v776
        %v863 = vunpack.c.l.b16 %v777
        %v864 = vunpack.c.l.b16 %v778
        %v865 = vunpack.c.h.b16 %v778
        %v866 = vunpack.c.l.b16 %v779
        %v867 = vunpack.c.l.b16 %v780
        %v868 = vunpack.c.h.b16 %v780
        %v869 = vunpack.c.l.b16 %v781
        %v870 = vunpack.c.l.b16 %v782
        %v871 = vunpack.c.h.b16 %v782
        %v872 = vunpack.c.l.b16 %v783
        %v873 = vunpack.c.l.b16 %v784
        %v874 = vunpack.c.h.b16 %v784
        %v875 = vunpack.c.l.b16 %v785
        %v876 = vunpack.c.l.b16 %v786
        %v877 = vunpack.c.h.b16 %v786
        %v878 = vunpack.c.l.b16 %v787
        %v879 = vunpack.c.l.b16 %v788
        %v880 = vunpack.c.h.b16 %v788
        %v881 = vunpack.c.l.b16 %v789
        %v882 = vunpack.c.l.b16 %v790
        %v883 = vunpack.c.h.b16 %v790
        %v884 = vunpack.c.l.b16 %v791
        %v885 = vunpack.c.l.b16 %v792
        %v886 = vunpack.c.h.b16 %v792
        %v887 = vunpack.c.l.b16 %v793
        %v888 = vunpack.c.l.b16 %v794
        %v889 = vunpack.c.h.b16 %v794
        %v890 = vunpack.c.l.b16 %v795
        %v891 = vunpack.c.l.b16 %v796
        %v892 = vunpack.c.h.b16 %v796
        %v893 = vunpack.c.l.b16 %v797
        %v894 = vunpack.c.l.b16 %v798
        %v895 = vunpack.c.h.b16 %v798
        %v896 = vunpack.c.l.b16 %v799
        %v897 = vpack.c.b16 %v852, %v849
        %v898 = vpack.c.b16 %v853, %v850
        %v899 = vpack.c.b16 %v854, %v851
        %v900 = vpack.c.b16 %v858, %v855
        %v901 = vpack.c.b16 %v859, %v856
        %v902 = vpack.c.b16 %v860, %v857
        %v903 = vpack.c.b16 %v864, %v861
        %v904 = vpack.c.b16 %v865, %v862
        %v905 = vpack.c.b16 %v866, %v863
        %v906 = vpack.c.b16 %v870, %v867
        %v907 = vpack.c.b16 %v871, %v868
        %v908 = vpack.c.b16 %v872, %v869
        %v909 = vpack.c.b16 %v876, %v873
        %v910 = vpack.c.b16 %v877, %v874
        %v911 = vpack.c.b16 %v878, %v875
        %v912 = vpack.c.b16 %v882, %v879
        %v913 = vpack.c.b16 %v883, %v880
        %v914 = vpack.c.b16 %v884, %v881
        %v915 = vpack.c.b16 %v888, %v885
        %v916 = vpack.c.b16 %v889, %v886
        %v917 = vpack.c.b16 %v890, %v887
        %v918 = vpack.c.b16 %v894, %v891
        %v919 = vpack.c.b16 %v895, %v892
        %v920 = vpack.c.b16 %v896, %v893
        %945 = vmatprep.subr.bf16.mxu0 %v919
        %946 = vmatpush1.bf16.msra.mxu0 %v918
        %947 = vmatprep.subr.bf16.mxu0 %v916
        %948 = vmatpush1.bf16.msra.mxu0 %v915
        %949 = vmatprep.subr.bf16.mxu0 %v913
        %950 = vmatpush1.bf16.msra.mxu0 %v912
        %951 = vmatprep.subr.bf16.mxu0 %v910
        %952 = vmatpush1.bf16.msra.mxu0 %v909
        %953 = vmatprep.subr.bf16.mxu0 %v907
        %954 = vmatpush1.bf16.msra.mxu0 %v906
        %955 = vmatprep.subr.bf16.mxu0 %v904
        %956 = vmatpush1.bf16.msra.mxu0 %v903
        %957 = vmatprep.subr.bf16.mxu0 %v901
        %958 = vmatpush1.bf16.msra.mxu0 %v900
        %959 = vmatprep.subr.bf16.mxu0 %v898
        %960 = vmatpush1.bf16.msra.mxu0 %v897
        %961 = vmatprep.subr.bf16.mxu0 0
        %962 = vmatpush2.bf16.msra.mxu0 0
        %963 = vmatprep.subr.bf16.mxu0 0
        %964 = vmatpush2.bf16.msra.mxu0 0
        %965 = vmatprep.subr.bf16.mxu0 0
        %966 = vmatpush2.bf16.msra.mxu0 0
        %967 = vmatprep.subr.bf16.mxu0 0
        %968 = vmatpush2.bf16.msra.mxu0 0
        %969 = vmatprep.subr.bf16.mxu0 0
        %970 = vmatpush2.bf16.msra.mxu0 0
        %971 = vmatprep.subr.bf16.mxu0 0
        %972 = vmatpush2.bf16.msra.mxu0 0
        %973 = vmatprep.subr.bf16.mxu0 0
        %974 = vmatpush2.bf16.msra.mxu0 0
        %975 = vmatprep.subr.bf16.mxu0 0
        %976 = vmatpush2.bf16.msra.mxu0 0
        %977 = vmatprep.mubr.bf16.mxu0 0
        %978 = vmatmul.mubr.bf16.gmra.mxu0 %v767
        %v979 = vpop.f32.mrf.mxu0
        %v980 = vadd.f32 %v805, %v979
        %v981 = vpop.f32.mrf.mxu0
        %v982 = vadd.f32 %v809, %v981
        %v983 = vpop.f32.mrf.mxu0
        %v984 = vadd.f32 %v805, %v983
        %v985 = vpop.f32.mrf.mxu0
        %v986 = vadd.f32 %v809, %v985
        %987 = vdwg.mxu0
        %988 = vmatprep.subr.bf16.mxu0 0
        %989 = vmatpush1.bf16.msra.mxu0 %v920
        %990 = vmatprep.subr.bf16.mxu0 0
        %991 = vmatpush1.bf16.msra.mxu0 %v917
        %992 = vmatprep.subr.bf16.mxu0 0
        %993 = vmatpush1.bf16.msra.mxu0 %v914
        %994 = vmatprep.subr.bf16.mxu0 0
        %995 = vmatpush1.bf16.msra.mxu0 %v911
        %996 = vmatprep.subr.bf16.mxu0 0
        %997 = vmatpush1.bf16.msra.mxu0 %v908
        %998 = vmatprep.subr.bf16.mxu0 0
        %999 = vmatpush1.bf16.msra.mxu0 %v905
        %1000 = vmatprep.subr.bf16.mxu0 0
        %1001 = vmatpush1.bf16.msra.mxu0 %v902
        %1002 = vmatprep.subr.bf16.mxu0 0
        %1003 = vmatpush1.bf16.msra.mxu0 %v899
        %1004 = vmatprep.subr.bf16.mxu0 0
        %1005 = vmatpush2.bf16.msra.mxu0 0
        %1006 = vmatprep.subr.bf16.mxu0 0
        %1007 = vmatpush2.bf16.msra.mxu0 0
        %1008 = vmatprep.subr.bf16.mxu0 0
        %1009 = vmatpush2.bf16.msra.mxu0 0
        %1010 = vmatprep.subr.bf16.mxu0 0
        %1011 = vmatpush2.bf16.msra.mxu0 0
        %1012 = vmatprep.subr.bf16.mxu0 0
        %1013 = vmatpush2.bf16.msra.mxu0 0
        %1014 = vmatprep.subr.bf16.mxu0 0
        %1015 = vmatpush2.bf16.msra.mxu0 0
        %1016 = vmatprep.subr.bf16.mxu0 0
        %1017 = vmatpush2.bf16.msra.mxu0 0
        %1018 = vmatprep.subr.bf16.mxu0 0
        %1019 = vmatpush2.bf16.msra.mxu0 0
        %1020 = vmatprep.mubr.bf16.mxu0 0
        %1021 = vmatmul.mubr.bf16.gmra.mxu0 %v767
        %v1022 = vpop.f32.mrf.mxu0
        %v1023 = vadd.f32 %v813, %v1022
        %v1024 = vpop.f32.mrf.mxu0
        %v1025 = vpop.f32.mrf.mxu0
        %v1026 = vadd.f32 %v813, %v1025
        %v1027 = vpop.f32.mrf.mxu0
        %1028 = vdwg.mxu0
        %v1029 = vpack.c.bf16 %v980, %v980
        %v1030 = vpack.c.bf16 %v984, %v984
        %v1031 = vpack.c.bf16 %v982, %v982
        %v1032 = vpack.c.bf16 %v986, %v986
        %v1033 = vpack.c.bf16 %v1023, %v1023
        %v1034 = vpack.c.bf16 %v1026, %v1026
        %vm1035 = vcmask 523264
        %v1037 = vsel %vm1035, %v1029, 0
        %v1040 = vsel %vm1035, %v1031, 0
        %1042 = vmatprep.subr.bf16.mxu0 0
        %1043 = vmatpush1.bf16.xpose.msra.mxu0 0
        %1044 = vmatprep.subr.bf16.mxu0 0
        %1045 = vmatpush1.bf16.xpose.msra.mxu0 0
        %1046 = vmatprep.subr.bf16.mxu0 0
        %1047 = vmatpush1.bf16.xpose.msra.mxu0 0
        %1048 = vmatprep.subr.bf16.mxu0 0
        %1049 = vmatpush1.bf16.xpose.msra.mxu0 0
        %1050 = vmatprep.subr.bf16.mxu0 0
        %1051 = vmatpush1.bf16.xpose.msra.mxu0 0
        %1052 = vmatprep.subr.bf16.mxu0 0
        %1053 = vmatpush1.bf16.xpose.msra.mxu0 0
        %1054 = vmatprep.subr.bf16.mxu0 0
        %1055 = vmatpush1.bf16.xpose.msra.mxu0 0
        %1056 = vmatprep.subr.bf16.mxu0 0
        %1057 = vmatpush1.bf16.xpose.msra.mxu0 %v1040
        %1058 = vmatprep.subr.bf16.mxu0 0
        %1059 = vmatpush2.bf16.xpose.msra.mxu0 0
        %1060 = vmatprep.subr.bf16.mxu0 0
        %1061 = vmatpush2.bf16.xpose.msra.mxu0 0
        %1062 = vmatprep.subr.bf16.mxu0 0
        %1063 = vmatpush2.bf16.xpose.msra.mxu0 0
        %1064 = vmatprep.subr.bf16.mxu0 0
        %1065 = vmatpush2.bf16.xpose.msra.mxu0 0
        %1066 = vmatprep.subr.bf16.mxu0 0
        %1067 = vmatpush2.bf16.xpose.msra.mxu0 0
        %1068 = vmatprep.subr.bf16.mxu0 0
        %1069 = vmatpush2.bf16.xpose.msra.mxu0 0
        %1070 = vmatprep.subr.bf16.mxu0 0
        %1071 = vmatpush2.bf16.xpose.msra.mxu0 0
        %1072 = vmatprep.subr.bf16.mxu0 0
        %1073 = vmatpush2.bf16.xpose.msra.mxu0 0
        %1074 = vmatprep.mubr.bf16.mxu0 0
        %1075 = vmatmul.mubr.bf16.gmra.mxu0 %v1037
        %v1076 = vpop.f32.mrf.mxu0
        %v1077 = vadd.f32 0.0, %v1076
        %v1078 = vpop.f32.mrf.mxu0
        %v1079 = vpop.f32.mrf.mxu0
        %v1080 = vpop.f32.mrf.mxu0
        %1081 = vdwg.mxu0
        %v1083 = vsel %vm1035, %v1030, 0
        %v1086 = vsel %vm1035, %v1032, 0
        %1088 = vmatprep.subr.bf16.mxu0 0
        %1089 = vmatpush1.bf16.xpose.msra.mxu0 0
        %1090 = vmatprep.subr.bf16.mxu0 0
        %1091 = vmatpush1.bf16.xpose.msra.mxu0 0
        %1092 = vmatprep.subr.bf16.mxu0 0
        %1093 = vmatpush1.bf16.xpose.msra.mxu0 0
        %1094 = vmatprep.subr.bf16.mxu0 0
        %1095 = vmatpush1.bf16.xpose.msra.mxu0 0
        %1096 = vmatprep.subr.bf16.mxu0 0
        %1097 = vmatpush1.bf16.xpose.msra.mxu0 0
        %1098 = vmatprep.subr.bf16.mxu0 0
        %1099 = vmatpush1.bf16.xpose.msra.mxu0 0
        %1100 = vmatprep.subr.bf16.mxu0 0
        %1101 = vmatpush1.bf16.xpose.msra.mxu0 0
        %1102 = vmatprep.subr.bf16.mxu0 0
        %1103 = vmatpush1.bf16.xpose.msra.mxu0 %v1086
        %1104 = vmatprep.subr.bf16.mxu0 0
        %1105 = vmatpush2.bf16.xpose.msra.mxu0 0
        %1106 = vmatprep.subr.bf16.mxu0 0
        %1107 = vmatpush2.bf16.xpose.msra.mxu0 0
        %1108 = vmatprep.subr.bf16.mxu0 0
        %1109 = vmatpush2.bf16.xpose.msra.mxu0 0
        %1110 = vmatprep.subr.bf16.mxu0 0
        %1111 = vmatpush2.bf16.xpose.msra.mxu0 0
        %1112 = vmatprep.subr.bf16.mxu0 0
        %1113 = vmatpush2.bf16.xpose.msra.mxu0 0
        %1114 = vmatprep.subr.bf16.mxu0 0
        %1115 = vmatpush2.bf16.xpose.msra.mxu0 0
        %1116 = vmatprep.subr.bf16.mxu0 0
        %1117 = vmatpush2.bf16.xpose.msra.mxu0 0
        %1118 = vmatprep.subr.bf16.mxu0 0
        %1119 = vmatpush2.bf16.xpose.msra.mxu0 0
        %1120 = vmatprep.mubr.bf16.mxu0 0
        %1121 = vmatmul.mubr.bf16.gmra.mxu0 %v1083
        %v1122 = vpop.f32.mrf.mxu0
        %v1123 = vadd.f32 0.0, %v1122
        %v1124 = vpop.f32.mrf.mxu0
        %v1125 = vpop.f32.mrf.mxu0
        %v1126 = vpop.f32.mrf.mxu0
        %1127 = vdwg.mxu0
        %v1128 = vmul.f32 %v1077, 0.125
        %v1129 = vmul.f32 %v1123, 0.125
        %vm1130 = vcmask 64512
        %v1131 = vsel %vm1130, %v1128, -inf
        %1132 = vmax.xlane.f32.xlu0 %v1131
        %v1133 = vpop.xlane.xlu0 %1132
        %v1134 = vsel %vm1130, %v1129, -inf
        %1135 = vmax.xlane.f32.xlu0 %v1134
        %v1136 = vpop.xlane.xlu0 %1135
        %v1137 = vsub.f32 %v1128, %v1133
        %v1138 = vsub.f32 %v1129, %v1136
        %v1139 = vmul.f32 %v1137, 1.442695
        %v1140 = vpow.pop %v1139
        %v1141 = vmul.f32 %v1138, 1.442695
        %v1142 = vpow.pop %v1141
        %v1143 = vsel %vm1130, %v1140, 0.0
        %1144 = vadd.xlane.f32.xlu0 %v1143
        %v1145 = vpop.xlane.xlu0 %1144
        %v1146 = vsel %vm1130, %v1142, 0.0
        %1147 = vadd.xlane.f32.xlu0 %v1146
        %v1148 = vpop.xlane.xlu0 %1147
        %v1149 = vrcp.pop %v1145
        %v1150 = vrcp.pop %v1148
        %v1151 = vmul.f32 %v1140, %v1149
        %v1152 = vmul.f32 %v1142, %v1150
        %v1153 = vpack.c.bf16 %v1151, %v1151
        %v1154 = vpack.c.bf16 %v1152, %v1152
        %v1156 = vsel %vm1130, %v1153, 0
        %vm1158 = vcmask 1043456
        %v1160 = vsel %vm1158, %v1033, 0
        %1162 = vmatprep.subr.bf16.mxu0 0
        %1163 = vmatpush1.bf16.msra.mxu0 0
        %1164 = vmatprep.subr.bf16.mxu0 0
        %1165 = vmatpush1.bf16.msra.mxu0 0
        %1166 = vmatprep.subr.bf16.mxu0 0
        %1167 = vmatpush1.bf16.msra.mxu0 0
        %1168 = vmatprep.subr.bf16.mxu0 0
        %1169 = vmatpush1.bf16.msra.mxu0 0
        %1170 = vmatprep.subr.bf16.mxu0 0
        %1171 = vmatpush1.bf16.msra.mxu0 0
        %1172 = vmatprep.subr.bf16.mxu0 0
        %1173 = vmatpush1.bf16.msra.mxu0 0
        %1174 = vmatprep.subr.bf16.mxu0 0
        %1175 = vmatpush1.bf16.msra.mxu0 0
        %1176 = vmatprep.subr.bf16.mxu0 0
        %1177 = vmatpush1.bf16.msra.mxu0 %v1160
        %1178 = vmatprep.subr.bf16.mxu0 0
        %1179 = vmatpush2.bf16.msra.mxu0 0
        %1180 = vmatprep.subr.bf16.mxu0 0
        %1181 = vmatpush2.bf16.msra.mxu0 0
        %1182 = vmatprep.subr.bf16.mxu0 0
        %1183 = vmatpush2.bf16.msra.mxu0 0
        %1184 = vmatprep.subr.bf16.mxu0 0
        %1185 = vmatpush2.bf16.msra.mxu0 0
        %1186 = vmatprep.subr.bf16.mxu0 0
        %1187 = vmatpush2.bf16.msra.mxu0 0
        %1188 = vmatprep.subr.bf16.mxu0 0
        %1189 = vmatpush2.bf16.msra.mxu0 0
        %1190 = vmatprep.subr.bf16.mxu0 0
        %1191 = vmatpush2.bf16.msra.mxu0 0
        %1192 = vmatprep.subr.bf16.mxu0 0
        %1193 = vmatpush2.bf16.msra.mxu0 0
        %1194 = vmatprep.mubr.bf16.mxu0 0
        %1195 = vmatmul.mubr.bf16.gmra.mxu0 %v1156
        %v1196 = vpop.f32.mrf.mxu0
        %v1197 = vadd.f32 0.0, %v1196
        %v1198 = vpop.f32.mrf.mxu0
        %v1199 = vpop.f32.mrf.mxu0
        %v1200 = vpop.f32.mrf.mxu0
        %1201 = vdwg.mxu0
        %v1203 = vsel %vm1130, %v1154, 0
        %v1206 = vsel %vm1158, %v1034, 0
        %1208 = vmatprep.subr.bf16.mxu0 0
        %1209 = vmatpush1.bf16.msra.mxu0 0
        %1210 = vmatprep.subr.bf16.mxu0 0
        %1211 = vmatpush1.bf16.msra.mxu0 0
        %1212 = vmatprep.subr.bf16.mxu0 0
        %1213 = vmatpush1.bf16.msra.mxu0 0
        %1214 = vmatprep.subr.bf16.mxu0 0
        %1215 = vmatpush1.bf16.msra.mxu0 0
        %1216 = vmatprep.subr.bf16.mxu0 0
        %1217 = vmatpush1.bf16.msra.mxu0 0
        %1218 = vmatprep.subr.bf16.mxu0 0
        %1219 = vmatpush1.bf16.msra.mxu0 0
        %1220 = vmatprep.subr.bf16.mxu0 0
        %1221 = vmatpush1.bf16.msra.mxu0 0
        %1222 = vmatprep.subr.bf16.mxu0 0
        %1223 = vmatpush1.bf16.msra.mxu0 %v1206
        %1224 = vmatprep.subr.bf16.mxu0 0
        %1225 = vmatpush2.bf16.msra.mxu0 0
        %1226 = vmatprep.subr.bf16.mxu0 0
        %1227 = vmatpush2.bf16.msra.mxu0 0
        %1228 = vmatprep.subr.bf16.mxu0 0
        %1229 = vmatpush2.bf16.msra.mxu0 0
        %1230 = vmatprep.subr.bf16.mxu0 0
        %1231 = vmatpush2.bf16.msra.mxu0 0
        %1232 = vmatprep.subr.bf16.mxu0 0
        %1233 = vmatpush2.bf16.msra.mxu0 0
        %1234 = vmatprep.subr.bf16.mxu0 0
        %1235 = vmatpush2.bf16.msra.mxu0 0
        %1236 = vmatprep.subr.bf16.mxu0 0
        %1237 = vmatpush2.bf16.msra.mxu0 0
        %1238 = vmatprep.subr.bf16.mxu0 0
        %1239 = vmatpush2.bf16.msra.mxu0 0
        %1240 = vmatprep.mubr.bf16.mxu0 0
        %1241 = vmatmul.mubr.bf16.gmra.mxu0 %v1203
        %v1242 = vpop.f32.mrf.mxu0
        %v1243 = vadd.f32 0.0, %v1242
        %v1244 = vpop.f32.mrf.mxu0
        %v1245 = vpop.f32.mrf.mxu0
        %v1246 = vpop.f32.mrf.mxu0
        %1247 = vdwg.mxu0
        %1248 = vst.msk [vmem:[#allocation2] sm:$0xff] %vm1035, %v1197
        %1249 = vst.msk [vmem:[#allocation2 + $0x8] sm:$0xff] %vm1035, %v1243
        %1251 = vrot.lane.b32.xlu0 %v1029, 64
        %v1252 = vpop.permute.xlu0 %1251
        %1254 = vrot.lane.b32.xlu0 %v1031, 64
        %v1255 = vpop.permute.xlu0 %1254
        %v1257 = vsel %vm1035, %v1252, 0
        %v1260 = vsel %vm1035, %v1255, 0
        %1262 = vmatprep.subr.bf16.mxu0 0
        %1263 = vmatpush1.bf16.xpose.msra.mxu0 0
        %1264 = vmatprep.subr.bf16.mxu0 0
        %1265 = vmatpush1.bf16.xpose.msra.mxu0 0
        %1266 = vmatprep.subr.bf16.mxu0 0
        %1267 = vmatpush1.bf16.xpose.msra.mxu0 0
        %1268 = vmatprep.subr.bf16.mxu0 0
        %1269 = vmatpush1.bf16.xpose.msra.mxu0 0
        %1270 = vmatprep.subr.bf16.mxu0 0
        %1271 = vmatpush1.bf16.xpose.msra.mxu0 0
        %1272 = vmatprep.subr.bf16.mxu0 0
        %1273 = vmatpush1.bf16.xpose.msra.mxu0 0
        %1274 = vmatprep.subr.bf16.mxu0 0
        %1275 = vmatpush1.bf16.xpose.msra.mxu0 0
        %1276 = vmatprep.subr.bf16.mxu0 0
        %1277 = vmatpush1.bf16.xpose.msra.mxu0 %v1260
        %1278 = vmatprep.subr.bf16.mxu0 0
        %1279 = vmatpush2.bf16.xpose.msra.mxu0 0
        %1280 = vmatprep.subr.bf16.mxu0 0
        %1281 = vmatpush2.bf16.xpose.msra.mxu0 0
        %1282 = vmatprep.subr.bf16.mxu0 0
        %1283 = vmatpush2.bf16.xpose.msra.mxu0 0
        %1284 = vmatprep.subr.bf16.mxu0 0
        %1285 = vmatpush2.bf16.xpose.msra.mxu0 0
        %1286 = vmatprep.subr.bf16.mxu0 0
        %1287 = vmatpush2.bf16.xpose.msra.mxu0 0
        %1288 = vmatprep.subr.bf16.mxu0 0
        %1289 = vmatpush2.bf16.xpose.msra.mxu0 0
        %1290 = vmatprep.subr.bf16.mxu0 0
        %1291 = vmatpush2.bf16.xpose.msra.mxu0 0
        %1292 = vmatprep.subr.bf16.mxu0 0
        %1293 = vmatpush2.bf16.xpose.msra.mxu0 0
        %1294 = vmatprep.mubr.bf16.mxu0 0
        %1295 = vmatmul.mubr.bf16.gmra.mxu0 %v1257
        %v1296 = vpop.f32.mrf.mxu0
        %v1297 = vadd.f32 0.0, %v1296
        %v1298 = vpop.f32.mrf.mxu0
        %v1299 = vpop.f32.mrf.mxu0
        %v1300 = vpop.f32.mrf.mxu0
        %1301 = vdwg.mxu0
        %1303 = vrot.lane.b32.xlu0 %v1030, 64
        %v1304 = vpop.permute.xlu0 %1303
        %1306 = vrot.lane.b32.xlu0 %v1032, 64
        %v1307 = vpop.permute.xlu0 %1306
        %v1309 = vsel %vm1035, %v1304, 0
        %v1312 = vsel %vm1035, %v1307, 0
        %1314 = vmatprep.subr.bf16.mxu0 0
        %1315 = vmatpush1.bf16.xpose.msra.mxu0 0
        %1316 = vmatprep.subr.bf16.mxu0 0
        %1317 = vmatpush1.bf16.xpose.msra.mxu0 0
        %1318 = vmatprep.subr.bf16.mxu0 0
        %1319 = vmatpush1.bf16.xpose.msra.mxu0 0
        %1320 = vmatprep.subr.bf16.mxu0 0
        %1321 = vmatpush1.bf16.xpose.msra.mxu0 0
        %1322 = vmatprep.subr.bf16.mxu0 0
        %1323 = vmatpush1.bf16.xpose.msra.mxu0 0
        %1324 = vmatprep.subr.bf16.mxu0 0
        %1325 = vmatpush1.bf16.xpose.msra.mxu0 0
        %1326 = vmatprep.subr.bf16.mxu0 0
        %1327 = vmatpush1.bf16.xpose.msra.mxu0 0
        %1328 = vmatprep.subr.bf16.mxu0 0
        %1329 = vmatpush1.bf16.xpose.msra.mxu0 %v1312
        %1330 = vmatprep.subr.bf16.mxu0 0
        %1331 = vmatpush2.bf16.xpose.msra.mxu0 0
        %1332 = vmatprep.subr.bf16.mxu0 0
        %1333 = vmatpush2.bf16.xpose.msra.mxu0 0
        %1334 = vmatprep.subr.bf16.mxu0 0
        %1335 = vmatpush2.bf16.xpose.msra.mxu0 0
        %1336 = vmatprep.subr.bf16.mxu0 0
        %1337 = vmatpush2.bf16.xpose.msra.mxu0 0
        %1338 = vmatprep.subr.bf16.mxu0 0
        %1339 = vmatpush2.bf16.xpose.msra.mxu0 0
        %1340 = vmatprep.subr.bf16.mxu0 0
        %1341 = vmatpush2.bf16.xpose.msra.mxu0 0
        %1342 = vmatprep.subr.bf16.mxu0 0
        %1343 = vmatpush2.bf16.xpose.msra.mxu0 0
        %1344 = vmatprep.subr.bf16.mxu0 0
        %1345 = vmatpush2.bf16.xpose.msra.mxu0 0
        %1346 = vmatprep.mubr.bf16.mxu0 0
        %1347 = vmatmul.mubr.bf16.gmra.mxu0 %v1309
        %v1348 = vpop.f32.mrf.mxu0
        %v1349 = vadd.f32 0.0, %v1348
        %v1350 = vpop.f32.mrf.mxu0
        %v1351 = vpop.f32.mrf.mxu0
        %v1352 = vpop.f32.mrf.mxu0
        %1353 = vdwg.mxu0
        %v1354 = vmul.f32 %v1297, 0.125
        %v1355 = vmul.f32 %v1349, 0.125
        %v1356 = vsel %vm1130, %v1354, -inf
        %1357 = vmax.xlane.f32.xlu0 %v1356
        %v1358 = vpop.xlane.xlu0 %1357
        %v1359 = vsel %vm1130, %v1355, -inf
        %1360 = vmax.xlane.f32.xlu0 %v1359
        %v1361 = vpop.xlane.xlu0 %1360
        %v1362 = vsub.f32 %v1354, %v1358
        %v1363 = vsub.f32 %v1355, %v1361
        %v1364 = vmul.f32 %v1362, 1.442695
        %v1365 = vpow.pop %v1364
        %v1366 = vmul.f32 %v1363, 1.442695
        %v1367 = vpow.pop %v1366
        %v1368 = vsel %vm1130, %v1365, 0.0
        %1369 = vadd.xlane.f32.xlu0 %v1368
        %v1370 = vpop.xlane.xlu0 %1369
        %v1371 = vsel %vm1130, %v1367, 0.0
        %1372 = vadd.xlane.f32.xlu0 %v1371
        %v1373 = vpop.xlane.xlu0 %1372
        %v1374 = vrcp.pop %v1370
        %v1375 = vrcp.pop %v1373
        %v1376 = vmul.f32 %v1365, %v1374
        %v1377 = vmul.f32 %v1367, %v1375
        %v1378 = vpack.c.bf16 %v1376, %v1376
        %v1379 = vpack.c.bf16 %v1377, %v1377
        %1381 = vrot.lane.b32.xlu0 %v1033, 64
        %v1382 = vpop.permute.xlu0 %1381
        %v1384 = vsel %vm1130, %v1378, 0
        %v1387 = vsel %vm1158, %v1382, 0
        %1389 = vmatprep.subr.bf16.mxu0 0
        %1390 = vmatpush1.bf16.msra.mxu0 0
        %1391 = vmatprep.subr.bf16.mxu0 0
        %1392 = vmatpush1.bf16.msra.mxu0 0
        %1393 = vmatprep.subr.bf16.mxu0 0
        %1394 = vmatpush1.bf16.msra.mxu0 0
        %1395 = vmatprep.subr.bf16.mxu0 0
        %1396 = vmatpush1.bf16.msra.mxu0 0
        %1397 = vmatprep.subr.bf16.mxu0 0
        %1398 = vmatpush1.bf16.msra.mxu0 0
        %1399 = vmatprep.subr.bf16.mxu0 0
        %1400 = vmatpush1.bf16.msra.mxu0 0
        %1401 = vmatprep.subr.bf16.mxu0 0
        %1402 = vmatpush1.bf16.msra.mxu0 0
        %1403 = vmatprep.subr.bf16.mxu0 0
        %1404 = vmatpush1.bf16.msra.mxu0 %v1387
        %1405 = vmatprep.subr.bf16.mxu0 0
        %1406 = vmatpush2.bf16.msra.mxu0 0
        %1407 = vmatprep.subr.bf16.mxu0 0
        %1408 = vmatpush2.bf16.msra.mxu0 0
        %1409 = vmatprep.subr.bf16.mxu0 0
        %1410 = vmatpush2.bf16.msra.mxu0 0
        %1411 = vmatprep.subr.bf16.mxu0 0
        %1412 = vmatpush2.bf16.msra.mxu0 0
        %1413 = vmatprep.subr.bf16.mxu0 0
        %1414 = vmatpush2.bf16.msra.mxu0 0
        %1415 = vmatprep.subr.bf16.mxu0 0
        %1416 = vmatpush2.bf16.msra.mxu0 0
        %1417 = vmatprep.subr.bf16.mxu0 0
        %1418 = vmatpush2.bf16.msra.mxu0 0
        %1419 = vmatprep.subr.bf16.mxu0 0
        %1420 = vmatpush2.bf16.msra.mxu0 0
        %1421 = vmatprep.mubr.bf16.mxu0 0
        %1422 = vmatmul.mubr.bf16.gmra.mxu0 %v1384
        %v1423 = vpop.f32.mrf.mxu0
        %v1424 = vadd.f32 0.0, %v1423
        %v1425 = vpop.f32.mrf.mxu0
        %v1426 = vpop.f32.mrf.mxu0
        %v1427 = vpop.f32.mrf.mxu0
        %1428 = vdwg.mxu0
        %1430 = vrot.lane.b32.xlu0 %v1034, 64
        %v1431 = vpop.permute.xlu0 %1430
        %v1433 = vsel %vm1130, %v1379, 0
        %v1436 = vsel %vm1158, %v1431, 0
        %1438 = vmatprep.subr.bf16.mxu0 0
        %1439 = vmatpush1.bf16.msra.mxu0 0
        %1440 = vmatprep.subr.bf16.mxu0 0
        %1441 = vmatpush1.bf16.msra.mxu0 0
        %1442 = vmatprep.subr.bf16.mxu0 0
        %1443 = vmatpush1.bf16.msra.mxu0 0
        %1444 = vmatprep.subr.bf16.mxu0 0
        %1445 = vmatpush1.bf16.msra.mxu0 0
        %1446 = vmatprep.subr.bf16.mxu0 0
        %1447 = vmatpush1.bf16.msra.mxu0 0
        %1448 = vmatprep.subr.bf16.mxu0 0
        %1449 = vmatpush1.bf16.msra.mxu0 0
        %1450 = vmatprep.subr.bf16.mxu0 0
        %1451 = vmatpush1.bf16.msra.mxu0 0
        %1452 = vmatprep.subr.bf16.mxu0 0
        %1453 = vmatpush1.bf16.msra.mxu0 %v1436
        %1454 = vmatprep.subr.bf16.mxu0 0
        %1455 = vmatpush2.bf16.msra.mxu0 0
        %1456 = vmatprep.subr.bf16.mxu0 0
        %1457 = vmatpush2.bf16.msra.mxu0 0
        %1458 = vmatprep.subr.bf16.mxu0 0
        %1459 = vmatpush2.bf16.msra.mxu0 0
        %1460 = vmatprep.subr.bf16.mxu0 0
        %1461 = vmatpush2.bf16.msra.mxu0 0
        %1462 = vmatprep.subr.bf16.mxu0 0
        %1463 = vmatpush2.bf16.msra.mxu0 0
        %1464 = vmatprep.subr.bf16.mxu0 0
        %1465 = vmatpush2.bf16.msra.mxu0 0
        %1466 = vmatprep.subr.bf16.mxu0 0
        %1467 = vmatpush2.bf16.msra.mxu0 0
        %1468 = vmatprep.subr.bf16.mxu0 0
        %1469 = vmatpush2.bf16.msra.mxu0 0
        %1470 = vmatprep.mubr.bf16.mxu0 0
        %1471 = vmatmul.mubr.bf16.gmra.mxu0 %v1433
        %v1472 = vpop.f32.mrf.mxu0
        %v1473 = vadd.f32 0.0, %v1472
        %v1474 = vpop.f32.mrf.mxu0
        %v1475 = vpop.f32.mrf.mxu0
        %v1476 = vpop.f32.mrf.mxu0
        %1477 = vdwg.mxu0
        %1480 = vrot.lane.b32.xlu0 %v1424, 64
        %v1481 = vpop.permute.xlu0 %1480
        %1482 = vrot.lane.b32.xlu0 %v1473, 64
        %v1483 = vpop.permute.xlu0 %1482
        %vm1486 = vcmask 1048064
        %1487 = vst.msk [vmem:[#allocation2] sm:$0xff] %vm1486, %v1481
        %1488 = vst.msk [vmem:[#allocation2 + $0x8] sm:$0xff] %vm1486, %v1483
        %v1489 = vld [vmem:[#allocation2] sm:$0xff]
        %v1490 = vld [vmem:[#allocation2 + $0x8] sm:$0xff]
        %v1491 = vpack.c.bf16 %v1490, %v1489
        %v1492 = vld [vmem:[%s692] sm:$0xf]
        %v1493 = vld [vmem:[%s692 + $0x4] sm:$0xf]
        %v1494 = vld [vmem:[%s692 + $0x8] sm:$0xf]
        %v1495 = vld [vmem:[%s692 + $0xc] sm:$0xf]
        %v1496 = vld [vmem:[%s692 + $0x10] sm:$0xf]
        %v1497 = vld [vmem:[%s692 + $0x14] sm:$0xf]
        %v1498 = vld [vmem:[%s692 + $0x18] sm:$0xf]
        %v1499 = vld [vmem:[%s692 + $0x1c] sm:$0xf]
        %v1500 = vld [vmem:[%s692 + $0x20] sm:$0xf]
        %v1501 = vld [vmem:[%s692 + $0x24] sm:$0xf]
        %v1502 = vld [vmem:[%s692 + $0x28] sm:$0xf]
        %v1503 = vld [vmem:[%s692 + $0x2c] sm:$0xf]
        %v1504 = vld [vmem:[%s692 + $0x30] sm:$0xf]
        %v1505 = vld [vmem:[%s692 + $0x34] sm:$0xf]
        %v1506 = vld [vmem:[%s692 + $0x38] sm:$0xf]
        %v1507 = vld [vmem:[%s692 + $0x3c] sm:$0xf]
        %v1508 = vld [vmem:[%s695] sm:$0x1]
        %v1510 = vlaneseq
        %v1511 = vshrl.u32 %v1510, 7
        %v1512 = vsub.s32 0, %v1511
        %v1513 = vrot.slane %v1508, %v1512
        %v1531 = vunpack.c.l.b16 %v1492
        %v1532 = vunpack.c.l.b16 %v1493
        %v1533 = vunpack.c.l.b16 %v1494
        %v1534 = vunpack.c.l.b16 %v1495
        %v1535 = vunpack.c.l.b16 %v1496
        %v1536 = vunpack.c.l.b16 %v1497
        %v1537 = vunpack.c.l.b16 %v1498
        %v1538 = vunpack.c.l.b16 %v1499
        %v1539 = vunpack.c.l.b16 %v1500
        %v1540 = vunpack.c.l.b16 %v1501
        %v1541 = vunpack.c.l.b16 %v1502
        %v1542 = vunpack.c.l.b16 %v1503
        %v1543 = vunpack.c.l.b16 %v1504
        %v1544 = vunpack.c.l.b16 %v1505
        %v1545 = vunpack.c.l.b16 %v1506
        %v1546 = vunpack.c.l.b16 %v1507
        %v1547 = vpack.c.b16 %v1532, %v1531
        %v1548 = vpack.c.b16 %v1534, %v1533
        %v1549 = vpack.c.b16 %v1536, %v1535
        %v1550 = vpack.c.b16 %v1538, %v1537
        %v1551 = vpack.c.b16 %v1540, %v1539
        %v1552 = vpack.c.b16 %v1542, %v1541
        %v1553 = vpack.c.b16 %v1544, %v1543
        %v1554 = vpack.c.b16 %v1546, %v1545
        %1563 = vmatprep.subr.bf16.mxu0 0
        %1564 = vmatpush1.bf16.msra.mxu0 %v1554
        %1565 = vmatprep.subr.bf16.mxu0 0
        %1566 = vmatpush1.bf16.msra.mxu0 %v1553
        %1567 = vmatprep.subr.bf16.mxu0 0
        %1568 = vmatpush1.bf16.msra.mxu0 %v1552
        %1569 = vmatprep.subr.bf16.mxu0 0
        %1570 = vmatpush1.bf16.msra.mxu0 %v1551
        %1571 = vmatprep.subr.bf16.mxu0 0
        %1572 = vmatpush1.bf16.msra.mxu0 %v1550
        %1573 = vmatprep.subr.bf16.mxu0 0
        %1574 = vmatpush1.bf16.msra.mxu0 %v1549
        %1575 = vmatprep.subr.bf16.mxu0 0
        %1576 = vmatpush1.bf16.msra.mxu0 %v1548
        %1577 = vmatprep.subr.bf16.mxu0 0
        %1578 = vmatpush1.bf16.msra.mxu0 %v1547
        %1579 = vmatprep.subr.bf16.mxu0 0
        %1580 = vmatpush2.bf16.msra.mxu0 0
        %1581 = vmatprep.subr.bf16.mxu0 0
        %1582 = vmatpush2.bf16.msra.mxu0 0
        %1583 = vmatprep.subr.bf16.mxu0 0
        %1584 = vmatpush2.bf16.msra.mxu0 0
        %1585 = vmatprep.subr.bf16.mxu0 0
        %1586 = vmatpush2.bf16.msra.mxu0 0
        %1587 = vmatprep.subr.bf16.mxu0 0
        %1588 = vmatpush2.bf16.msra.mxu0 0
        %1589 = vmatprep.subr.bf16.mxu0 0
        %1590 = vmatpush2.bf16.msra.mxu0 0
        %1591 = vmatprep.subr.bf16.mxu0 0
        %1592 = vmatpush2.bf16.msra.mxu0 0
        %1593 = vmatprep.subr.bf16.mxu0 0
        %1594 = vmatpush2.bf16.msra.mxu0 0
        %1595 = vmatprep.mubr.bf16.mxu0 0
        %1596 = vmatmul.mubr.bf16.gmra.mxu0 %v1491
        %v1597 = vpop.f32.mrf.mxu0
        %v1598 = vadd.f32 %v1513, %v1597
        %v1599 = vpop.f32.mrf.mxu0
        %v1600 = vpop.f32.mrf.mxu0
        %v1601 = vadd.f32 %v1513, %v1600
        %v1602 = vpop.f32.mrf.mxu0
        %1603 = vdwg.mxu0
        %v1604 = vadd.f32 %v1598, %v765
        %v1605 = vadd.f32 %v1601, %v766
        %v1606 = vld [vmem:[%s698] sm:$0x1]
        %v1607 = vld [vmem:[%s701] sm:$0x1]
        %1608 = vadd.xlane.f32.xlu0 %v1604
        %v1609 = vpop.xlane.xlu0 %1608
        %1610 = vadd.xlane.f32.xlu0 %v1605
        %v1611 = vpop.xlane.xlu0 %1610
        %v1612 = vrcp.pop 128.0
        %v1613 = vmul.f32 %v1609, %v1612
        %v1614 = vmul.f32 %v1611, %v1612
        %v1615 = vsub.f32 %v1604, %v1613
        %v1616 = vsub.f32 %v1605, %v1614
        %v1617 = vmul.f32 %v1615, %v1615
        %v1618 = vmul.f32 %v1616, %v1616
        %1619 = vadd.xlane.f32.xlu0 %v1617
        %v1620 = vpop.xlane.xlu0 %1619
        %1621 = vadd.xlane.f32.xlu0 %v1618
        %v1622 = vpop.xlane.xlu0 %1621
        %v1623 = vmul.f32 %v1620, %v1612
        %v1624 = vmul.f32 %v1622, %v1612
        %v1625 = vadd.f32 %v1623, 1e-12
        %v1626 = vadd.f32 %v1624, 1e-12
        %v1627 = vrsqrt.pop %v1625
        %v1628 = vrsqrt.pop %v1626
        %v1629 = vmul.f32 %v1615, %v1627
        %v1630 = vmul.f32 %v1616, %v1628
        %v1632 = vlaneseq
        %v1633 = vshrl.u32 %v1632, 7
        %v1634 = vsub.s32 0, %v1633
        %v1635 = vrot.slane %v1606, %v1634
        %v1637 = vmul.f32 %v1629, %v1635
        %v1638 = vmul.f32 %v1630, %v1635
        %v1640 = vlaneseq
        %v1641 = vshrl.u32 %v1640, 7
        %v1642 = vsub.s32 0, %v1641
        %v1643 = vrot.slane %v1607, %v1642
        %v1645 = vadd.f32 %v1637, %v1643
        %v1646 = vadd.f32 %v1638, %v1643
        %v1647 = vpack.c.bf16 %v1646, %v1645
        %v1648 = vld [vmem:[%s592] sm:$0xff]
        %v1649 = vld [vmem:[%s592 + $0x8] sm:$0xff]
        %v1650 = vld [vmem:[%s592 + $0x10] sm:$0xff]
        %v1651 = vld [vmem:[%s592 + $0x18] sm:$0xff]
        %v1652 = vld [vmem:[%s592 + $0x20] sm:$0xff]
        %v1653 = vld [vmem:[%s592 + $0x28] sm:$0xff]
        %v1654 = vld [vmem:[%s592 + $0x30] sm:$0xff]
        %v1655 = vld [vmem:[%s592 + $0x38] sm:$0xff]
        %v1656 = vld [vmem:[%s592 + $0x40] sm:$0xff]
        %v1657 = vld [vmem:[%s592 + $0x48] sm:$0xff]
        %v1658 = vld [vmem:[%s592 + $0x50] sm:$0xff]
        %v1659 = vld [vmem:[%s592 + $0x58] sm:$0xff]
        %v1660 = vld [vmem:[%s592 + $0x60] sm:$0xff]
        %v1661 = vld [vmem:[%s592 + $0x68] sm:$0xff]
        %v1662 = vld [vmem:[%s592 + $0x70] sm:$0xff]
        %v1663 = vld [vmem:[%s592 + $0x78] sm:$0xff]
        %v1664 = vld [vmem:[%s705] sm:$0x3]
        %v1666 = vlaneseq
        %v1667 = vshrl.u32 %v1666, 7
        %v1668 = vsub.s32 0, %v1667
        %v1669 = vrot.slane %v1664, %v1668
        %v1670 = vlaneseq
        %v1671 = vshrl.u32 %v1670, 7
        %v1672 = vsub.s32 1, %v1671
        %v1673 = vrot.slane %v1664, %v1672
        %v1692 = vunpack.c.l.b16 %v1648
        %v1693 = vunpack.c.h.b16 %v1648
        %v1694 = vunpack.c.l.b16 %v1649
        %v1695 = vunpack.c.h.b16 %v1649
        %v1696 = vunpack.c.l.b16 %v1650
        %v1697 = vunpack.c.h.b16 %v1650
        %v1698 = vunpack.c.l.b16 %v1651
        %v1699 = vunpack.c.h.b16 %v1651
        %v1700 = vunpack.c.l.b16 %v1652
        %v1701 = vunpack.c.h.b16 %v1652
        %v1702 = vunpack.c.l.b16 %v1653
        %v1703 = vunpack.c.h.b16 %v1653
        %v1704 = vunpack.c.l.b16 %v1654
        %v1705 = vunpack.c.h.b16 %v1654
        %v1706 = vunpack.c.l.b16 %v1655
        %v1707 = vunpack.c.h.b16 %v1655
        %v1708 = vunpack.c.l.b16 %v1656
        %v1709 = vunpack.c.h.b16 %v1656
        %v1710 = vunpack.c.l.b16 %v1657
        %v1711 = vunpack.c.h.b16 %v1657
        %v1712 = vunpack.c.l.b16 %v1658
        %v1713 = vunpack.c.h.b16 %v1658
        %v1714 = vunpack.c.l.b16 %v1659
        %v1715 = vunpack.c.h.b16 %v1659
        %v1716 = vunpack.c.l.b16 %v1660
        %v1717 = vunpack.c.h.b16 %v1660
        %v1718 = vunpack.c.l.b16 %v1661
        %v1719 = vunpack.c.h.b16 %v1661
        %v1720 = vunpack.c.l.b16 %v1662
        %v1721 = vunpack.c.h.b16 %v1662
        %v1722 = vunpack.c.l.b16 %v1663
        %v1723 = vunpack.c.h.b16 %v1663
        %v1724 = vpack.c.b16 %v1694, %v1692
        %v1725 = vpack.c.b16 %v1695, %v1693
        %v1726 = vpack.c.b16 %v1698, %v1696
        %v1727 = vpack.c.b16 %v1699, %v1697
        %v1728 = vpack.c.b16 %v1702, %v1700
        %v1729 = vpack.c.b16 %v1703, %v1701
        %v1730 = vpack.c.b16 %v1706, %v1704
        %v1731 = vpack.c.b16 %v1707, %v1705
        %v1732 = vpack.c.b16 %v1710, %v1708
        %v1733 = vpack.c.b16 %v1711, %v1709
        %v1734 = vpack.c.b16 %v1714, %v1712
        %v1735 = vpack.c.b16 %v1715, %v1713
        %v1736 = vpack.c.b16 %v1718, %v1716
        %v1737 = vpack.c.b16 %v1719, %v1717
        %v1738 = vpack.c.b16 %v1722, %v1720
        %v1739 = vpack.c.b16 %v1723, %v1721
        %1756 = vmatprep.subr.bf16.mxu0 %v1739
        %1757 = vmatpush1.bf16.msra.mxu0 %v1738
        %1758 = vmatprep.subr.bf16.mxu0 %v1737
        %1759 = vmatpush1.bf16.msra.mxu0 %v1736
        %1760 = vmatprep.subr.bf16.mxu0 %v1735
        %1761 = vmatpush1.bf16.msra.mxu0 %v1734
        %1762 = vmatprep.subr.bf16.mxu0 %v1733
        %1763 = vmatpush1.bf16.msra.mxu0 %v1732
        %1764 = vmatprep.subr.bf16.mxu0 %v1731
        %1765 = vmatpush1.bf16.msra.mxu0 %v1730
        %1766 = vmatprep.subr.bf16.mxu0 %v1729
        %1767 = vmatpush1.bf16.msra.mxu0 %v1728
        %1768 = vmatprep.subr.bf16.mxu0 %v1727
        %1769 = vmatpush1.bf16.msra.mxu0 %v1726
        %1770 = vmatprep.subr.bf16.mxu0 %v1725
        %1771 = vmatpush1.bf16.msra.mxu0 %v1724
        %1772 = vmatprep.subr.bf16.mxu0 0
        %1773 = vmatpush2.bf16.msra.mxu0 0
        %1774 = vmatprep.subr.bf16.mxu0 0
        %1775 = vmatpush2.bf16.msra.mxu0 0
        %1776 = vmatprep.subr.bf16.mxu0 0
        %1777 = vmatpush2.bf16.msra.mxu0 0
        %1778 = vmatprep.subr.bf16.mxu0 0
        %1779 = vmatpush2.bf16.msra.mxu0 0
        %1780 = vmatprep.subr.bf16.mxu0 0
        %1781 = vmatpush2.bf16.msra.mxu0 0
        %1782 = vmatprep.subr.bf16.mxu0 0
        %1783 = vmatpush2.bf16.msra.mxu0 0
        %1784 = vmatprep.subr.bf16.mxu0 0
        %1785 = vmatpush2.bf16.msra.mxu0 0
        %1786 = vmatprep.subr.bf16.mxu0 0
        %1787 = vmatpush2.bf16.msra.mxu0 0
        %1788 = vmatprep.mubr.bf16.mxu0 0
        %1789 = vmatmul.mubr.bf16.gmra.mxu0 %v1647
        %v1790 = vpop.f32.mrf.mxu0
        %v1791 = vadd.f32 %v1669, %v1790
        %v1792 = vpop.f32.mrf.mxu0
        %v1793 = vadd.f32 %v1673, %v1792
        %v1794 = vpop.f32.mrf.mxu0
        %v1795 = vadd.f32 %v1669, %v1794
        %v1796 = vpop.f32.mrf.mxu0
        %v1797 = vadd.f32 %v1673, %v1796
        %1798 = vdwg.mxu0
        %v1799 = vmul.f32 %v1791, 0.5
        %v1800 = vmul.f32 %v1793, 0.5
        %v1801 = vmul.f32 %v1795, 0.5
        %v1802 = vmul.f32 %v1797, 0.5
        %v1803 = vmul.f32 %v1791, 0.044715
        %v1804 = vmul.f32 %v1793, 0.044715
        %v1805 = vmul.f32 %v1795, 0.044715
        %v1806 = vmul.f32 %v1797, 0.044715
        %v1807 = vmul.f32 %v1803, %v1791
        %v1808 = vmul.f32 %v1804, %v1793
        %v1809 = vmul.f32 %v1805, %v1795
        %v1810 = vmul.f32 %v1806, %v1797
        %v1811 = vmul.f32 %v1807, %v1791
        %v1812 = vmul.f32 %v1808, %v1793
        %v1813 = vmul.f32 %v1809, %v1795
        %v1814 = vmul.f32 %v1810, %v1797
        %v1815 = vadd.f32 %v1791, %v1811
        %v1816 = vadd.f32 %v1793, %v1812
        %v1817 = vadd.f32 %v1795, %v1813
        %v1818 = vadd.f32 %v1797, %v1814
        %v1819 = vmul.f32 %v1815, 0.7978846
        %v1820 = vmul.f32 %v1816, 0.7978846
        %v1821 = vmul.f32 %v1817, 0.7978846
        %v1822 = vmul.f32 %v1818, 0.7978846
        %v1823 = vtanh.pop %v1819
        %v1824 = vtanh.pop %v1820
        %v1825 = vtanh.pop %v1821
        %v1826 = vtanh.pop %v1822
        %v1827 = vadd.f32 %v1823, 1.0
        %v1828 = vadd.f32 %v1824, 1.0
        %v1829 = vadd.f32 %v1825, 1.0
        %v1830 = vadd.f32 %v1826, 1.0
        %v1831 = vmul.f32 %v1799, %v1827
        %v1832 = vmul.f32 %v1800, %v1828
        %v1833 = vmul.f32 %v1801, %v1829
        %v1834 = vmul.f32 %v1802, %v1830
        %v1835 = vpack.c.bf16 %v1833, %v1831
        %v1836 = vpack.c.bf16 %v1834, %v1832
        %v1837 = vld [vmem:[%s601] sm:$0xf]
        %v1838 = vld [vmem:[%s601 + $0x4] sm:$0xf]
        %v1839 = vld [vmem:[%s601 + $0x8] sm:$0xf]
        %v1840 = vld [vmem:[%s601 + $0xc] sm:$0xf]
        %v1841 = vld [vmem:[%s601 + $0x10] sm:$0xf]
        %v1842 = vld [vmem:[%s601 + $0x14] sm:$0xf]
        %v1843 = vld [vmem:[%s601 + $0x18] sm:$0xf]
        %v1844 = vld [vmem:[%s601 + $0x1c] sm:$0xf]
        %v1845 = vld [vmem:[%s601 + $0x20] sm:$0xf]
        %v1846 = vld [vmem:[%s601 + $0x24] sm:$0xf]
        %v1847 = vld [vmem:[%s601 + $0x28] sm:$0xf]
        %v1848 = vld [vmem:[%s601 + $0x2c] sm:$0xf]
        %v1849 = vld [vmem:[%s601 + $0x30] sm:$0xf]
        %v1850 = vld [vmem:[%s601 + $0x34] sm:$0xf]
        %v1851 = vld [vmem:[%s601 + $0x38] sm:$0xf]
        %v1852 = vld [vmem:[%s601 + $0x3c] sm:$0xf]
        %v1853 = vld [vmem:[%s601 + $0x40] sm:$0xf]
        %v1854 = vld [vmem:[%s601 + $0x44] sm:$0xf]
        %v1855 = vld [vmem:[%s601 + $0x48] sm:$0xf]
        %v1856 = vld [vmem:[%s601 + $0x4c] sm:$0xf]
        %v1857 = vld [vmem:[%s601 + $0x50] sm:$0xf]
        %v1858 = vld [vmem:[%s601 + $0x54] sm:$0xf]
        %v1859 = vld [vmem:[%s601 + $0x58] sm:$0xf]
        %v1860 = vld [vmem:[%s601 + $0x5c] sm:$0xf]
        %v1861 = vld [vmem:[%s601 + $0x60] sm:$0xf]
        %v1862 = vld [vmem:[%s601 + $0x64] sm:$0xf]
        %v1863 = vld [vmem:[%s601 + $0x68] sm:$0xf]
        %v1864 = vld [vmem:[%s601 + $0x6c] sm:$0xf]
        %v1865 = vld [vmem:[%s601 + $0x70] sm:$0xf]
        %v1866 = vld [vmem:[%s601 + $0x74] sm:$0xf]
        %v1867 = vld [vmem:[%s601 + $0x78] sm:$0xf]
        %v1868 = vld [vmem:[%s601 + $0x7c] sm:$0xf]
        %v1869 = vld [vmem:[%s708] sm:$0x1]
        %v1871 = vlaneseq
        %v1872 = vshrl.u32 %v1871, 7
        %v1873 = vsub.s32 0, %v1872
        %v1874 = vrot.slane %v1869, %v1873
        %v1908 = vunpack.c.l.b16 %v1837
        %v1909 = vunpack.c.l.b16 %v1838
        %v1910 = vunpack.c.l.b16 %v1839
        %v1911 = vunpack.c.l.b16 %v1840
        %v1912 = vunpack.c.l.b16 %v1841
        %v1913 = vunpack.c.l.b16 %v1842
        %v1914 = vunpack.c.l.b16 %v1843
        %v1915 = vunpack.c.l.b16 %v1844
        %v1916 = vunpack.c.l.b16 %v1845
        %v1917 = vunpack.c.l.b16 %v1846
        %v1918 = vunpack.c.l.b16 %v1847
        %v1919 = vunpack.c.l.b16 %v1848
        %v1920 = vunpack.c.l.b16 %v1849
        %v1921 = vunpack.c.l.b16 %v1850
        %v1922 = vunpack.c.l.b16 %v1851
        %v1923 = vunpack.c.l.b16 %v1852
        %v1924 = vunpack.c.l.b16 %v1853
        %v1925 = vunpack.c.l.b16 %v1854
        %v1926 = vunpack.c.l.b16 %v1855
        %v1927 = vunpack.c.l.b16 %v1856
        %v1928 = vunpack.c.l.b16 %v1857
        %v1929 = vunpack.c.l.b16 %v1858
        %v1930 = vunpack.c.l.b16 %v1859
        %v1931 = vunpack.c.l.b16 %v1860
        %v1932 = vunpack.c.l.b16 %v1861
        %v1933 = vunpack.c.l.b16 %v1862
        %v1934 = vunpack.c.l.b16 %v1863
        %v1935 = vunpack.c.l.b16 %v1864
        %v1936 = vunpack.c.l.b16 %v1865
        %v1937 = vunpack.c.l.b16 %v1866
        %v1938 = vunpack.c.l.b16 %v1867
        %v1939 = vunpack.c.l.b16 %v1868
        %v1940 = vpack.c.b16 %v1909, %v1908
        %v1941 = vpack.c.b16 %v1911, %v1910
        %v1942 = vpack.c.b16 %v1913, %v1912
        %v1943 = vpack.c.b16 %v1915, %v1914
        %v1944 = vpack.c.b16 %v1917, %v1916
        %v1945 = vpack.c.b16 %v1919, %v1918
        %v1946 = vpack.c.b16 %v1921, %v1920
        %v1947 = vpack.c.b16 %v1923, %v1922
        %v1948 = vpack.c.b16 %v1925, %v1924
        %v1949 = vpack.c.b16 %v1927, %v1926
        %v1950 = vpack.c.b16 %v1929, %v1928
        %v1951 = vpack.c.b16 %v1931, %v1930
        %v1952 = vpack.c.b16 %v1933, %v1932
        %v1953 = vpack.c.b16 %v1935, %v1934
        %v1954 = vpack.c.b16 %v1937, %v1936
        %v1955 = vpack.c.b16 %v1939, %v1938
        %1972 = vmatprep.subr.bf16.mxu0 0
        %1973 = vmatpush1.bf16.msra.mxu0 %v1947
        %1974 = vmatprep.subr.bf16.mxu0 0
        %1975 = vmatpush1.bf16.msra.mxu0 %v1946
        %1976 = vmatprep.subr.bf16.mxu0 0
        %1977 = vmatpush1.bf16.msra.mxu0 %v1945
        %1978 = vmatprep.subr.bf16.mxu0 0
        %1979 = vmatpush1.bf16.msra.mxu0 %v1944
        %1980 = vmatprep.subr.bf16.mxu0 0
        %1981 = vmatpush1.bf16.msra.mxu0 %v1943
        %1982 = vmatprep.subr.bf16.mxu0 0
        %1983 = vmatpush1.bf16.msra.mxu0 %v1942
        %1984 = vmatprep.subr.bf16.mxu0 0
        %1985 = vmatpush1.bf16.msra.mxu0 %v1941
        %1986 = vmatprep.subr.bf16.mxu0 0
        %1987 = vmatpush1.bf16.msra.mxu0 %v1940
        %1988 = vmatprep.subr.bf16.mxu0 0
        %1989 = vmatpush2.bf16.msra.mxu0 %v1955
        %1990 = vmatprep.subr.bf16.mxu0 0
        %1991 = vmatpush2.bf16.msra.mxu0 %v1954
        %1992 = vmatprep.subr.bf16.mxu0 0
        %1993 = vmatpush2.bf16.msra.mxu0 %v1953
        %1994 = vmatprep.subr.bf16.mxu0 0
        %1995 = vmatpush2.bf16.msra.mxu0 %v1952
        %1996 = vmatprep.subr.bf16.mxu0 0
        %1997 = vmatpush2.bf16.msra.mxu0 %v1951
        %1998 = vmatprep.subr.bf16.mxu0 0
        %1999 = vmatpush2.bf16.msra.mxu0 %v1950
        %2000 = vmatprep.subr.bf16.mxu0 0
        %2001 = vmatpush2.bf16.msra.mxu0 %v1949
        %2002 = vmatprep.subr.bf16.mxu0 0
        %2003 = vmatpush2.bf16.msra.mxu0 %v1948
        %2004 = vmatprep.mubr.bf16.mxu0 %v1836
        %2005 = vmatmul.mubr.bf16.gmra.mxu0 %v1835
        %v2006 = vpop.f32.mrf.mxu0
        %v2007 = vadd.f32 %v1874, %v2006
        %v2008 = vpop.f32.mrf.mxu0
        %v2009 = vpop.f32.mrf.mxu0
        %v2010 = vadd.f32 %v1874, %v2009
        %v2011 = vpop.f32.mrf.mxu0
        %2012 = vdwg.mxu0
        %v2013 = vadd.f32 %v2007, %v1645
        %v2014 = vadd.f32 %v2010, %v1646
        %v2015 = vld [vmem:[%s711] sm:$0x1]
        %v2016 = vld [vmem:[%s714] sm:$0x1]
        %2017 = vadd.xlane.f32.xlu0 %v2013
        %v2018 = vpop.xlane.xlu0 %2017
        %2019 = vadd.xlane.f32.xlu0 %v2014
        %v2020 = vpop.xlane.xlu0 %2019
        %v2021 = vmul.f32 %v2018, %v1612
        %v2022 = vmul.f32 %v2020, %v1612
        %v2023 = vsub.f32 %v2013, %v2021
        %v2024 = vsub.f32 %v2014, %v2022
        %v2025 = vmul.f32 %v2023, %v2023
        %v2026 = vmul.f32 %v2024, %v2024
        %2027 = vadd.xlane.f32.xlu0 %v2025
        %v2028 = vpop.xlane.xlu0 %2027
        %2029 = vadd.xlane.f32.xlu0 %v2026
        %v2030 = vpop.xlane.xlu0 %2029
        %v2031 = vmul.f32 %v2028, %v1612
        %v2032 = vmul.f32 %v2030, %v1612
        %v2033 = vadd.f32 %v2031, 1e-12
        %v2034 = vadd.f32 %v2032, 1e-12
        %v2035 = vrsqrt.pop %v2033
        %v2036 = vrsqrt.pop %v2034
        %v2037 = vmul.f32 %v2023, %v2035
        %v2038 = vmul.f32 %v2024, %v2036
        %v2040 = vlaneseq
        %v2041 = vshrl.u32 %v2040, 7
        %v2042 = vsub.s32 0, %v2041
        %v2043 = vrot.slane %v2015, %v2042
        %v2045 = vmul.f32 %v2037, %v2043
        %v2046 = vmul.f32 %v2038, %v2043
        %v2048 = vlaneseq
        %v2049 = vshrl.u32 %v2048, 7
        %v2050 = vsub.s32 0, %v2049
        %v2051 = vrot.slane %v2016, %v2050
        %v2053 = vadd.f32 %v2045, %v2051
        %v2054 = vadd.f32 %v2046, %v2051
        %2055 = vst [vmem:[%s15] sm:$0xff] %v2053
        %2056 = vst [vmem:[%s15 + $0x8] sm:$0xff] %v2054
        // Predicated region
        $region97: #{my_diffusion_forward.4} parent=79 // pred_check
          %p2057 = pneg %p420
        $region98: #{my_diffusion_forward.4} parent=79 // pred_check_branch
          %2059 = sbr.rel (%p2057) target = $region100
        $region99: #{my_diffusion_forward.4} parent=79 // pred_region
          _
        $region100: #{my_diffusion_forward.4} parent=79 // pred_fallthru
          _
        // Predicated region
        $region101: #{my_diffusion_forward.4} parent=79 // pred_check
          %p2060 = pneg %p420
        $region102: #{my_diffusion_forward.4} parent=79 // pred_check_branch
          %2062 = sbr.rel (%p2060) target = $region104
        $region103: #{my_diffusion_forward.4} parent=79 // pred_region
          _
        $region104: #{my_diffusion_forward.4} parent=79 // pred_fallthru
          _
      $region80: #{my_diffusion_forward.4} parent=5 // pred_fallthru
        _
      %p2063 = scmp.le.s32.totalorder 2, %s27
      // Predicated region
      $region105: #{my_diffusion_forward.4} parent=5 // pred_check
        %p2064 = pneg %p2063
      $region106: #{my_diffusion_forward.4} parent=5 // pred_check_branch
        %2066 = sbr.rel (%p2064) target = $region108
      $region107: #{my_diffusion_forward.4} parent=5 // pred_region
        %s2067 = ssub.s32 %s27, 2
      $region108: #{my_diffusion_forward.4} parent=5 // pred_fallthru
        _
    $region6: #{my_diffusion_forward.4} parent=1 // loop_footer
      %s31 = sadd.s32 1, %s27
    $region7: #{my_diffusion_forward.4} parent=1 // loop_footer_branch
      %26 = sbr.rel target = $region3
    $region8: #{my_diffusion_forward.4} parent=1 // loop_exit
      _
    %2068 = vsyncpa [#allocation4], 1
    %s2069 = scalar_lea.sflag [#allocation4], 1
    %2070 = vsyncpa %s2069, 1
    %2071 = vsyncpa [#allocation6], 1
    %s2072 = scalar_lea.sflag [#allocation6], 1
    %2073 = vsyncpa %s2072, 1

</llo_original>
